<compile_context>
chip_gen: v5e
topology: v5e:2x2
jax: 0.10.0
libtpu: 0.0.40
codegen_flags: <defaults>
</compile_context>

<pallas_src>
import functools

import jax
import jax.numpy as jnp
from jax.experimental import pallas as pl
from jax.experimental.pallas import tpu as pltpu

_NEG_INF = -1e30  # large-negative mask value (avoids inf-inf NaN corner cases)
_VMEM_LIMIT = 32 * 1024 * 1024


# ----------------------------------------------------------------------------
# Tiling helpers
# ----------------------------------------------------------------------------
def _pick_tile_exact(n, pref, align):
    """Largest multiple of `align` that divides n and is <= pref; fallback n."""
    if n <= pref:
        return n
    t = (pref // align) * align
    while t >= align:
        if n % t == 0:
            return t
        t -= align
    return n


# ----------------------------------------------------------------------------
# Tiled linear kernel:  out = act( LN?(x) @ W + b? ) + residual?
# ----------------------------------------------------------------------------
def _linear_kernel(*refs, activation, n_k, has_bias, has_ln, has_res,
                   compute_dtype, single_k):
    it = iter(refs)
    x_ref = next(it)
    w_ref = next(it)
    b_ref = next(it) if has_bias else None
    g_ref = next(it) if has_ln else None
    bb_ref = next(it) if has_ln else None
    r_ref = next(it) if has_res else None
    o_ref = next(it)
    acc_ref = None if single_k else next(it)

    def load_x():
        if has_ln:
            # matches LayerNorm(x.float()).type(x.dtype), eps = 1e-5
            x = x_ref[...].astype(jnp.float32)
            mu = jnp.mean(x, axis=-1, keepdims=True)
            var = jnp.mean(jnp.square(x - mu), axis=-1, keepdims=True)
            x = (x - mu) * jax.lax.rsqrt(var + 1e-5)
            x = x * g_ref[...].astype(jnp.float32) + bb_ref[...].astype(jnp.float32)
            return x.astype(compute_dtype)
        return x_ref[...].astype(compute_dtype)

    def epilogue(y):
        if has_bias:
            y = y + b_ref[...].astype(jnp.float32)
        if activation == "gelu":
            # exact (erf-based) GELU, matching torch.nn.GELU() default
            y = 0.5 * y * (1.0 + jax.lax.erf(y * (2.0 ** -0.5)))
        if has_res:
            y = y + r_ref[...].astype(jnp.float32)
        return y.astype(o_ref.dtype)

    if single_k:
        # Whole contraction in one block: no accumulator, no init/finalize.
        y = jnp.dot(load_x(), w_ref[...].astype(compute_dtype),
                    preferred_element_type=jnp.float32)
        o_ref[...] = epilogue(y)
    else:
        kk = pl.program_id(2)

        @pl.when(kk == 0)
        def _init():
            acc_ref[...] = jnp.zeros_like(acc_ref)

        acc_ref[...] += jnp.dot(load_x(), w_ref[...].astype(compute_dtype),
                                preferred_element_type=jnp.float32)

        @pl.when(kk == n_k - 1)
        def _finalize():
            o_ref[...] = epilogue(acc_ref[...])


def linear(x2d, w, b=None, *, activation=None, ln=None, residual=None,
           out_dtype=None, compute_dtype=jnp.bfloat16,
           tm_pref=512, tn_pref=512, tk_pref=1536):
    """y = act( LN?(x2d) @ w + b? ) + residual?.  w is (Din, Dout)."""
    M, Din = x2d.shape
    Din_w, Dout = w.shape
    assert Din_w == Din
    out_dtype = out_dtype or x2d.dtype

    has_bias = b is not None
    has_ln = ln is not None
    has_res = residual is not None

    # Tile sizes obey the (8, 128) constraints; K tiles divide Din exactly so
    # partial K blocks never pollute the accumulator.
    tm = M if M <= tm_pref else (tm_pref // 8) * 8
    tn = Dout if Dout <= tn_pref else (tn_pref // 128) * 128
    tk = Din if has_ln else _pick_tile_exact(Din, tk_pref, 128)
    n_k = Din // tk
    single_k = (n_k == 1)
    assert single_k or not has_ln  # LN prologue needs the full row

    n_m = pl.cdiv(M, tm)
    n_n = pl.cdiv(Dout, tn)

    args = [x2d, w.astype(compute_dtype)]
    if single_k:
        grid = (n_m, n_n)
        in_specs = [
            pl.BlockSpec((tm, Din), lambda i, j: (i, 0)),
            pl.BlockSpec((Din, tn), lambda i, j: (0, j)),
        ]
        if has_bias:
            args.append(b.reshape(1, Dout).astype(jnp.float32))
            in_specs.append(pl.BlockSpec((1, tn), lambda i, j: (0, j)))
        if has_ln:
            g, beta = ln
            args.append(g.reshape(1, Din).astype(jnp.float32))
            args.append(beta.reshape(1, Din).astype(jnp.float32))
            in_specs.append(pl.BlockSpec((1, Din), lambda i, j: (0, 0)))
            in_specs.append(pl.BlockSpec((1, Din), lambda i, j: (0, 0)))
        if has_res:
            args.append(residual)
            in_specs.append(pl.BlockSpec((tm, tn), lambda i, j: (i, j)))
        out_specs = pl.BlockSpec((tm, tn), lambda i, j: (i, j))
        scratch_shapes = []
        semantics = ("parallel", "parallel")
    else:
        grid = (n_m, n_n, n_k)
        in_specs = [
            pl.BlockSpec((tm, tk), lambda i, j, k: (i, k)),
            pl.BlockSpec((tk, tn), lambda i, j, k: (k, j)),
        ]
        if has_bias:
            args.append(b.reshape(1, Dout).astype(jnp.float32))
            in_specs.append(pl.BlockSpec((1, tn), lambda i, j, k: (0, j)))
        if has_res:
            args.append(residual)
            in_specs.append(pl.BlockSpec((tm, tn), lambda i, j, k: (i, j)))
        out_specs = pl.BlockSpec((tm, tn), lambda i, j, k: (i, j))
        scratch_shapes = [pltpu.VMEM((tm, tn), jnp.float32)]
        semantics = ("parallel", "parallel", "arbitrary")

    kernel = functools.partial(
        _linear_kernel, activation=activation, n_k=n_k, has_bias=has_bias,
        has_ln=has_ln, has_res=has_res, compute_dtype=compute_dtype,
        single_k=single_k)

    return pl.pallas_call(
        kernel,
        grid=grid,
        out_shape=jax.ShapeDtypeStruct((M, Dout), out_dtype),
        in_specs=in_specs,
        out_specs=out_specs,
        scratch_shapes=scratch_shapes,
        compiler_params=pltpu.CompilerParams(
            dimension_semantics=semantics,
            vmem_limit_bytes=_VMEM_LIMIT),
    )(*args)


# ----------------------------------------------------------------------------
# Flash-style attention kernel (online softmax, heads in the lane dimension,
# causal block skipping, lane-dense single-store finalize)
# ----------------------------------------------------------------------------
def _flash_attn_kernel(q_ref, k_ref, v_ref, o_ref, q_sc, m_sc, l_sc, acc_sc,
                       *, scale, causal, n_head, tq, tks, n_kv, s_len,
                       compute_dtype):
    qi = pl.program_id(1)
    ki = pl.program_id(2)
    H = n_head
    D = q_ref.shape[-1]
    Dh = D // H

    @pl.when(ki == 0)
    def _init():
        # hoist q scale + bf16 cast out of the kv loop (q is resident over ki)
        q_sc[...] = (q_ref[0].astype(jnp.float32) * scale).astype(compute_dtype)
        m_sc[...] = jnp.full_like(m_sc, -jnp.inf)
        l_sc[...] = jnp.zeros_like(l_sc)
        acc_sc[...] = jnp.zeros_like(acc_sc)

    def _update():
        q = q_sc[...]                              # (tq, D)  pre-scaled bf16
        k = k_ref[0].astype(compute_dtype)         # (tks, D)
        v = v_ref[0].astype(compute_dtype)         # (tks, D)

        # mask shared across heads: padded KV columns (+ causal for self-attn)
        col = ki * tks + jax.lax.broadcasted_iota(jnp.int32, (tq, tks), 1)
        invalid = col >= s_len
        if causal:
            row = qi * tq + jax.lax.broadcasted_iota(jnp.int32, (tq, tks), 0)
            invalid = invalid | (col > row)

        for h in range(H):
            sl = slice(h * Dh, (h + 1) * Dh)
            s = jax.lax.dot_general(
                q[:, sl], k[:, sl], (((1,), (1,)), ((), ())),
                preferred_element_type=jnp.float32)           # (tq, tks)
            s = jnp.where(invalid, _NEG_INF, s)
            m_prev = m_sc[:, h:h + 1]                          # (tq, 1)
            m_new = jnp.maximum(m_prev, jnp.max(s, axis=-1, keepdims=True))
            alpha = jnp.exp(m_prev - m_new)
            p = jnp.exp(s - m_new)
            l_sc[:, h:h + 1] = alpha * l_sc[:, h:h + 1] + jnp.sum(
                p, axis=-1, keepdims=True)
            acc_sc[:, sl] = alpha * acc_sc[:, sl] + jnp.dot(
                p.astype(compute_dtype), v[:, sl],
                preferred_element_type=jnp.float32)
            m_sc[:, h:h + 1] = m_new

    if causal:
        # skip kv blocks lying entirely above the causal diagonal
        pl.when(ki * tks <= qi * tq + (tq - 1))(_update)
    else:
        _update()

    @pl.when(ki == n_kv - 1)
    def _finalize():
        inv_l = pl.reciprocal(l_sc[...], approx=True)          # (tq, H)
        acc = acc_sc[...]
        out = jnp.concatenate(
            [acc[:, h * Dh:(h + 1) * Dh] * inv_l[:, h:h + 1] for h in range(H)],
            axis=-1)                                           # (tq, D)
        o_ref[0] = out.astype(o_ref.dtype)                     # single lane-dense store


def attention(q_arr, k_arr, v_arr, *, d_model, n_head, causal, scale,
              q_idx=0, k_idx=0, v_idx=0, out_dtype=jnp.bfloat16,
              compute_dtype=jnp.bfloat16, tq_pref=256, tk_pref=256):
    """softmax(q kᵀ + mask) v  with heads packed along the lane dim.

    q_arr: (B, T, nq*D) -- q occupies last-dim block `q_idx` of width D.
    k_arr/v_arr: (B, S, nk*D) -- k/v occupy blocks `k_idx`/`v_idx`.
    Returns (B, T, D).
    """
    B, T = q_arr.shape[0], q_arr.shape[1]
    S = k_arr.shape[1]
    D = d_model
    H = n_head

    tq = T if T <= tq_pref else (tq_pref // 8) * 8
    tks = S if S <= tk_pref else (tk_pref // 8) * 8
    n_q = pl.cdiv(T, tq)
    n_kv = pl.cdiv(S, tks)

    kernel = functools.partial(
        _flash_attn_kernel, scale=scale, causal=causal, n_head=H,
        tq=tq, tks=tks, n_kv=n_kv, s_len=S, compute_dtype=compute_dtype)

    return pl.pallas_call(
        kernel,
        grid=(B, n_q, n_kv),
        out_shape=jax.ShapeDtypeStruct((B, T, D), out_dtype),
        in_specs=[
            pl.BlockSpec((1, tq, D), lambda b, qi, ki: (b, qi, q_idx)),
            pl.BlockSpec((1, tks, D), lambda b, qi, ki: (b, ki, k_idx)),
            pl.BlockSpec((1, tks, D), lambda b, qi, ki: (b, ki, v_idx)),
        ],
        out_specs=pl.BlockSpec((1, tq, D), lambda b, qi, ki: (b, qi, 0)),
        scratch_shapes=[
            pltpu.VMEM((tq, D), compute_dtype),   # pre-scaled q
            pltpu.VMEM((tq, H), jnp.float32),     # running max (per head lane)
            pltpu.VMEM((tq, H), jnp.float32),     # running sum (per head lane)
            pltpu.VMEM((tq, D), jnp.float32),     # output accumulator
        ],
        compiler_params=pltpu.CompilerParams(
            dimension_semantics=("parallel", "parallel", "arbitrary"),
            vmem_limit_bytes=_VMEM_LIMIT),
    )(q_arr, k_arr, v_arr)


# ----------------------------------------------------------------------------
# Model (plain-JAX glue around the kernels)
# ----------------------------------------------------------------------------
def block_forward(p, x, xa, n_head):
    B, T, D = x.shape
    S = xa.shape[1]
    H = n_head
    Dh = D // H
    scale = float(Dh) ** -0.5   # == (Dh**-0.25 on q) * (Dh**-0.25 on k)
    # When D is lane-aligned, feed the fused projection output directly to the
    # attention kernel (last-dim block index selects q/k/v) -- no HBM slice or
    # head-split round trip.  Tiny/unaligned D falls back to wrapper slicing.
    lane_ok = (D % 128 == 0)

    x2 = x.reshape(B * T, D)                     # f32 residual stream

    # --- self-attention (attn_ln fused into the fused QKV projection) ---
    qkv = linear(x2, p["attn"]["wqkv"], p["attn"]["bqkv"],
                 ln=(p["attn_ln"]["g"], p["attn_ln"]["b"]),
                 out_dtype=jnp.bfloat16).reshape(B, T, 3 * D)
    if lane_ok:
        att = attention(qkv, qkv, qkv, d_model=D, n_head=H,
                        q_idx=0, k_idx=1, v_idx=2, causal=True, scale=scale)
    else:
        q, k, v = qkv[..., :D], qkv[..., D:2 * D], qkv[..., 2 * D:]
        att = attention(q, k, v, d_model=D, n_head=H, causal=True, scale=scale)
    x2 = linear(att.reshape(B * T, D), p["attn"]["wo"], p["attn"]["bo"],
                residual=x2)                     # residual add fused, f32 out

    # --- cross-attention (cross_ln fused into Q; fused KV from audio feats) ---
    q = linear(x2, p["cross"]["wq"], p["cross"]["bq"],
               ln=(p["cross_ln"]["g"], p["cross_ln"]["b"]),
               out_dtype=jnp.bfloat16).reshape(B, T, D)
    kv = linear(xa.reshape(B * S, D), p["cross"]["wkv"], p["cross"]["bkv"],
                out_dtype=jnp.bfloat16).reshape(B, S, 2 * D)
    if lane_ok:
        att = attention(q, kv, kv, d_model=D, n_head=H,
                        q_idx=0, k_idx=0, v_idx=1, causal=False, scale=scale)
    else:
        k, v = kv[..., :D], kv[..., D:]
        att = attention(q, k, v, d_model=D, n_head=H, causal=False, scale=scale)
    x2 = linear(att.reshape(B * T, D), p["cross"]["wo"], p["cross"]["bo"],
                residual=x2)

    # --- MLP (mlp_ln fused into w1, exact GELU epilogue, residual fused) ---
    h = linear(x2, p["mlp"]["w1"], p["mlp"]["b1"], activation="gelu",
               ln=(p["mlp_ln"]["g"], p["mlp_ln"]["b"]), out_dtype=jnp.bfloat16)
    x2 = linear(h, p["mlp"]["w2"], p["mlp"]["b2"], residual=x2)

    return x2.reshape(B, T, D)


def text_decoder_forward(params, tokens, xa, n_head):
    B, T = tokens.shape
    D = params["pos_emb"].shape[1]
    V = params["tok_emb"].shape[0]

    # glue: embedding gather + positional embedding (offset = 0, no kv_cache)
    # TODO(synk): kv_cache / include_embeddings paths of the reference are not implemented.
    x = params["tok_emb"][tokens] + params["pos_emb"][:T]
    x = x.astype(xa.dtype)

    for blk in params["blocks"]:
        x = block_forward(blk, x, xa, n_head)

    # final LayerNorm fused into the (bias-free) logits projection, f32 out
    logits = linear(x.reshape(B * T, D), params["tok_emb_t"],
                    ln=(params["ln_g"], params["ln_b"]), out_dtype=jnp.float32)
    return logits.reshape(B, T, V)


# ----------------------------------------------------------------------------
# Deterministic parameter initialization (kernel-friendly layout)
#   Equivalent torch params: Linear.weight is (Dout, Din); here we store the
#   transpose (Din, Dout) in bf16, QKV / KV projections fused along Dout, and
#   the zero K-bias folded into the fused bias vector.
# ----------------------------------------------------------------------------
def init_params(key, n_vocab, n_ctx, n_state, n_head, n_layer,
                w_dtype=jnp.bfloat16):
    D = n_state
    n_mlp = 4 * D
    keys = iter(jax.random.split(key, 16 + n_layer * 32))

    def rnd(shape, scale=0.02, dtype=jnp.float32):
        return (scale * jax.random.normal(next(keys), shape)).astype(dtype)

    def ln_params():
        return {"g": 1.0 + rnd((D,)), "b": rnd((D,))}

    tok_emb = rnd((n_vocab, D))                       # (V, D) f32 for the gather
    params = {
        "tok_emb": tok_emb,
        "tok_emb_t": tok_emb.T.astype(w_dtype),       # (D, V) bf16 for logits matmul
        "pos_emb": rnd((n_ctx, D)),
        "ln_g": 1.0 + rnd((D,)),
        "ln_b": rnd((D,)),
        "blocks": [],
    }
    zero_d = jnp.zeros((D,), jnp.float32)
    for _ in range(n_layer):
        params["blocks"].append({
            "attn": {
                "wqkv": rnd((D, 3 * D), dtype=w_dtype),
                "bqkv": jnp.concatenate([rnd((D,)), zero_d, rnd((D,))]),  # K has no bias
                "wo": rnd((D, D), dtype=w_dtype), "bo": rnd((D,)),
            },
            "attn_ln": ln_params(),
            "cross": {
                "wq": rnd((D, D), dtype=w_dtype), "bq": rnd((D,)),
                "wkv": rnd((D, 2 * D), dtype=w_dtype),
                "bkv": jnp.concatenate([zero_d, rnd((D,))]),              # K has no bias
                "wo": rnd((D, D), dtype=w_dtype), "bo": rnd((D,)),
            },
            "cross_ln": ln_params(),
            "mlp": {
                "w1": rnd((D, n_mlp), dtype=w_dtype), "b1": rnd((n_mlp,)),
                "w2": rnd((n_mlp, D), dtype=w_dtype), "b2": rnd((D,)),
            },
            "mlp_ln": ln_params(),
        })
    return params


# ----------------------------------------------------------------------------
if __name__ == "__main__":
    n_vocab, n_ctx, n_state, n_head, n_layer = 128, 8, 32, 4, 2
    B, T, Ta = 2, 8, 16

    key = jax.random.PRNGKey(0)
    k_param, k_tok, k_xa = jax.random.split(key, 3)

    params = init_params(k_param, n_vocab, n_ctx, n_state, n_head, n_layer)
    tokens = jax.random.randint(k_tok, (B, T), 0, n_vocab, dtype=jnp.int32)
    xa = jax.random.normal(k_xa, (B, Ta, n_state), dtype=jnp.float32)

    fwd = jax.jit(functools.partial(text_decoder_forward, n_head=n_head))
    logits = fwd(params, tokens, xa)
    logits = jax.block_until_ready(logits)

    assert logits.shape == (B, T, n_vocab)
    assert logits.dtype == jnp.float32
    assert bool(jnp.all(jnp.isfinite(logits)))
    print("KERNEL_OK")
</pallas_src>

<mosaic_0001>
module attributes {stable_mosaic.version = 11 : i64} {
  func.func @_linear_kernel(%arg0: i32, %arg1: i32, %arg2: memref<16x32xf32, #tpu.memory_space<vmem>>, %arg3: memref<32x96xbf16, #tpu.memory_space<vmem>>, %arg4: memref<1x96xf32, #tpu.memory_space<vmem>>, %arg5: memref<1x32xf32, #tpu.memory_space<vmem>>, %arg6: memref<1x32xf32, #tpu.memory_space<vmem>>, %arg7: memref<16x96xbf16, #tpu.memory_space<vmem>>) attributes {dimension_semantics = [#tpu.dimension_semantics<parallel>, #tpu.dimension_semantics<parallel>], iteration_bounds = array<i64: 1, 1>, scalar_prefetch = 0 : i64, scratch_operands = 0 : i64, tpu.core_type = #tpu.core_type<tc>, window_params = [{transform_indices = @transform_0, window_bounds = array<i64: 16, 32>}, {transform_indices = @transform_1, window_bounds = array<i64: 32, 96>}, {transform_indices = @transform_2, window_bounds = array<i64: 1, 96>}, {pipeline_mode = #tpu.pipeline_mode<synchronous>, transform_indices = @transform_3, window_bounds = array<i64: 1, 32>}, {pipeline_mode = #tpu.pipeline_mode<synchronous>, transform_indices = @transform_4, window_bounds = array<i64: 1, 32>}, {transform_indices = @transform_5, window_bounds = array<i64: 16, 96>}]} {
    %c0 = arith.constant 0 : index
    %c0_0 = arith.constant 0 : index
    %0 = vector.load %arg2[%c0, %c0_0] : memref<16x32xf32, #tpu.memory_space<vmem>>, vector<16x32xf32>
    %cst = arith.constant dense<0.000000e+00> : vector<16xf32>
    %1 = vector.multi_reduction <add>, %0, %cst [1] : vector<16x32xf32> to vector<16xf32>
    %2 = vector.shape_cast %1 : vector<16xf32> to vector<16x1xf32>
    %cst_1 = arith.constant 3.200000e+01 : f32
    %3 = vector.broadcast %cst_1 : f32 to vector<16x1xf32>
    %4 = arith.divf %2, %3 : vector<16x1xf32>
    %5 = vector.broadcast %4 : vector<16x1xf32> to vector<16x32xf32>
    %6 = arith.subf %0, %5 : vector<16x32xf32>
    %7 = arith.mulf %6, %6 : vector<16x32xf32>
    %cst_2 = arith.constant dense<0.000000e+00> : vector<16xf32>
    %8 = vector.multi_reduction <add>, %7, %cst_2 [1] : vector<16x32xf32> to vector<16xf32>
    %9 = vector.shape_cast %8 : vector<16xf32> to vector<16x1xf32>
    %cst_3 = arith.constant 3.200000e+01 : f32
    %10 = vector.broadcast %cst_3 : f32 to vector<16x1xf32>
    %11 = arith.divf %9, %10 : vector<16x1xf32>
    %12 = vector.broadcast %4 : vector<16x1xf32> to vector<16x32xf32>
    %13 = arith.subf %0, %12 : vector<16x32xf32>
    %cst_4 = arith.constant 9.99999974E-6 : f32
    %14 = vector.broadcast %cst_4 : f32 to vector<16x1xf32>
    %15 = arith.addf %11, %14 : vector<16x1xf32>
    %16 = math.rsqrt %15 : vector<16x1xf32>
    %17 = vector.broadcast %16 : vector<16x1xf32> to vector<16x32xf32>
    %18 = arith.mulf %13, %17 : vector<16x32xf32>
    %c0_5 = arith.constant 0 : index
    %c0_6 = arith.constant 0 : index
    %19 = vector.load %arg5[%c0_5, %c0_6] : memref<1x32xf32, #tpu.memory_space<vmem>>, vector<1x32xf32>
    %20 = vector.broadcast %19 : vector<1x32xf32> to vector<16x32xf32>
    %21 = arith.mulf %18, %20 : vector<16x32xf32>
    %c0_7 = arith.constant 0 : index
    %c0_8 = arith.constant 0 : index
    %22 = vector.load %arg6[%c0_7, %c0_8] : memref<1x32xf32, #tpu.memory_space<vmem>>, vector<1x32xf32>
    %23 = vector.broadcast %22 : vector<1x32xf32> to vector<16x32xf32>
    %24 = arith.addf %21, %23 : vector<16x32xf32>
    %25 = arith.truncf %24 : vector<16x32xf32> to vector<16x32xbf16>
    %c0_9 = arith.constant 0 : index
    %c0_10 = arith.constant 0 : index
    %26 = vector.load %arg3[%c0_9, %c0_10] : memref<32x96xbf16, #tpu.memory_space<vmem>>, vector<32x96xbf16>
    %cst_11 = arith.constant dense<0.000000e+00> : vector<16x96xf32>
    %27 = tpu.matmul %25, %26, %cst_11 {dimension_numbers = #tpu.dot_dimension_numbers<[1], [0], [0], [1], [0, 0, 1, 1], [], []>} : vector<16x32xbf16>, vector<32x96xbf16>, vector<16x96xf32> -> vector<16x96xf32>
    %c0_12 = arith.constant 0 : index
    %c0_13 = arith.constant 0 : index
    %28 = vector.load %arg4[%c0_12, %c0_13] : memref<1x96xf32, #tpu.memory_space<vmem>>, vector<1x96xf32>
    %29 = vector.broadcast %28 : vector<1x96xf32> to vector<16x96xf32>
    %30 = arith.addf %27, %29 : vector<16x96xf32>
    %31 = arith.truncf %30 : vector<16x96xf32> to vector<16x96xbf16>
    %c0_14 = arith.constant 0 : index
    %c0_15 = arith.constant 0 : index
    %32 = vector.load %arg7[%c0_14, %c0_15] : memref<16x96xbf16, #tpu.memory_space<vmem>>, vector<16x96xbf16>
    tpu.vector_store %arg7[%c0_14, %c0_15], %31 {strides = array<i32>} : memref<16x96xbf16, #tpu.memory_space<vmem>>, vector<16x96xbf16>,
    return
  }
  func.func @transform_0(%arg0: i32, %arg1: i32) -> (i32, i32) {
    %c0_i32 = arith.constant 0 : i32
    %c0_i32_0 = arith.constant 0 : i32
    return %arg0, %c0_i32 : i32, i32
  }
  func.func @transform_1(%arg0: i32, %arg1: i32) -> (i32, i32) {
    %c0_i32 = arith.constant 0 : i32
    %c0_i32_0 = arith.constant 0 : i32
    return %c0_i32, %arg1 : i32, i32
  }
  func.func @transform_2(%arg0: i32, %arg1: i32) -> (i32, i32) {
    %c0_i32 = arith.constant 0 : i32
    %c0_i32_0 = arith.constant 0 : i32
    return %c0_i32, %arg1 : i32, i32
  }
  func.func @transform_3(%arg0: i32, %arg1: i32) -> (i32, i32) {
    %c0_i32 = arith.constant 0 : i32
    %c0_i32_0 = arith.constant 0 : i32
    %c0_i32_1 = arith.constant 0 : i32
    return %c0_i32, %c0_i32_0 : i32, i32
  }
  func.func @transform_4(%arg0: i32, %arg1: i32) -> (i32, i32) {
    %c0_i32 = arith.constant 0 : i32
    %c0_i32_0 = arith.constant 0 : i32
    %c0_i32_1 = arith.constant 0 : i32
    return %c0_i32, %c0_i32_0 : i32, i32
  }
  func.func @transform_5(%arg0: i32, %arg1: i32) -> (i32, i32) {
    %c0_i32 = arith.constant 0 : i32
    return %arg0, %arg1 : i32, i32
  }
}

module attributes {stable_mosaic.version = 11 : i64} {
  func.func @_linear_kernel(%arg0: i32, %arg1: i32, %arg2: memref<16x32xbf16, #tpu.memory_space<vmem>>, %arg3: memref<32x32xbf16, #tpu.memory_space<vmem>>, %arg4: memref<1x32xf32, #tpu.memory_space<vmem>>, %arg5: memref<16x32xf32, #tpu.memory_space<vmem>>, %arg6: memref<16x32xbf16, #tpu.memory_space<vmem>>) attributes {dimension_semantics = [#tpu.dimension_semantics<parallel>, #tpu.dimension_semantics<parallel>], iteration_bounds = array<i64: 1, 1>, scalar_prefetch = 0 : i64, scratch_operands = 0 : i64, tpu.core_type = #tpu.core_type<tc>, window_params = [{transform_indices = @transform_0, window_bounds = array<i64: 16, 32>}, {transform_indices = @transform_1, window_bounds = array<i64: 32, 32>}, {transform_indices = @transform_2, window_bounds = array<i64: 1, 32>}, {transform_indices = @transform_3, window_bounds = array<i64: 16, 32>}, {transform_indices = @transform_4, window_bounds = array<i64: 16, 32>}]} {
    %c0 = arith.constant 0 : index
    %c0_0 = arith.constant 0 : index
    %0 = vector.load %arg2[%c0, %c0_0] : memref<16x32xbf16, #tpu.memory_space<vmem>>, vector<16x32xbf16>
    %c0_1 = arith.constant 0 : index
    %c0_2 = arith.constant 0 : index
    %1 = vector.load %arg3[%c0_1, %c0_2] : memref<32x32xbf16, #tpu.memory_space<vmem>>, vector<32x32xbf16>
    %cst = arith.constant dense<0.000000e+00> : vector<16x32xf32>
    %2 = tpu.matmul %0, %1, %cst {dimension_numbers = #tpu.dot_dimension_numbers<[1], [0], [0], [1], [0, 0, 1, 1], [], []>} : vector<16x32xbf16>, vector<32x32xbf16>, vector<16x32xf32> -> vector<16x32xf32>
    %c0_3 = arith.constant 0 : index
    %c0_4 = arith.constant 0 : index
    %3 = vector.load %arg4[%c0_3, %c0_4] : memref<1x32xf32, #tpu.memory_space<vmem>>, vector<1x32xf32>
    %4 = vector.broadcast %3 : vector<1x32xf32> to vector<16x32xf32>
    %5 = arith.addf %2, %4 : vector<16x32xf32>
    %c0_5 = arith.constant 0 : index
    %c0_6 = arith.constant 0 : index
    %6 = vector.load %arg5[%c0_5, %c0_6] : memref<16x32xf32, #tpu.memory_space<vmem>>, vector<16x32xf32>
    %7 = arith.addf %5, %6 : vector<16x32xf32>
    %8 = arith.truncf %7 : vector<16x32xf32> to vector<16x32xbf16>
    %c0_7 = arith.constant 0 : index
    %c0_8 = arith.constant 0 : index
    %9 = vector.load %arg6[%c0_7, %c0_8] : memref<16x32xbf16, #tpu.memory_space<vmem>>, vector<16x32xbf16>
    tpu.vector_store %arg6[%c0_7, %c0_8], %8 {strides = array<i32>} : memref<16x32xbf16, #tpu.memory_space<vmem>>, vector<16x32xbf16>,
    return
  }
  func.func @transform_0(%arg0: i32, %arg1: i32) -> (i32, i32) {
    %c0_i32 = arith.constant 0 : i32
    %c0_i32_0 = arith.constant 0 : i32
    return %arg0, %c0_i32 : i32, i32
  }
  func.func @transform_1(%arg0: i32, %arg1: i32) -> (i32, i32) {
    %c0_i32 = arith.constant 0 : i32
    %c0_i32_0 = arith.constant 0 : i32
    return %c0_i32, %arg1 : i32, i32
  }
  func.func @transform_2(%arg0: i32, %arg1: i32) -> (i32, i32) {
    %c0_i32 = arith.constant 0 : i32
    %c0_i32_0 = arith.constant 0 : i32
    return %c0_i32, %arg1 : i32, i32
  }
  func.func @transform_3(%arg0: i32, %arg1: i32) -> (i32, i32) {
    %c0_i32 = arith.constant 0 : i32
    return %arg0, %arg1 : i32, i32
  }
  func.func @transform_4(%arg0: i32, %arg1: i32) -> (i32, i32) {
    %c0_i32 = arith.constant 0 : i32
    return %arg0, %arg1 : i32, i32
  }
}

module attributes {stable_mosaic.version = 11 : i64} {
  func.func @_linear_kernel(%arg0: i32, %arg1: i32, %arg2: memref<16x32xbf16, #tpu.memory_space<vmem>>, %arg3: memref<32x32xbf16, #tpu.memory_space<vmem>>, %arg4: memref<1x32xf32, #tpu.memory_space<vmem>>, %arg5: memref<1x32xf32, #tpu.memory_space<vmem>>, %arg6: memref<1x32xf32, #tpu.memory_space<vmem>>, %arg7: memref<16x32xbf16, #tpu.memory_space<vmem>>) attributes {dimension_semantics = [#tpu.dimension_semantics<parallel>, #tpu.dimension_semantics<parallel>], iteration_bounds = array<i64: 1, 1>, scalar_prefetch = 0 : i64, scratch_operands = 0 : i64, tpu.core_type = #tpu.core_type<tc>, window_params = [{transform_indices = @transform_0, window_bounds = array<i64: 16, 32>}, {transform_indices = @transform_1, window_bounds = array<i64: 32, 32>}, {transform_indices = @transform_2, window_bounds = array<i64: 1, 32>}, {pipeline_mode = #tpu.pipeline_mode<synchronous>, transform_indices = @transform_3, window_bounds = array<i64: 1, 32>}, {pipeline_mode = #tpu.pipeline_mode<synchronous>, transform_indices = @transform_4, window_bounds = array<i64: 1, 32>}, {transform_indices = @transform_5, window_bounds = array<i64: 16, 32>}]} {
    %c0 = arith.constant 0 : index
    %c0_0 = arith.constant 0 : index
    %0 = vector.load %arg2[%c0, %c0_0] : memref<16x32xbf16, #tpu.memory_space<vmem>>, vector<16x32xbf16>
    %1 = arith.extf %0 : vector<16x32xbf16> to vector<16x32xf32>
    %cst = arith.constant dense<0.000000e+00> : vector<16xf32>
    %2 = vector.multi_reduction <add>, %1, %cst [1] : vector<16x32xf32> to vector<16xf32>
    %3 = vector.shape_cast %2 : vector<16xf32> to vector<16x1xf32>
    %cst_1 = arith.constant 3.200000e+01 : f32
    %4 = vector.broadcast %cst_1 : f32 to vector<16x1xf32>
    %5 = arith.divf %3, %4 : vector<16x1xf32>
    %6 = vector.broadcast %5 : vector<16x1xf32> to vector<16x32xf32>
    %7 = arith.subf %1, %6 : vector<16x32xf32>
    %8 = arith.mulf %7, %7 : vector<16x32xf32>
    %cst_2 = arith.constant dense<0.000000e+00> : vector<16xf32>
    %9 = vector.multi_reduction <add>, %8, %cst_2 [1] : vector<16x32xf32> to vector<16xf32>
    %10 = vector.shape_cast %9 : vector<16xf32> to vector<16x1xf32>
    %cst_3 = arith.constant 3.200000e+01 : f32
    %11 = vector.broadcast %cst_3 : f32 to vector<16x1xf32>
    %12 = arith.divf %10, %11 : vector<16x1xf32>
    %13 = vector.broadcast %5 : vector<16x1xf32> to vector<16x32xf32>
    %14 = arith.subf %1, %13 : vector<16x32xf32>
    %cst_4 = arith.constant 9.99999974E-6 : f32
    %15 = vector.broadcast %cst_4 : f32 to vector<16x1xf32>
    %16 = arith.addf %12, %15 : vector<16x1xf32>
    %17 = math.rsqrt %16 : vector<16x1xf32>
    %18 = vector.broadcast %17 : vector<16x1xf32> to vector<16x32xf32>
    %19 = arith.mulf %14, %18 : vector<16x32xf32>
    %c0_5 = arith.constant 0 : index
    %c0_6 = arith.constant 0 : index
    %20 = vector.load %arg5[%c0_5, %c0_6] : memref<1x32xf32, #tpu.memory_space<vmem>>, vector<1x32xf32>
    %21 = vector.broadcast %20 : vector<1x32xf32> to vector<16x32xf32>
    %22 = arith.mulf %19, %21 : vector<16x32xf32>
    %c0_7 = arith.constant 0 : index
    %c0_8 = arith.constant 0 : index
    %23 = vector.load %arg6[%c0_7, %c0_8] : memref<1x32xf32, #tpu.memory_space<vmem>>, vector<1x32xf32>
    %24 = vector.broadcast %23 : vector<1x32xf32> to vector<16x32xf32>
    %25 = arith.addf %22, %24 : vector<16x32xf32>
    %26 = arith.truncf %25 : vector<16x32xf32> to vector<16x32xbf16>
    %c0_9 = arith.constant 0 : index
    %c0_10 = arith.constant 0 : index
    %27 = vector.load %arg3[%c0_9, %c0_10] : memref<32x32xbf16, #tpu.memory_space<vmem>>, vector<32x32xbf16>
    %cst_11 = arith.constant dense<0.000000e+00> : vector<16x32xf32>
    %28 = tpu.matmul %26, %27, %cst_11 {dimension_numbers = #tpu.dot_dimension_numbers<[1], [0], [0], [1], [0, 0, 1, 1], [], []>} : vector<16x32xbf16>, vector<32x32xbf16>, vector<16x32xf32> -> vector<16x32xf32>
    %c0_12 = arith.constant 0 : index
    %c0_13 = arith.constant 0 : index
    %29 = vector.load %arg4[%c0_12, %c0_13] : memref<1x32xf32, #tpu.memory_space<vmem>>, vector<1x32xf32>
    %30 = vector.broadcast %29 : vector<1x32xf32> to vector<16x32xf32>
    %31 = arith.addf %28, %30 : vector<16x32xf32>
    %32 = arith.truncf %31 : vector<16x32xf32> to vector<16x32xbf16>
    %c0_14 = arith.constant 0 : index
    %c0_15 = arith.constant 0 : index
    %33 = vector.load %arg7[%c0_14, %c0_15] : memref<16x32xbf16, #tpu.memory_space<vmem>>, vector<16x32xbf16>
    tpu.vector_store %arg7[%c0_14, %c0_15], %32 {strides = array<i32>} : memref<16x32xbf16, #tpu.memory_space<vmem>>, vector<16x32xbf16>,
    return
  }
  func.func @transform_0(%arg0: i32, %arg1: i32) -> (i32, i32) {
    %c0_i32 = arith.constant 0 : i32
    %c0_i32_0 = arith.constant 0 : i32
    return %arg0, %c0_i32 : i32, i32
  }
  func.func @transform_1(%arg0: i32, %arg1: i32) -> (i32, i32) {
    %c0_i32 = arith.constant 0 : i32
    %c0_i32_0 = arith.constant 0 : i32
    return %c0_i32, %arg1 : i32, i32
  }
  func.func @transform_2(%arg0: i32, %arg1: i32) -> (i32, i32) {
    %c0_i32 = arith.constant 0 : i32
    %c0_i32_0 = arith.constant 0 : i32
    return %c0_i32, %arg1 : i32, i32
  }
  func.func @transform_3(%arg0: i32, %arg1: i32) -> (i32, i32) {
    %c0_i32 = arith.constant 0 : i32
    %c0_i32_0 = arith.constant 0 : i32
    %c0_i32_1 = arith.constant 0 : i32
    return %c0_i32, %c0_i32_0 : i32, i32
  }
  func.func @transform_4(%arg0: i32, %arg1: i32) -> (i32, i32) {
    %c0_i32 = arith.constant 0 : i32
    %c0_i32_0 = arith.constant 0 : i32
    %c0_i32_1 = arith.constant 0 : i32
    return %c0_i32, %c0_i32_0 : i32, i32
  }
  func.func @transform_5(%arg0: i32, %arg1: i32) -> (i32, i32) {
    %c0_i32 = arith.constant 0 : i32
    return %arg0, %arg1 : i32, i32
  }
}

module attributes {stable_mosaic.version = 11 : i64} {
  func.func @_flash_attn_kernel(%arg0: i32, %arg1: i32, %arg2: i32, %arg3: memref<1x8x32xbf16, #tpu.memory_space<vmem>>, %arg4: memref<1x8x32xbf16, #tpu.memory_space<vmem>>, %arg5: memref<1x8x32xbf16, #tpu.memory_space<vmem>>, %arg6: memref<1x8x32xbf16, #tpu.memory_space<vmem>>, %arg7: memref<8x32xbf16, #tpu.memory_space<vmem>>, %arg8: memref<8x4xf32, #tpu.memory_space<vmem>>, %arg9: memref<8x4xf32, #tpu.memory_space<vmem>>, %arg10: memref<8x32xf32, #tpu.memory_space<vmem>>) attributes {dimension_semantics = [#tpu.dimension_semantics<parallel>, #tpu.dimension_semantics<parallel>, #tpu.dimension_semantics<arbitrary>], iteration_bounds = array<i64: 2, 1, 1>, scalar_prefetch = 0 : i64, scratch_operands = 4 : i64, tpu.core_type = #tpu.core_type<tc>, window_params = [{transform_indices = @transform_0, window_bounds = array<i64: 1, 8, 32>}, {transform_indices = @transform_1, window_bounds = array<i64: 1, 8, 32>}, {transform_indices = @transform_2, window_bounds = array<i64: 1, 8, 32>}, {transform_indices = @transform_3, window_bounds = array<i64: 1, 8, 32>}]} {
    %c0_i32 = arith.constant 0 : i32
    %0 = arith.cmpi eq, %arg2, %c0_i32 : i32
    %1 = arith.extui %0 : i1 to i32
    %c0_i32_0 = arith.constant 0 : i32
    %2 = arith.cmpi ne, %1, %c0_i32_0 : i32
    scf.if %2 {
      %c0 = arith.constant 0 : index
      %c0_5 = arith.constant 0 : index
      %c0_6 = arith.constant 0 : index
      %12 = vector.load %arg3[%c0, %c0_5, %c0_6] : memref<1x8x32xbf16, #tpu.memory_space<vmem>>, vector<1x8x32xbf16>
      %13 = vector.shape_cast %12 : vector<1x8x32xbf16> to vector<8x32xbf16>
      %14 = arith.extf %13 : vector<8x32xbf16> to vector<8x32xf32>
      %cst = arith.constant 0.353553385 : f32
      %15 = vector.broadcast %cst : f32 to vector<8x32xf32>
      %16 = arith.mulf %14, %15 : vector<8x32xf32>
      %17 = arith.truncf %16 : vector<8x32xf32> to vector<8x32xbf16>
      %c0_7 = arith.constant 0 : index
      %c0_8 = arith.constant 0 : index
      %18 = vector.load %arg7[%c0_7, %c0_8] : memref<8x32xbf16, #tpu.memory_space<vmem>>, vector<8x32xbf16>
      tpu.vector_store %arg7[%c0_7, %c0_8], %17 {strides = array<i32>} : memref<8x32xbf16, #tpu.memory_space<vmem>>, vector<8x32xbf16>,
      %cst_9 = arith.constant 0xFF800000 : f32
      %19 = vector.broadcast %cst_9 : f32 to vector<8x4xf32>
      %c0_10 = arith.constant 0 : index
      %c0_11 = arith.constant 0 : index
      %20 = vector.load %arg8[%c0_10, %c0_11] : memref<8x4xf32, #tpu.memory_space<vmem>>, vector<8x4xf32>
      tpu.vector_store %arg8[%c0_10, %c0_11], %19 {strides = array<i32>} : memref<8x4xf32, #tpu.memory_space<vmem>>, vector<8x4xf32>,
      %cst_12 = arith.constant 0.000000e+00 : f32
      %21 = vector.broadcast %cst_12 : f32 to vector<8x4xf32>
      %c0_13 = arith.constant 0 : index
      %c0_14 = arith.constant 0 : index
      %22 = vector.load %arg9[%c0_13, %c0_14] : memref<8x4xf32, #tpu.memory_space<vmem>>, vector<8x4xf32>
      tpu.vector_store %arg9[%c0_13, %c0_14], %21 {strides = array<i32>} : memref<8x4xf32, #tpu.memory_space<vmem>>, vector<8x4xf32>,
      %cst_15 = arith.constant 0.000000e+00 : f32
      %23 = vector.broadcast %cst_15 : f32 to vector<8x32xf32>
      %c0_16 = arith.constant 0 : index
      %c0_17 = arith.constant 0 : index
      %24 = vector.load %arg10[%c0_16, %c0_17] : memref<8x32xf32, #tpu.memory_space<vmem>>, vector<8x32xf32>
      tpu.vector_store %arg10[%c0_16, %c0_17], %23 {strides = array<i32>} : memref<8x32xf32, #tpu.memory_space<vmem>>, vector<8x32xf32>,
    } else {
    }
    %c8_i32 = arith.constant 8 : i32
    %3 = arith.muli %arg2, %c8_i32 : i32
    %c8_i32_1 = arith.constant 8 : i32
    %4 = arith.muli %arg1, %c8_i32_1 : i32
    %c7_i32 = arith.constant 7 : i32
    %5 = arith.addi %4, %c7_i32 : i32
    %6 = arith.cmpi sle, %3, %5 : i32
    %7 = arith.extui %6 : i1 to i32
    %c0_i32_2 = arith.constant 0 : i32
    %8 = arith.cmpi ne, %7, %c0_i32_2 : i32
    scf.if %8 {
      %c0 = arith.constant 0 : index
      %c0_5 = arith.constant 0 : index
      %12 = vector.load %arg7[%c0, %c0_5] : memref<8x32xbf16, #tpu.memory_space<vmem>>, vector<8x32xbf16>
      %c0_6 = arith.constant 0 : index
      %c0_7 = arith.constant 0 : index
      %c0_8 = arith.constant 0 : index
      %13 = vector.load %arg4[%c0_6, %c0_7, %c0_8] : memref<1x8x32xbf16, #tpu.memory_space<vmem>>, vector<1x8x32xbf16>
      %14 = vector.shape_cast %13 : vector<1x8x32xbf16> to vector<8x32xbf16>
      %c0_9 = arith.constant 0 : index
      %c0_10 = arith.constant 0 : index
      %c0_11 = arith.constant 0 : index
      %15 = vector.load %arg5[%c0_9, %c0_10, %c0_11] : memref<1x8x32xbf16, #tpu.memory_space<vmem>>, vector<1x8x32xbf16>
      %16 = vector.shape_cast %15 : vector<1x8x32xbf16> to vector<8x32xbf16>
      %c8_i32_12 = arith.constant 8 : i32
      %17 = arith.muli %arg2, %c8_i32_12 : i32
      %18 = tpu.iota {dimensions = array<i32: 1>} : vector<8x8xi32>
      %19 = vector.broadcast %17 : i32 to vector<8x8xi32>
      %20 = arith.addi %19, %18 : vector<8x8xi32>
      %c8_i32_13 = arith.constant 8 : i32
      %21 = vector.broadcast %c8_i32_13 : i32 to vector<8x8xi32>
      %22 = arith.cmpi sge, %20, %21 : vector<8x8xi32>
      %c8_i32_14 = arith.constant 8 : i32
      %23 = arith.muli %arg1, %c8_i32_14 : i32
      %24 = tpu.iota {dimensions = array<i32: 0>} : vector<8x8xi32>
      %25 = vector.broadcast %23 : i32 to vector<8x8xi32>
      %26 = arith.addi %25, %24 : vector<8x8xi32>
      %27 = arith.cmpi sgt, %20, %26 : vector<8x8xi32>
      %28 = arith.ori %22, %27 : vector<8x8xi1>
      %29 = vector.extract_strided_slice %12 {offsets = [0, 0], sizes = [8, 8], strides = [1, 1]} : vector<8x32xbf16> to vector<8x8xbf16>
      %30 = vector.extract_strided_slice %14 {offsets = [0, 0], sizes = [8, 8], strides = [1, 1]} : vector<8x32xbf16> to vector<8x8xbf16>
      %cst = arith.constant dense<0.000000e+00> : vector<8x8xf32>
      %31 = tpu.matmul %29, %30, %cst {dimension_numbers = #tpu.dot_dimension_numbers<[1], [1], [0], [0], [0, 0, 1, 0], [], []>} : vector<8x8xbf16>, vector<8x8xbf16>, vector<8x8xf32> -> vector<8x8xf32>
      %cst_15 = arith.constant -1.000000e+30 : f32
      %32 = vector.broadcast %cst_15 : f32 to vector<8x8xf32>
      %33 = arith.select %28, %32, %31 : vector<8x8xi1>, vector<8x8xf32>
      %c0_16 = arith.constant 0 : index
      %c0_17 = arith.constant 0 : index
      %34 = vector.load %arg8[%c0_16, %c0_17] : memref<8x4xf32, #tpu.memory_space<vmem>>, vector<8x1xf32>
      %cst_18 = arith.constant dense<0xFF800000> : vector<8xf32>
      %35 = vector.multi_reduction <maximumf>, %33, %cst_18 [1] : vector<8x8xf32> to vector<8xf32>
      %36 = vector.shape_cast %35 : vector<8xf32> to vector<8x1xf32>
      %37 = arith.maximumf %34, %36 : vector<8x1xf32>
      %38 = arith.subf %34, %37 : vector<8x1xf32>
      %39 = math.exp %38 : vector<8x1xf32>
      %40 = vector.broadcast %37 : vector<8x1xf32> to vector<8x8xf32>
      %41 = arith.subf %33, %40 : vector<8x8xf32>
      %42 = math.exp %41 : vector<8x8xf32>
      %c0_19 = arith.constant 0 : index
      %c0_20 = arith.constant 0 : index
      %43 = vector.load %arg9[%c0_19, %c0_20] : memref<8x4xf32, #tpu.memory_space<vmem>>, vector<8x1xf32>
      %44 = arith.mulf %39, %43 : vector<8x1xf32>
      %cst_21 = arith.constant dense<0.000000e+00> : vector<8xf32>
      %45 = vector.multi_reduction <add>, %42, %cst_21 [1] : vector<8x8xf32> to vector<8xf32>
      %46 = vector.shape_cast %45 : vector<8xf32> to vector<8x1xf32>
      %47 = arith.addf %44, %46 : vector<8x1xf32>
      %c0_22 = arith.constant 0 : index
      %c0_23 = arith.constant 0 : index
      %48 = vector.load %arg9[%c0_22, %c0_23] : memref<8x4xf32, #tpu.memory_space<vmem>>, vector<8x1xf32>
      tpu.vector_store %arg9[%c0_22, %c0_23], %47 {strides = array<i32>} : memref<8x4xf32, #tpu.memory_space<vmem>>, vector<8x1xf32>,
      %c0_24 = arith.constant 0 : index
      %c0_25 = arith.constant 0 : index
      %49 = vector.load %arg10[%c0_24, %c0_25] : memref<8x32xf32, #tpu.memory_space<vmem>>, vector<8x8xf32>
      %50 = vector.broadcast %39 : vector<8x1xf32> to vector<8x8xf32>
      %51 = arith.mulf %50, %49 : vector<8x8xf32>
      %52 = arith.truncf %42 : vector<8x8xf32> to vector<8x8xbf16>
      %53 = vector.extract_strided_slice %16 {offsets = [0, 0], sizes = [8, 8], strides = [1, 1]} : vector<8x32xbf16> to vector<8x8xbf16>
      %cst_26 = arith.constant dense<0.000000e+00> : vector<8x8xf32>
      %54 = tpu.matmul %52, %53, %cst_26 {dimension_numbers = #tpu.dot_dimension_numbers<[1], [0], [0], [1], [0, 0, 1, 1], [], []>} : vector<8x8xbf16>, vector<8x8xbf16>, vector<8x8xf32> -> vector<8x8xf32>
      %55 = arith.addf %51, %54 : vector<8x8xf32>
      %c0_27 = arith.constant 0 : index
      %c0_28 = arith.constant 0 : index
      %56 = vector.load %arg10[%c0_27, %c0_28] : memref<8x32xf32, #tpu.memory_space<vmem>>, vector<8x8xf32>
      tpu.vector_store %arg10[%c0_27, %c0_28], %55 {strides = array<i32>} : memref<8x32xf32, #tpu.memory_space<vmem>>, vector<8x8xf32>,
      %c0_29 = arith.constant 0 : index
      %c0_30 = arith.constant 0 : index
      %57 = vector.load %arg8[%c0_29, %c0_30] : memref<8x4xf32, #tpu.memory_space<vmem>>, vector<8x1xf32>
      tpu.vector_store %arg8[%c0_29, %c0_30], %37 {strides = array<i32>} : memref<8x4xf32, #tpu.memory_space<vmem>>, vector<8x1xf32>,
      %58 = vector.extract_strided_slice %12 {offsets = [0, 8], sizes = [8, 8], strides = [1, 1]} : vector<8x32xbf16> to vector<8x8xbf16>
      %59 = vector.extract_strided_slice %14 {offsets = [0, 8], sizes = [8, 8], strides = [1, 1]} : vector<8x32xbf16> to vector<8x8xbf16>
      %cst_31 = arith.constant dense<0.000000e+00> : vector<8x8xf32>
      %60 = tpu.matmul %58, %59, %cst_31 {dimension_numbers = #tpu.dot_dimension_numbers<[1], [1], [0], [0], [0, 0, 1, 0], [], []>} : vector<8x8xbf16>, vector<8x8xbf16>, vector<8x8xf32> -> vector<8x8xf32>
      %cst_32 = arith.constant -1.000000e+30 : f32
      %61 = vector.broadcast %cst_32 : f32 to vector<8x8xf32>
      %62 = arith.select %28, %61, %60 : vector<8x8xi1>, vector<8x8xf32>
      %c0_33 = arith.constant 0 : index
      %c1 = arith.constant 1 : index
      %63 = vector.load %arg8[%c0_33, %c1] : memref<8x4xf32, #tpu.memory_space<vmem>>, vector<8x1xf32>
      %cst_34 = arith.constant dense<0xFF800000> : vector<8xf32>
      %64 = vector.multi_reduction <maximumf>, %62, %cst_34 [1] : vector<8x8xf32> to vector<8xf32>
      %65 = vector.shape_cast %64 : vector<8xf32> to vector<8x1xf32>
      %66 = arith.maximumf %63, %65 : vector<8x1xf32>
      %67 = arith.subf %63, %66 : vector<8x1xf32>
      %68 = math.exp %67 : vector<8x1xf32>
      %69 = vector.broadcast %66 : vector<8x1xf32> to vector<8x8xf32>
      %70 = arith.subf %62, %69 : vector<8x8xf32>
      %71 = math.exp %70 : vector<8x8xf32>
      %c0_35 = arith.constant 0 : index
      %c1_36 = arith.constant 1 : index
      %72 = vector.load %arg9[%c0_35, %c1_36] : memref<8x4xf32, #tpu.memory_space<vmem>>, vector<8x1xf32>
      %73 = arith.mulf %68, %72 : vector<8x1xf32>
      %cst_37 = arith.constant dense<0.000000e+00> : vector<8xf32>
      %74 = vector.multi_reduction <add>, %71, %cst_37 [1] : vector<8x8xf32> to vector<8xf32>
      %75 = vector.shape_cast %74 : vector<8xf32> to vector<8x1xf32>
      %76 = arith.addf %73, %75 : vector<8x1xf32>
      %c0_38 = arith.constant 0 : index
      %c1_39 = arith.constant 1 : index
      %77 = vector.load %arg9[%c0_38, %c1_39] : memref<8x4xf32, #tpu.memory_space<vmem>>, vector<8x1xf32>
      tpu.vector_store %arg9[%c0_38, %c1_39], %76 {strides = array<i32>} : memref<8x4xf32, #tpu.memory_space<vmem>>, vector<8x1xf32>,
      %c0_40 = arith.constant 0 : index
      %c8 = arith.constant 8 : index
      %78 = vector.load %arg10[%c0_40, %c8] : memref<8x32xf32, #tpu.memory_space<vmem>>, vector<8x8xf32>
      %79 = vector.broadcast %68 : vector<8x1xf32> to vector<8x8xf32>
      %80 = arith.mulf %79, %78 : vector<8x8xf32>
      %81 = arith.truncf %71 : vector<8x8xf32> to vector<8x8xbf16>
      %82 = vector.extract_strided_slice %16 {offsets = [0, 8], sizes = [8, 8], strides = [1, 1]} : vector<8x32xbf16> to vector<8x8xbf16>
      %cst_41 = arith.constant dense<0.000000e+00> : vector<8x8xf32>
      %83 = tpu.matmul %81, %82, %cst_41 {dimension_numbers = #tpu.dot_dimension_numbers<[1], [0], [0], [1], [0, 0, 1, 1], [], []>} : vector<8x8xbf16>, vector<8x8xbf16>, vector<8x8xf32> -> vector<8x8xf32>
      %84 = arith.addf %80, %83 : vector<8x8xf32>
      %c0_42 = arith.constant 0 : index
      %c8_43 = arith.constant 8 : index
      %85 = vector.load %arg10[%c0_42, %c8_43] : memref<8x32xf32, #tpu.memory_space<vmem>>, vector<8x8xf32>
      tpu.vector_store %arg10[%c0_42, %c8_43], %84 {strides = array<i32>} : memref<8x32xf32, #tpu.memory_space<vmem>>, vector<8x8xf32>,
      %c0_44 = arith.constant 0 : index
      %c1_45 = arith.constant 1 : index
      %86 = vector.load %arg8[%c0_44, %c1_45] : memref<8x4xf32, #tpu.memory_space<vmem>>, vector<8x1xf32>
      tpu.vector_store %arg8[%c0_44, %c1_45], %66 {strides = array<i32>} : memref<8x4xf32, #tpu.memory_space<vmem>>, vector<8x1xf32>,
      %87 = vector.extract_strided_slice %12 {offsets = [0, 16], sizes = [8, 8], strides = [1, 1]} : vector<8x32xbf16> to vector<8x8xbf16>
      %88 = vector.extract_strided_slice %14 {offsets = [0, 16], sizes = [8, 8], strides = [1, 1]} : vector<8x32xbf16> to vector<8x8xbf16>
      %cst_46 = arith.constant dense<0.000000e+00> : vector<8x8xf32>
      %89 = tpu.matmul %87, %88, %cst_46 {dimension_numbers = #tpu.dot_dimension_numbers<[1], [1], [0], [0], [0, 0, 1, 0], [], []>} : vector<8x8xbf16>, vector<8x8xbf16>, vector<8x8xf32> -> vector<8x8xf32>
      %cst_47 = arith.constant -1.000000e+30 : f32
      %90 = vector.broadcast %cst_47 : f32 to vector<8x8xf32>
      %91 = arith.select %28, %90, %89 : vector<8x8xi1>, vector<8x8xf32>
      %c0_48 = arith.constant 0 : index
      %c2 = arith.constant 2 : index
      %92 = vector.load %arg8[%c0_48, %c2] : memref<8x4xf32, #tpu.memory_space<vmem>>, vector<8x1xf32>
      %cst_49 = arith.constant dense<0xFF800000> : vector<8xf32>
      %93 = vector.multi_reduction <maximumf>, %91, %cst_49 [1] : vector<8x8xf32> to vector<8xf32>
      %94 = vector.shape_cast %93 : vector<8xf32> to vector<8x1xf32>
      %95 = arith.maximumf %92, %94 : vector<8x1xf32>
      %96 = arith.subf %92, %95 : vector<8x1xf32>
      %97 = math.exp %96 : vector<8x1xf32>
      %98 = vector.broadcast %95 : vector<8x1xf32> to vector<8x8xf32>
      %99 = arith.subf %91, %98 : vector<8x8xf32>
      %100 = math.exp %99 : vector<8x8xf32>
      %c0_50 = arith.constant 0 : index
      %c2_51 = arith.constant 2 : index
      %101 = vector.load %arg9[%c0_50, %c2_51] : memref<8x4xf32, #tpu.memory_space<vmem>>, vector<8x1xf32>
      %102 = arith.mulf %97, %101 : vector<8x1xf32>
      %cst_52 = arith.constant dense<0.000000e+00> : vector<8xf32>
      %103 = vector.multi_reduction <add>, %100, %cst_52 [1] : vector<8x8xf32> to vector<8xf32>
      %104 = vector.shape_cast %103 : vector<8xf32> to vector<8x1xf32>
      %105 = arith.addf %102, %104 : vector<8x1xf32>
      %c0_53 = arith.constant 0 : index
      %c2_54 = arith.constant 2 : index
      %106 = vector.load %arg9[%c0_53, %c2_54] : memref<8x4xf32, #tpu.memory_space<vmem>>, vector<8x1xf32>
      tpu.vector_store %arg9[%c0_53, %c2_54], %105 {strides = array<i32>} : memref<8x4xf32, #tpu.memory_space<vmem>>, vector<8x1xf32>,
      %c0_55 = arith.constant 0 : index
      %c16 = arith.constant 16 : index
      %107 = vector.load %arg10[%c0_55, %c16] : memref<8x32xf32, #tpu.memory_space<vmem>>, vector<8x8xf32>
      %108 = vector.broadcast %97 : vector<8x1xf32> to vector<8x8xf32>
      %109 = arith.mulf %108, %107 : vector<8x8xf32>
      %110 = arith.truncf %100 : vector<8x8xf32> to vector<8x8xbf16>
      %111 = vector.extract_strided_slice %16 {offsets = [0, 16], sizes = [8, 8], strides = [1, 1]} : vector<8x32xbf16> to vector<8x8xbf16>
      %cst_56 = arith.constant dense<0.000000e+00> : vector<8x8xf32>
      %112 = tpu.matmul %110, %111, %cst_56 {dimension_numbers = #tpu.dot_dimension_numbers<[1], [0], [0], [1], [0, 0, 1, 1], [], []>} : vector<8x8xbf16>, vector<8x8xbf16>, vector<8x8xf32> -> vector<8x8xf32>
      %113 = arith.addf %109, %112 : vector<8x8xf32>
      %c0_57 = arith.constant 0 : index
      %c16_58 = arith.constant 16 : index
      %114 = vector.load %arg10[%c0_57, %c16_58] : memref<8x32xf32, #tpu.memory_space<vmem>>, vector<8x8xf32>
      tpu.vector_store %arg10[%c0_57, %c16_58], %113 {strides = array<i32>} : memref<8x32xf32, #tpu.memory_space<vmem>>, vector<8x8xf32>,
      %c0_59 = arith.constant 0 : index
      %c2_60 = arith.constant 2 : index
      %115 = vector.load %arg8[%c0_59, %c2_60] : memref<8x4xf32, #tpu.memory_space<vmem>>, vector<8x1xf32>
      tpu.vector_store %arg8[%c0_59, %c2_60], %95 {strides = array<i32>} : memref<8x4xf32, #tpu.memory_space<vmem>>, vector<8x1xf32>,
      %116 = vector.extract_strided_slice %12 {offsets = [0, 24], sizes = [8, 8], strides = [1, 1]} : vector<8x32xbf16> to vector<8x8xbf16>
      %117 = vector.extract_strided_slice %14 {offsets = [0, 24], sizes = [8, 8], strides = [1, 1]} : vector<8x32xbf16> to vector<8x8xbf16>
      %cst_61 = arith.constant dense<0.000000e+00> : vector<8x8xf32>
      %118 = tpu.matmul %116, %117, %cst_61 {dimension_numbers = #tpu.dot_dimension_numbers<[1], [1], [0], [0], [0, 0, 1, 0], [], []>} : vector<8x8xbf16>, vector<8x8xbf16>, vector<8x8xf32> -> vector<8x8xf32>
      %cst_62 = arith.constant -1.000000e+30 : f32
      %119 = vector.broadcast %cst_62 : f32 to vector<8x8xf32>
      %120 = arith.select %28, %119, %118 : vector<8x8xi1>, vector<8x8xf32>
      %c0_63 = arith.constant 0 : index
      %c3 = arith.constant 3 : index
      %121 = vector.load %arg8[%c0_63, %c3] : memref<8x4xf32, #tpu.memory_space<vmem>>, vector<8x1xf32>
      %cst_64 = arith.constant dense<0xFF800000> : vector<8xf32>
      %122 = vector.multi_reduction <maximumf>, %120, %cst_64 [1] : vector<8x8xf32> to vector<8xf32>
      %123 = vector.shape_cast %122 : vector<8xf32> to vector<8x1xf32>
      %124 = arith.maximumf %121, %123 : vector<8x1xf32>
      %125 = arith.subf %121, %124 : vector<8x1xf32>
      %126 = math.exp %125 : vector<8x1xf32>
      %127 = vector.broadcast %124 : vector<8x1xf32> to vector<8x8xf32>
      %128 = arith.subf %120, %127 : vector<8x8xf32>
      %129 = math.exp %128 : vector<8x8xf32>
      %c0_65 = arith.constant 0 : index
      %c3_66 = arith.constant 3 : index
      %130 = vector.load %arg9[%c0_65, %c3_66] : memref<8x4xf32, #tpu.memory_space<vmem>>, vector<8x1xf32>
      %131 = arith.mulf %126, %130 : vector<8x1xf32>
      %cst_67 = arith.constant dense<0.000000e+00> : vector<8xf32>
      %132 = vector.multi_reduction <add>, %129, %cst_67 [1] : vector<8x8xf32> to vector<8xf32>
      %133 = vector.shape_cast %132 : vector<8xf32> to vector<8x1xf32>
      %134 = arith.addf %131, %133 : vector<8x1xf32>
      %c0_68 = arith.constant 0 : index
      %c3_69 = arith.constant 3 : index
      %135 = vector.load %arg9[%c0_68, %c3_69] : memref<8x4xf32, #tpu.memory_space<vmem>>, vector<8x1xf32>
      tpu.vector_store %arg9[%c0_68, %c3_69], %134 {strides = array<i32>} : memref<8x4xf32, #tpu.memory_space<vmem>>, vector<8x1xf32>,
      %c0_70 = arith.constant 0 : index
      %c24 = arith.constant 24 : index
      %136 = vector.load %arg10[%c0_70, %c24] : memref<8x32xf32, #tpu.memory_space<vmem>>, vector<8x8xf32>
      %137 = vector.broadcast %126 : vector<8x1xf32> to vector<8x8xf32>
      %138 = arith.mulf %137, %136 : vector<8x8xf32>
      %139 = arith.truncf %129 : vector<8x8xf32> to vector<8x8xbf16>
      %140 = vector.extract_strided_slice %16 {offsets = [0, 24], sizes = [8, 8], strides = [1, 1]} : vector<8x32xbf16> to vector<8x8xbf16>
      %cst_71 = arith.constant dense<0.000000e+00> : vector<8x8xf32>
      %141 = tpu.matmul %139, %140, %cst_71 {dimension_numbers = #tpu.dot_dimension_numbers<[1], [0], [0], [1], [0, 0, 1, 1], [], []>} : vector<8x8xbf16>, vector<8x8xbf16>, vector<8x8xf32> -> vector<8x8xf32>
      %142 = arith.addf %138, %141 : vector<8x8xf32>
      %c0_72 = arith.constant 0 : index
      %c24_73 = arith.constant 24 : index
      %143 = vector.load %arg10[%c0_72, %c24_73] : memref<8x32xf32, #tpu.memory_space<vmem>>, vector<8x8xf32>
      tpu.vector_store %arg10[%c0_72, %c24_73], %142 {strides = array<i32>} : memref<8x32xf32, #tpu.memory_space<vmem>>, vector<8x8xf32>,
      %c0_74 = arith.constant 0 : index
      %c3_75 = arith.constant 3 : index
      %144 = vector.load %arg8[%c0_74, %c3_75] : memref<8x4xf32, #tpu.memory_space<vmem>>, vector<8x1xf32>
      tpu.vector_store %arg8[%c0_74, %c3_75], %124 {strides = array<i32>} : memref<8x4xf32, #tpu.memory_space<vmem>>, vector<8x1xf32>,
    } else {
    }
    %c0_i32_3 = arith.constant 0 : i32
    %9 = arith.cmpi eq, %arg2, %c0_i32_3 : i32
    %10 = arith.extui %9 : i1 to i32
    %c0_i32_4 = arith.constant 0 : i32
    %11 = arith.cmpi ne, %10, %c0_i32_4 : i32
    scf.if %11 {
      %c0 = arith.constant 0 : index
      %c0_5 = arith.constant 0 : index
      %12 = vector.load %arg9[%c0, %c0_5] : memref<8x4xf32, #tpu.memory_space<vmem>>, vector<8x4xf32>
      %13 = tpu.reciprocal %12 {approx = true} : vector<8x4xf32> -> vector<8x4xf32>
      %c0_6 = arith.constant 0 : index
      %c0_7 = arith.constant 0 : index
      %14 = vector.load %arg10[%c0_6, %c0_7] : memref<8x32xf32, #tpu.memory_space<vmem>>, vector<8x32xf32>
      %15 = vector.extract_strided_slice %14 {offsets = [0, 0], sizes = [8, 8], strides = [1, 1]} : vector<8x32xf32> to vector<8x8xf32>
      %16 = vector.extract_strided_slice %13 {offsets = [0, 0], sizes = [8, 1], strides = [1, 1]} : vector<8x4xf32> to vector<8x1xf32>
      %17 = vector.broadcast %16 : vector<8x1xf32> to vector<8x8xf32>
      %18 = arith.mulf %15, %17 : vector<8x8xf32>
      %19 = vector.extract_strided_slice %14 {offsets = [0, 8], sizes = [8, 8], strides = [1, 1]} : vector<8x32xf32> to vector<8x8xf32>
      %20 = vector.extract_strided_slice %13 {offsets = [0, 1], sizes = [8, 1], strides = [1, 1]} : vector<8x4xf32> to vector<8x1xf32>
      %21 = vector.broadcast %20 : vector<8x1xf32> to vector<8x8xf32>
      %22 = arith.mulf %19, %21 : vector<8x8xf32>
      %23 = vector.extract_strided_slice %14 {offsets = [0, 16], sizes = [8, 8], strides = [1, 1]} : vector<8x32xf32> to vector<8x8xf32>
      %24 = vector.extract_strided_slice %13 {offsets = [0, 2], sizes = [8, 1], strides = [1, 1]} : vector<8x4xf32> to vector<8x1xf32>
      %25 = vector.broadcast %24 : vector<8x1xf32> to vector<8x8xf32>
      %26 = arith.mulf %23, %25 : vector<8x8xf32>
      %27 = vector.extract_strided_slice %14 {offsets = [0, 24], sizes = [8, 8], strides = [1, 1]} : vector<8x32xf32> to vector<8x8xf32>
      %28 = vector.extract_strided_slice %13 {offsets = [0, 3], sizes = [8, 1], strides = [1, 1]} : vector<8x4xf32> to vector<8x1xf32>
      %29 = vector.broadcast %28 : vector<8x1xf32> to vector<8x8xf32>
      %30 = arith.mulf %27, %29 : vector<8x8xf32>
      %31 = tpu.concatenate %18, %22, %26, %30 in 1 : vector<8x8xf32>, vector<8x8xf32>, vector<8x8xf32>, vector<8x8xf32> -> vector<8x32xf32>
      %32 = arith.truncf %31 : vector<8x32xf32> to vector<8x32xbf16>
      %c0_8 = arith.constant 0 : index
      %c0_9 = arith.constant 0 : index
      %c0_10 = arith.constant 0 : index
      %33 = vector.load %arg6[%c0_8, %c0_9, %c0_10] : memref<1x8x32xbf16, #tpu.memory_space<vmem>>, vector<1x8x32xbf16>
      %34 = vector.shape_cast %33 : vector<1x8x32xbf16> to vector<8x32xbf16>
      %35 = vector.shape_cast %32 : vector<8x32xbf16> to vector<1x8x32xbf16>
      tpu.vector_store %arg6[%c0_8, %c0_9, %c0_10], %35 {strides = array<i32>} : memref<1x8x32xbf16, #tpu.memory_space<vmem>>, vector<1x8x32xbf16>,
    } else {
    }
    return
  }
  func.func @transform_0(%arg0: i32, %arg1: i32, %arg2: i32) -> (i32, i32, i32) {
    %c0_i32 = arith.constant 0 : i32
    %c0_i32_0 = arith.constant 0 : i32
    return %arg0, %arg1, %c0_i32 : i32, i32, i32
  }
  func.func @transform_1(%arg0: i32, %arg1: i32, %arg2: i32) -> (i32, i32, i32) {
    %c0_i32 = arith.constant 0 : i32
    %c0_i32_0 = arith.constant 0 : i32
    return %arg0, %arg2, %c0_i32 : i32, i32, i32
  }
  func.func @transform_2(%arg0: i32, %arg1: i32, %arg2: i32) -> (i32, i32, i32) {
    %c0_i32 = arith.constant 0 : i32
    %c0_i32_0 = arith.constant 0 : i32
    return %arg0, %arg2, %c0_i32 : i32, i32, i32
  }
  func.func @transform_3(%arg0: i32, %arg1: i32, %arg2: i32) -> (i32, i32, i32) {
    %c0_i32 = arith.constant 0 : i32
    %c0_i32_0 = arith.constant 0 : i32
    return %arg0, %arg1, %c0_i32 : i32, i32, i32
  }
}

module attributes {stable_mosaic.version = 11 : i64} {
  func.func @_linear_kernel(%arg0: i32, %arg1: i32, %arg2: memref<32x32xf32, #tpu.memory_space<vmem>>, %arg3: memref<32x64xbf16, #tpu.memory_space<vmem>>, %arg4: memref<1x64xf32, #tpu.memory_space<vmem>>, %arg5: memref<32x64xbf16, #tpu.memory_space<vmem>>) attributes {dimension_semantics = [#tpu.dimension_semantics<parallel>, #tpu.dimension_semantics<parallel>], iteration_bounds = array<i64: 1, 1>, scalar_prefetch = 0 : i64, scratch_operands = 0 : i64, tpu.core_type = #tpu.core_type<tc>, window_params = [{transform_indices = @transform_0, window_bounds = array<i64: 32, 32>}, {transform_indices = @transform_1, window_bounds = array<i64: 32, 64>}, {transform_indices = @transform_2, window_bounds = array<i64: 1, 64>}, {transform_indices = @transform_3, window_bounds = array<i64: 32, 64>}]} {
    %c0 = arith.constant 0 : index
    %c0_0 = arith.constant 0 : index
    %0 = vector.load %arg2[%c0, %c0_0] : memref<32x32xf32, #tpu.memory_space<vmem>>, vector<32x32xf32>
    %1 = arith.truncf %0 : vector<32x32xf32> to vector<32x32xbf16>
    %c0_1 = arith.constant 0 : index
    %c0_2 = arith.constant 0 : index
    %2 = vector.load %arg3[%c0_1, %c0_2] : memref<32x64xbf16, #tpu.memory_space<vmem>>, vector<32x64xbf16>
    %cst = arith.constant dense<0.000000e+00> : vector<32x64xf32>
    %3 = tpu.matmul %1, %2, %cst {dimension_numbers = #tpu.dot_dimension_numbers<[1], [0], [0], [1], [0, 0, 1, 1], [], []>} : vector<32x32xbf16>, vector<32x64xbf16>, vector<32x64xf32> -> vector<32x64xf32>
    %c0_3 = arith.constant 0 : index
    %c0_4 = arith.constant 0 : index
    %4 = vector.load %arg4[%c0_3, %c0_4] : memref<1x64xf32, #tpu.memory_space<vmem>>, vector<1x64xf32>
    %5 = vector.broadcast %4 : vector<1x64xf32> to vector<32x64xf32>
    %6 = arith.addf %3, %5 : vector<32x64xf32>
    %7 = arith.truncf %6 : vector<32x64xf32> to vector<32x64xbf16>
    %c0_5 = arith.constant 0 : index
    %c0_6 = arith.constant 0 : index
    %8 = vector.load %arg5[%c0_5, %c0_6] : memref<32x64xbf16, #tpu.memory_space<vmem>>, vector<32x64xbf16>
    tpu.vector_store %arg5[%c0_5, %c0_6], %7 {strides = array<i32>} : memref<32x64xbf16, #tpu.memory_space<vmem>>, vector<32x64xbf16>,
    return
  }
  func.func @transform_0(%arg0: i32, %arg1: i32) -> (i32, i32) {
    %c0_i32 = arith.constant 0 : i32
    %c0_i32_0 = arith.constant 0 : i32
    return %arg0, %c0_i32 : i32, i32
  }
  func.func @transform_1(%arg0: i32, %arg1: i32) -> (i32, i32) {
    %c0_i32 = arith.constant 0 : i32
    %c0_i32_0 = arith.constant 0 : i32
    return %c0_i32, %arg1 : i32, i32
  }
  func.func @transform_2(%arg0: i32, %arg1: i32) -> (i32, i32) {
    %c0_i32 = arith.constant 0 : i32
    %c0_i32_0 = arith.constant 0 : i32
    return %c0_i32, %arg1 : i32, i32
  }
  func.func @transform_3(%arg0: i32, %arg1: i32) -> (i32, i32) {
    %c0_i32 = arith.constant 0 : i32
    return %arg0, %arg1 : i32, i32
  }
}

module attributes {stable_mosaic.version = 11 : i64} {
  func.func @_linear_kernel(%arg0: i32, %arg1: i32, %arg2: memref<16x32xbf16, #tpu.memory_space<vmem>>, %arg3: memref<32x32xbf16, #tpu.memory_space<vmem>>, %arg4: memref<1x32xf32, #tpu.memory_space<vmem>>, %arg5: memref<16x32xbf16, #tpu.memory_space<vmem>>, %arg6: memref<16x32xbf16, #tpu.memory_space<vmem>>) attributes {dimension_semantics = [#tpu.dimension_semantics<parallel>, #tpu.dimension_semantics<parallel>], iteration_bounds = array<i64: 1, 1>, scalar_prefetch = 0 : i64, scratch_operands = 0 : i64, tpu.core_type = #tpu.core_type<tc>, window_params = [{transform_indices = @transform_0, window_bounds = array<i64: 16, 32>}, {transform_indices = @transform_1, window_bounds = array<i64: 32, 32>}, {transform_indices = @transform_2, window_bounds = array<i64: 1, 32>}, {transform_indices = @transform_3, window_bounds = array<i64: 16, 32>}, {transform_indices = @transform_4, window_bounds = array<i64: 16, 32>}]} {
    %c0 = arith.constant 0 : index
    %c0_0 = arith.constant 0 : index
    %0 = vector.load %arg2[%c0, %c0_0] : memref<16x32xbf16, #tpu.memory_space<vmem>>, vector<16x32xbf16>
    %c0_1 = arith.constant 0 : index
    %c0_2 = arith.constant 0 : index
    %1 = vector.load %arg3[%c0_1, %c0_2] : memref<32x32xbf16, #tpu.memory_space<vmem>>, vector<32x32xbf16>
    %cst = arith.constant dense<0.000000e+00> : vector<16x32xf32>
    %2 = tpu.matmul %0, %1, %cst {dimension_numbers = #tpu.dot_dimension_numbers<[1], [0], [0], [1], [0, 0, 1, 1], [], []>} : vector<16x32xbf16>, vector<32x32xbf16>, vector<16x32xf32> -> vector<16x32xf32>
    %c0_3 = arith.constant 0 : index
    %c0_4 = arith.constant 0 : index
    %3 = vector.load %arg4[%c0_3, %c0_4] : memref<1x32xf32, #tpu.memory_space<vmem>>, vector<1x32xf32>
    %4 = vector.broadcast %3 : vector<1x32xf32> to vector<16x32xf32>
    %5 = arith.addf %2, %4 : vector<16x32xf32>
    %c0_5 = arith.constant 0 : index
    %c0_6 = arith.constant 0 : index
    %6 = vector.load %arg5[%c0_5, %c0_6] : memref<16x32xbf16, #tpu.memory_space<vmem>>, vector<16x32xbf16>
    %7 = arith.extf %6 : vector<16x32xbf16> to vector<16x32xf32>
    %8 = arith.addf %5, %7 : vector<16x32xf32>
    %9 = arith.truncf %8 : vector<16x32xf32> to vector<16x32xbf16>
    %c0_7 = arith.constant 0 : index
    %c0_8 = arith.constant 0 : index
    %10 = vector.load %arg6[%c0_7, %c0_8] : memref<16x32xbf16, #tpu.memory_space<vmem>>, vector<16x32xbf16>
    tpu.vector_store %arg6[%c0_7, %c0_8], %9 {strides = array<i32>} : memref<16x32xbf16, #tpu.memory_space<vmem>>, vector<16x32xbf16>,
    return
  }
  func.func @transform_0(%arg0: i32, %arg1: i32) -> (i32, i32) {
    %c0_i32 = arith.constant 0 : i32
    %c0_i32_0 = arith.constant 0 : i32
    return %arg0, %c0_i32 : i32, i32
  }
  func.func @transform_1(%arg0: i32, %arg1: i32) -> (i32, i32) {
    %c0_i32 = arith.constant 0 : i32
    %c0_i32_0 = arith.constant 0 : i32
    return %c0_i32, %arg1 : i32, i32
  }
  func.func @transform_2(%arg0: i32, %arg1: i32) -> (i32, i32) {
    %c0_i32 = arith.constant 0 : i32
    %c0_i32_0 = arith.constant 0 : i32
    return %c0_i32, %arg1 : i32, i32
  }
  func.func @transform_3(%arg0: i32, %arg1: i32) -> (i32, i32) {
    %c0_i32 = arith.constant 0 : i32
    return %arg0, %arg1 : i32, i32
  }
  func.func @transform_4(%arg0: i32, %arg1: i32) -> (i32, i32) {
    %c0_i32 = arith.constant 0 : i32
    return %arg0, %arg1 : i32, i32
  }
}

module attributes {stable_mosaic.version = 11 : i64} {
  func.func @_flash_attn_kernel(%arg0: i32, %arg1: i32, %arg2: i32, %arg3: memref<1x8x32xbf16, #tpu.memory_space<vmem>>, %arg4: memref<1x16x32xbf16, #tpu.memory_space<vmem>>, %arg5: memref<1x16x32xbf16, #tpu.memory_space<vmem>>, %arg6: memref<1x8x32xbf16, #tpu.memory_space<vmem>>, %arg7: memref<8x32xbf16, #tpu.memory_space<vmem>>, %arg8: memref<8x4xf32, #tpu.memory_space<vmem>>, %arg9: memref<8x4xf32, #tpu.memory_space<vmem>>, %arg10: memref<8x32xf32, #tpu.memory_space<vmem>>) attributes {dimension_semantics = [#tpu.dimension_semantics<parallel>, #tpu.dimension_semantics<parallel>, #tpu.dimension_semantics<arbitrary>], iteration_bounds = array<i64: 2, 1, 1>, scalar_prefetch = 0 : i64, scratch_operands = 4 : i64, tpu.core_type = #tpu.core_type<tc>, window_params = [{transform_indices = @transform_0, window_bounds = array<i64: 1, 8, 32>}, {transform_indices = @transform_1, window_bounds = array<i64: 1, 16, 32>}, {transform_indices = @transform_2, window_bounds = array<i64: 1, 16, 32>}, {transform_indices = @transform_3, window_bounds = array<i64: 1, 8, 32>}]} {
    %c0_i32 = arith.constant 0 : i32
    %0 = arith.cmpi eq, %arg2, %c0_i32 : i32
    %1 = arith.extui %0 : i1 to i32
    %c0_i32_0 = arith.constant 0 : i32
    %2 = arith.cmpi ne, %1, %c0_i32_0 : i32
    scf.if %2 {
      %c0_72 = arith.constant 0 : index
      %c0_73 = arith.constant 0 : index
      %c0_74 = arith.constant 0 : index
      %133 = vector.load %arg3[%c0_72, %c0_73, %c0_74] : memref<1x8x32xbf16, #tpu.memory_space<vmem>>, vector<1x8x32xbf16>
      %134 = vector.shape_cast %133 : vector<1x8x32xbf16> to vector<8x32xbf16>
      %135 = arith.extf %134 : vector<8x32xbf16> to vector<8x32xf32>
      %cst_75 = arith.constant 0.353553385 : f32
      %136 = vector.broadcast %cst_75 : f32 to vector<8x32xf32>
      %137 = arith.mulf %135, %136 : vector<8x32xf32>
      %138 = arith.truncf %137 : vector<8x32xf32> to vector<8x32xbf16>
      %c0_76 = arith.constant 0 : index
      %c0_77 = arith.constant 0 : index
      %139 = vector.load %arg7[%c0_76, %c0_77] : memref<8x32xbf16, #tpu.memory_space<vmem>>, vector<8x32xbf16>
      tpu.vector_store %arg7[%c0_76, %c0_77], %138 {strides = array<i32>} : memref<8x32xbf16, #tpu.memory_space<vmem>>, vector<8x32xbf16>,
      %cst_78 = arith.constant 0xFF800000 : f32
      %140 = vector.broadcast %cst_78 : f32 to vector<8x4xf32>
      %c0_79 = arith.constant 0 : index
      %c0_80 = arith.constant 0 : index
      %141 = vector.load %arg8[%c0_79, %c0_80] : memref<8x4xf32, #tpu.memory_space<vmem>>, vector<8x4xf32>
      tpu.vector_store %arg8[%c0_79, %c0_80], %140 {strides = array<i32>} : memref<8x4xf32, #tpu.memory_space<vmem>>, vector<8x4xf32>,
      %cst_81 = arith.constant 0.000000e+00 : f32
      %142 = vector.broadcast %cst_81 : f32 to vector<8x4xf32>
      %c0_82 = arith.constant 0 : index
      %c0_83 = arith.constant 0 : index
      %143 = vector.load %arg9[%c0_82, %c0_83] : memref<8x4xf32, #tpu.memory_space<vmem>>, vector<8x4xf32>
      tpu.vector_store %arg9[%c0_82, %c0_83], %142 {strides = array<i32>} : memref<8x4xf32, #tpu.memory_space<vmem>>, vector<8x4xf32>,
      %cst_84 = arith.constant 0.000000e+00 : f32
      %144 = vector.broadcast %cst_84 : f32 to vector<8x32xf32>
      %c0_85 = arith.constant 0 : index
      %c0_86 = arith.constant 0 : index
      %145 = vector.load %arg10[%c0_85, %c0_86] : memref<8x32xf32, #tpu.memory_space<vmem>>, vector<8x32xf32>
      tpu.vector_store %arg10[%c0_85, %c0_86], %144 {strides = array<i32>} : memref<8x32xf32, #tpu.memory_space<vmem>>, vector<8x32xf32>,
    } else {
    }
    %c0 = arith.constant 0 : index
    %c0_1 = arith.constant 0 : index
    %3 = vector.load %arg7[%c0, %c0_1] : memref<8x32xbf16, #tpu.memory_space<vmem>>, vector<8x32xbf16>
    %c0_2 = arith.constant 0 : index
    %c0_3 = arith.constant 0 : index
    %c0_4 = arith.constant 0 : index
    %4 = vector.load %arg4[%c0_2, %c0_3, %c0_4] : memref<1x16x32xbf16, #tpu.memory_space<vmem>>, vector<1x16x32xbf16>
    %5 = vector.shape_cast %4 : vector<1x16x32xbf16> to vector<16x32xbf16>
    %c0_5 = arith.constant 0 : index
    %c0_6 = arith.constant 0 : index
    %c0_7 = arith.constant 0 : index
    %6 = vector.load %arg5[%c0_5, %c0_6, %c0_7] : memref<1x16x32xbf16, #tpu.memory_space<vmem>>, vector<1x16x32xbf16>
    %7 = vector.shape_cast %6 : vector<1x16x32xbf16> to vector<16x32xbf16>
    %c16_i32 = arith.constant 16 : i32
    %8 = arith.muli %arg2, %c16_i32 : i32
    %9 = tpu.iota {dimensions = array<i32: 1>} : vector<8x16xi32>
    %10 = vector.broadcast %8 : i32 to vector<8x16xi32>
    %11 = arith.addi %10, %9 : vector<8x16xi32>
    %c16_i32_8 = arith.constant 16 : i32
    %12 = vector.broadcast %c16_i32_8 : i32 to vector<8x16xi32>
    %13 = arith.cmpi sge, %11, %12 : vector<8x16xi32>
    %14 = vector.extract_strided_slice %3 {offsets = [0, 0], sizes = [8, 8], strides = [1, 1]} : vector<8x32xbf16> to vector<8x8xbf16>
    %15 = vector.extract_strided_slice %5 {offsets = [0, 0], sizes = [16, 8], strides = [1, 1]} : vector<16x32xbf16> to vector<16x8xbf16>
    %cst = arith.constant dense<0.000000e+00> : vector<8x16xf32>
    %16 = tpu.matmul %14, %15, %cst {dimension_numbers = #tpu.dot_dimension_numbers<[1], [1], [0], [0], [0, 0, 1, 0], [], []>} : vector<8x8xbf16>, vector<16x8xbf16>, vector<8x16xf32> -> vector<8x16xf32>
    %cst_9 = arith.constant -1.000000e+30 : f32
    %17 = vector.broadcast %cst_9 : f32 to vector<8x16xf32>
    %18 = arith.select %13, %17, %16 : vector<8x16xi1>, vector<8x16xf32>
    %c0_10 = arith.constant 0 : index
    %c0_11 = arith.constant 0 : index
    %19 = vector.load %arg8[%c0_10, %c0_11] : memref<8x4xf32, #tpu.memory_space<vmem>>, vector<8x1xf32>
    %cst_12 = arith.constant dense<0xFF800000> : vector<8xf32>
    %20 = vector.multi_reduction <maximumf>, %18, %cst_12 [1] : vector<8x16xf32> to vector<8xf32>
    %21 = vector.shape_cast %20 : vector<8xf32> to vector<8x1xf32>
    %22 = arith.maximumf %19, %21 : vector<8x1xf32>
    %23 = arith.subf %19, %22 : vector<8x1xf32>
    %24 = math.exp %23 : vector<8x1xf32>
    %25 = vector.broadcast %22 : vector<8x1xf32> to vector<8x16xf32>
    %26 = arith.subf %18, %25 : vector<8x16xf32>
    %27 = math.exp %26 : vector<8x16xf32>
    %c0_13 = arith.constant 0 : index
    %c0_14 = arith.constant 0 : index
    %28 = vector.load %arg9[%c0_13, %c0_14] : memref<8x4xf32, #tpu.memory_space<vmem>>, vector<8x1xf32>
    %29 = arith.mulf %24, %28 : vector<8x1xf32>
    %cst_15 = arith.constant dense<0.000000e+00> : vector<8xf32>
    %30 = vector.multi_reduction <add>, %27, %cst_15 [1] : vector<8x16xf32> to vector<8xf32>
    %31 = vector.shape_cast %30 : vector<8xf32> to vector<8x1xf32>
    %32 = arith.addf %29, %31 : vector<8x1xf32>
    %c0_16 = arith.constant 0 : index
    %c0_17 = arith.constant 0 : index
    %33 = vector.load %arg9[%c0_16, %c0_17] : memref<8x4xf32, #tpu.memory_space<vmem>>, vector<8x1xf32>
    tpu.vector_store %arg9[%c0_16, %c0_17], %32 {strides = array<i32>} : memref<8x4xf32, #tpu.memory_space<vmem>>, vector<8x1xf32>,
    %c0_18 = arith.constant 0 : index
    %c0_19 = arith.constant 0 : index
    %34 = vector.load %arg10[%c0_18, %c0_19] : memref<8x32xf32, #tpu.memory_space<vmem>>, vector<8x8xf32>
    %35 = vector.broadcast %24 : vector<8x1xf32> to vector<8x8xf32>
    %36 = arith.mulf %35, %34 : vector<8x8xf32>
    %37 = arith.truncf %27 : vector<8x16xf32> to vector<8x16xbf16>
    %38 = vector.extract_strided_slice %7 {offsets = [0, 0], sizes = [16, 8], strides = [1, 1]} : vector<16x32xbf16> to vector<16x8xbf16>
    %cst_20 = arith.constant dense<0.000000e+00> : vector<8x8xf32>
    %39 = tpu.matmul %37, %38, %cst_20 {dimension_numbers = #tpu.dot_dimension_numbers<[1], [0], [0], [1], [0, 0, 1, 1], [], []>} : vector<8x16xbf16>, vector<16x8xbf16>, vector<8x8xf32> -> vector<8x8xf32>
    %40 = arith.addf %36, %39 : vector<8x8xf32>
    %c0_21 = arith.constant 0 : index
    %c0_22 = arith.constant 0 : index
    %41 = vector.load %arg10[%c0_21, %c0_22] : memref<8x32xf32, #tpu.memory_space<vmem>>, vector<8x8xf32>
    tpu.vector_store %arg10[%c0_21, %c0_22], %40 {strides = array<i32>} : memref<8x32xf32, #tpu.memory_space<vmem>>, vector<8x8xf32>,
    %c0_23 = arith.constant 0 : index
    %c0_24 = arith.constant 0 : index
    %42 = vector.load %arg8[%c0_23, %c0_24] : memref<8x4xf32, #tpu.memory_space<vmem>>, vector<8x1xf32>
    tpu.vector_store %arg8[%c0_23, %c0_24], %22 {strides = array<i32>} : memref<8x4xf32, #tpu.memory_space<vmem>>, vector<8x1xf32>,
    %43 = vector.extract_strided_slice %3 {offsets = [0, 8], sizes = [8, 8], strides = [1, 1]} : vector<8x32xbf16> to vector<8x8xbf16>
    %44 = vector.extract_strided_slice %5 {offsets = [0, 8], sizes = [16, 8], strides = [1, 1]} : vector<16x32xbf16> to vector<16x8xbf16>
    %cst_25 = arith.constant dense<0.000000e+00> : vector<8x16xf32>
    %45 = tpu.matmul %43, %44, %cst_25 {dimension_numbers = #tpu.dot_dimension_numbers<[1], [1], [0], [0], [0, 0, 1, 0], [], []>} : vector<8x8xbf16>, vector<16x8xbf16>, vector<8x16xf32> -> vector<8x16xf32>
    %cst_26 = arith.constant -1.000000e+30 : f32
    %46 = vector.broadcast %cst_26 : f32 to vector<8x16xf32>
    %47 = arith.select %13, %46, %45 : vector<8x16xi1>, vector<8x16xf32>
    %c0_27 = arith.constant 0 : index
    %c1 = arith.constant 1 : index
    %48 = vector.load %arg8[%c0_27, %c1] : memref<8x4xf32, #tpu.memory_space<vmem>>, vector<8x1xf32>
    %cst_28 = arith.constant dense<0xFF800000> : vector<8xf32>
    %49 = vector.multi_reduction <maximumf>, %47, %cst_28 [1] : vector<8x16xf32> to vector<8xf32>
    %50 = vector.shape_cast %49 : vector<8xf32> to vector<8x1xf32>
    %51 = arith.maximumf %48, %50 : vector<8x1xf32>
    %52 = arith.subf %48, %51 : vector<8x1xf32>
    %53 = math.exp %52 : vector<8x1xf32>
    %54 = vector.broadcast %51 : vector<8x1xf32> to vector<8x16xf32>
    %55 = arith.subf %47, %54 : vector<8x16xf32>
    %56 = math.exp %55 : vector<8x16xf32>
    %c0_29 = arith.constant 0 : index
    %c1_30 = arith.constant 1 : index
    %57 = vector.load %arg9[%c0_29, %c1_30] : memref<8x4xf32, #tpu.memory_space<vmem>>, vector<8x1xf32>
    %58 = arith.mulf %53, %57 : vector<8x1xf32>
    %cst_31 = arith.constant dense<0.000000e+00> : vector<8xf32>
    %59 = vector.multi_reduction <add>, %56, %cst_31 [1] : vector<8x16xf32> to vector<8xf32>
    %60 = vector.shape_cast %59 : vector<8xf32> to vector<8x1xf32>
    %61 = arith.addf %58, %60 : vector<8x1xf32>
    %c0_32 = arith.constant 0 : index
    %c1_33 = arith.constant 1 : index
    %62 = vector.load %arg9[%c0_32, %c1_33] : memref<8x4xf32, #tpu.memory_space<vmem>>, vector<8x1xf32>
    tpu.vector_store %arg9[%c0_32, %c1_33], %61 {strides = array<i32>} : memref<8x4xf32, #tpu.memory_space<vmem>>, vector<8x1xf32>,
    %c0_34 = arith.constant 0 : index
    %c8 = arith.constant 8 : index
    %63 = vector.load %arg10[%c0_34, %c8] : memref<8x32xf32, #tpu.memory_space<vmem>>, vector<8x8xf32>
    %64 = vector.broadcast %53 : vector<8x1xf32> to vector<8x8xf32>
    %65 = arith.mulf %64, %63 : vector<8x8xf32>
    %66 = arith.truncf %56 : vector<8x16xf32> to vector<8x16xbf16>
    %67 = vector.extract_strided_slice %7 {offsets = [0, 8], sizes = [16, 8], strides = [1, 1]} : vector<16x32xbf16> to vector<16x8xbf16>
    %cst_35 = arith.constant dense<0.000000e+00> : vector<8x8xf32>
    %68 = tpu.matmul %66, %67, %cst_35 {dimension_numbers = #tpu.dot_dimension_numbers<[1], [0], [0], [1], [0, 0, 1, 1], [], []>} : vector<8x16xbf16>, vector<16x8xbf16>, vector<8x8xf32> -> vector<8x8xf32>
    %69 = arith.addf %65, %68 : vector<8x8xf32>
    %c0_36 = arith.constant 0 : index
    %c8_37 = arith.constant 8 : index
    %70 = vector.load %arg10[%c0_36, %c8_37] : memref<8x32xf32, #tpu.memory_space<vmem>>, vector<8x8xf32>
    tpu.vector_store %arg10[%c0_36, %c8_37], %69 {strides = array<i32>} : memref<8x32xf32, #tpu.memory_space<vmem>>, vector<8x8xf32>,
    %c0_38 = arith.constant 0 : index
    %c1_39 = arith.constant 1 : index
    %71 = vector.load %arg8[%c0_38, %c1_39] : memref<8x4xf32, #tpu.memory_space<vmem>>, vector<8x1xf32>
    tpu.vector_store %arg8[%c0_38, %c1_39], %51 {strides = array<i32>} : memref<8x4xf32, #tpu.memory_space<vmem>>, vector<8x1xf32>,
    %72 = vector.extract_strided_slice %3 {offsets = [0, 16], sizes = [8, 8], strides = [1, 1]} : vector<8x32xbf16> to vector<8x8xbf16>
    %73 = vector.extract_strided_slice %5 {offsets = [0, 16], sizes = [16, 8], strides = [1, 1]} : vector<16x32xbf16> to vector<16x8xbf16>
    %cst_40 = arith.constant dense<0.000000e+00> : vector<8x16xf32>
    %74 = tpu.matmul %72, %73, %cst_40 {dimension_numbers = #tpu.dot_dimension_numbers<[1], [1], [0], [0], [0, 0, 1, 0], [], []>} : vector<8x8xbf16>, vector<16x8xbf16>, vector<8x16xf32> -> vector<8x16xf32>
    %cst_41 = arith.constant -1.000000e+30 : f32
    %75 = vector.broadcast %cst_41 : f32 to vector<8x16xf32>
    %76 = arith.select %13, %75, %74 : vector<8x16xi1>, vector<8x16xf32>
    %c0_42 = arith.constant 0 : index
    %c2 = arith.constant 2 : index
    %77 = vector.load %arg8[%c0_42, %c2] : memref<8x4xf32, #tpu.memory_space<vmem>>, vector<8x1xf32>
    %cst_43 = arith.constant dense<0xFF800000> : vector<8xf32>
    %78 = vector.multi_reduction <maximumf>, %76, %cst_43 [1] : vector<8x16xf32> to vector<8xf32>
    %79 = vector.shape_cast %78 : vector<8xf32> to vector<8x1xf32>
    %80 = arith.maximumf %77, %79 : vector<8x1xf32>
    %81 = arith.subf %77, %80 : vector<8x1xf32>
    %82 = math.exp %81 : vector<8x1xf32>
    %83 = vector.broadcast %80 : vector<8x1xf32> to vector<8x16xf32>
    %84 = arith.subf %76, %83 : vector<8x16xf32>
    %85 = math.exp %84 : vector<8x16xf32>
    %c0_44 = arith.constant 0 : index
    %c2_45 = arith.constant 2 : index
    %86 = vector.load %arg9[%c0_44, %c2_45] : memref<8x4xf32, #tpu.memory_space<vmem>>, vector<8x1xf32>
    %87 = arith.mulf %82, %86 : vector<8x1xf32>
    %cst_46 = arith.constant dense<0.000000e+00> : vector<8xf32>
    %88 = vector.multi_reduction <add>, %85, %cst_46 [1] : vector<8x16xf32> to vector<8xf32>
    %89 = vector.shape_cast %88 : vector<8xf32> to vector<8x1xf32>
    %90 = arith.addf %87, %89 : vector<8x1xf32>
    %c0_47 = arith.constant 0 : index
    %c2_48 = arith.constant 2 : index
    %91 = vector.load %arg9[%c0_47, %c2_48] : memref<8x4xf32, #tpu.memory_space<vmem>>, vector<8x1xf32>
    tpu.vector_store %arg9[%c0_47, %c2_48], %90 {strides = array<i32>} : memref<8x4xf32, #tpu.memory_space<vmem>>, vector<8x1xf32>,
    %c0_49 = arith.constant 0 : index
    %c16 = arith.constant 16 : index
    %92 = vector.load %arg10[%c0_49, %c16] : memref<8x32xf32, #tpu.memory_space<vmem>>, vector<8x8xf32>
    %93 = vector.broadcast %82 : vector<8x1xf32> to vector<8x8xf32>
    %94 = arith.mulf %93, %92 : vector<8x8xf32>
    %95 = arith.truncf %85 : vector<8x16xf32> to vector<8x16xbf16>
    %96 = vector.extract_strided_slice %7 {offsets = [0, 16], sizes = [16, 8], strides = [1, 1]} : vector<16x32xbf16> to vector<16x8xbf16>
    %cst_50 = arith.constant dense<0.000000e+00> : vector<8x8xf32>
    %97 = tpu.matmul %95, %96, %cst_50 {dimension_numbers = #tpu.dot_dimension_numbers<[1], [0], [0], [1], [0, 0, 1, 1], [], []>} : vector<8x16xbf16>, vector<16x8xbf16>, vector<8x8xf32> -> vector<8x8xf32>
    %98 = arith.addf %94, %97 : vector<8x8xf32>
    %c0_51 = arith.constant 0 : index
    %c16_52 = arith.constant 16 : index
    %99 = vector.load %arg10[%c0_51, %c16_52] : memref<8x32xf32, #tpu.memory_space<vmem>>, vector<8x8xf32>
    tpu.vector_store %arg10[%c0_51, %c16_52], %98 {strides = array<i32>} : memref<8x32xf32, #tpu.memory_space<vmem>>, vector<8x8xf32>,
    %c0_53 = arith.constant 0 : index
    %c2_54 = arith.constant 2 : index
    %100 = vector.load %arg8[%c0_53, %c2_54] : memref<8x4xf32, #tpu.memory_space<vmem>>, vector<8x1xf32>
    tpu.vector_store %arg8[%c0_53, %c2_54], %80 {strides = array<i32>} : memref<8x4xf32, #tpu.memory_space<vmem>>, vector<8x1xf32>,
    %101 = vector.extract_strided_slice %3 {offsets = [0, 24], sizes = [8, 8], strides = [1, 1]} : vector<8x32xbf16> to vector<8x8xbf16>
    %102 = vector.extract_strided_slice %5 {offsets = [0, 24], sizes = [16, 8], strides = [1, 1]} : vector<16x32xbf16> to vector<16x8xbf16>
    %cst_55 = arith.constant dense<0.000000e+00> : vector<8x16xf32>
    %103 = tpu.matmul %101, %102, %cst_55 {dimension_numbers = #tpu.dot_dimension_numbers<[1], [1], [0], [0], [0, 0, 1, 0], [], []>} : vector<8x8xbf16>, vector<16x8xbf16>, vector<8x16xf32> -> vector<8x16xf32>
    %cst_56 = arith.constant -1.000000e+30 : f32
    %104 = vector.broadcast %cst_56 : f32 to vector<8x16xf32>
    %105 = arith.select %13, %104, %103 : vector<8x16xi1>, vector<8x16xf32>
    %c0_57 = arith.constant 0 : index
    %c3 = arith.constant 3 : index
    %106 = vector.load %arg8[%c0_57, %c3] : memref<8x4xf32, #tpu.memory_space<vmem>>, vector<8x1xf32>
    %cst_58 = arith.constant dense<0xFF800000> : vector<8xf32>
    %107 = vector.multi_reduction <maximumf>, %105, %cst_58 [1] : vector<8x16xf32> to vector<8xf32>
    %108 = vector.shape_cast %107 : vector<8xf32> to vector<8x1xf32>
    %109 = arith.maximumf %106, %108 : vector<8x1xf32>
    %110 = arith.subf %106, %109 : vector<8x1xf32>
    %111 = math.exp %110 : vector<8x1xf32>
    %112 = vector.broadcast %109 : vector<8x1xf32> to vector<8x16xf32>
    %113 = arith.subf %105, %112 : vector<8x16xf32>
    %114 = math.exp %113 : vector<8x16xf32>
    %c0_59 = arith.constant 0 : index
    %c3_60 = arith.constant 3 : index
    %115 = vector.load %arg9[%c0_59, %c3_60] : memref<8x4xf32, #tpu.memory_space<vmem>>, vector<8x1xf32>
    %116 = arith.mulf %111, %115 : vector<8x1xf32>
    %cst_61 = arith.constant dense<0.000000e+00> : vector<8xf32>
    %117 = vector.multi_reduction <add>, %114, %cst_61 [1] : vector<8x16xf32> to vector<8xf32>
    %118 = vector.shape_cast %117 : vector<8xf32> to vector<8x1xf32>
    %119 = arith.addf %116, %118 : vector<8x1xf32>
    %c0_62 = arith.constant 0 : index
    %c3_63 = arith.constant 3 : index
    %120 = vector.load %arg9[%c0_62, %c3_63] : memref<8x4xf32, #tpu.memory_space<vmem>>, vector<8x1xf32>
    tpu.vector_store %arg9[%c0_62, %c3_63], %119 {strides = array<i32>} : memref<8x4xf32, #tpu.memory_space<vmem>>, vector<8x1xf32>,
    %c0_64 = arith.constant 0 : index
    %c24 = arith.constant 24 : index
    %121 = vector.load %arg10[%c0_64, %c24] : memref<8x32xf32, #tpu.memory_space<vmem>>, vector<8x8xf32>
    %122 = vector.broadcast %111 : vector<8x1xf32> to vector<8x8xf32>
    %123 = arith.mulf %122, %121 : vector<8x8xf32>
    %124 = arith.truncf %114 : vector<8x16xf32> to vector<8x16xbf16>
    %125 = vector.extract_strided_slice %7 {offsets = [0, 24], sizes = [16, 8], strides = [1, 1]} : vector<16x32xbf16> to vector<16x8xbf16>
    %cst_65 = arith.constant dense<0.000000e+00> : vector<8x8xf32>
    %126 = tpu.matmul %124, %125, %cst_65 {dimension_numbers = #tpu.dot_dimension_numbers<[1], [0], [0], [1], [0, 0, 1, 1], [], []>} : vector<8x16xbf16>, vector<16x8xbf16>, vector<8x8xf32> -> vector<8x8xf32>
    %127 = arith.addf %123, %126 : vector<8x8xf32>
    %c0_66 = arith.constant 0 : index
    %c24_67 = arith.constant 24 : index
    %128 = vector.load %arg10[%c0_66, %c24_67] : memref<8x32xf32, #tpu.memory_space<vmem>>, vector<8x8xf32>
    tpu.vector_store %arg10[%c0_66, %c24_67], %127 {strides = array<i32>} : memref<8x32xf32, #tpu.memory_space<vmem>>, vector<8x8xf32>,
    %c0_68 = arith.constant 0 : index
    %c3_69 = arith.constant 3 : index
    %129 = vector.load %arg8[%c0_68, %c3_69] : memref<8x4xf32, #tpu.memory_space<vmem>>, vector<8x1xf32>
    tpu.vector_store %arg8[%c0_68, %c3_69], %109 {strides = array<i32>} : memref<8x4xf32, #tpu.memory_space<vmem>>, vector<8x1xf32>,
    %c0_i32_70 = arith.constant 0 : i32
    %130 = arith.cmpi eq, %arg2, %c0_i32_70 : i32
    %131 = arith.extui %130 : i1 to i32
    %c0_i32_71 = arith.constant 0 : i32
    %132 = arith.cmpi ne, %131, %c0_i32_71 : i32
    scf.if %132 {
      %c0_72 = arith.constant 0 : index
      %c0_73 = arith.constant 0 : index
      %133 = vector.load %arg9[%c0_72, %c0_73] : memref<8x4xf32, #tpu.memory_space<vmem>>, vector<8x4xf32>
      %134 = tpu.reciprocal %133 {approx = true} : vector<8x4xf32> -> vector<8x4xf32>
      %c0_74 = arith.constant 0 : index
      %c0_75 = arith.constant 0 : index
      %135 = vector.load %arg10[%c0_74, %c0_75] : memref<8x32xf32, #tpu.memory_space<vmem>>, vector<8x32xf32>
      %136 = vector.extract_strided_slice %135 {offsets = [0, 0], sizes = [8, 8], strides = [1, 1]} : vector<8x32xf32> to vector<8x8xf32>
      %137 = vector.extract_strided_slice %134 {offsets = [0, 0], sizes = [8, 1], strides = [1, 1]} : vector<8x4xf32> to vector<8x1xf32>
      %138 = vector.broadcast %137 : vector<8x1xf32> to vector<8x8xf32>
      %139 = arith.mulf %136, %138 : vector<8x8xf32>
      %140 = vector.extract_strided_slice %135 {offsets = [0, 8], sizes = [8, 8], strides = [1, 1]} : vector<8x32xf32> to vector<8x8xf32>
      %141 = vector.extract_strided_slice %134 {offsets = [0, 1], sizes = [8, 1], strides = [1, 1]} : vector<8x4xf32> to vector<8x1xf32>
      %142 = vector.broadcast %141 : vector<8x1xf32> to vector<8x8xf32>
      %143 = arith.mulf %140, %142 : vector<8x8xf32>
      %144 = vector.extract_strided_slice %135 {offsets = [0, 16], sizes = [8, 8], strides = [1, 1]} : vector<8x32xf32> to vector<8x8xf32>
      %145 = vector.extract_strided_slice %134 {offsets = [0, 2], sizes = [8, 1], strides = [1, 1]} : vector<8x4xf32> to vector<8x1xf32>
      %146 = vector.broadcast %145 : vector<8x1xf32> to vector<8x8xf32>
      %147 = arith.mulf %144, %146 : vector<8x8xf32>
      %148 = vector.extract_strided_slice %135 {offsets = [0, 24], sizes = [8, 8], strides = [1, 1]} : vector<8x32xf32> to vector<8x8xf32>
      %149 = vector.extract_strided_slice %134 {offsets = [0, 3], sizes = [8, 1], strides = [1, 1]} : vector<8x4xf32> to vector<8x1xf32>
      %150 = vector.broadcast %149 : vector<8x1xf32> to vector<8x8xf32>
      %151 = arith.mulf %148, %150 : vector<8x8xf32>
      %152 = tpu.concatenate %139, %143, %147, %151 in 1 : vector<8x8xf32>, vector<8x8xf32>, vector<8x8xf32>, vector<8x8xf32> -> vector<8x32xf32>
      %153 = arith.truncf %152 : vector<8x32xf32> to vector<8x32xbf16>
      %c0_76 = arith.constant 0 : index
      %c0_77 = arith.constant 0 : index
      %c0_78 = arith.constant 0 : index
      %154 = vector.load %arg6[%c0_76, %c0_77, %c0_78] : memref<1x8x32xbf16, #tpu.memory_space<vmem>>, vector<1x8x32xbf16>
      %155 = vector.shape_cast %154 : vector<1x8x32xbf16> to vector<8x32xbf16>
      %156 = vector.shape_cast %153 : vector<8x32xbf16> to vector<1x8x32xbf16>
      tpu.vector_store %arg6[%c0_76, %c0_77, %c0_78], %156 {strides = array<i32>} : memref<1x8x32xbf16, #tpu.memory_space<vmem>>, vector<1x8x32xbf16>,
    } else {
    }
    return
  }
  func.func @transform_0(%arg0: i32, %arg1: i32, %arg2: i32) -> (i32, i32, i32) {
    %c0_i32 = arith.constant 0 : i32
    %c0_i32_0 = arith.constant 0 : i32
    return %arg0, %arg1, %c0_i32 : i32, i32, i32
  }
  func.func @transform_1(%arg0: i32, %arg1: i32, %arg2: i32) -> (i32, i32, i32) {
    %c0_i32 = arith.constant 0 : i32
    %c0_i32_0 = arith.constant 0 : i32
    return %arg0, %arg2, %c0_i32 : i32, i32, i32
  }
  func.func @transform_2(%arg0: i32, %arg1: i32, %arg2: i32) -> (i32, i32, i32) {
    %c0_i32 = arith.constant 0 : i32
    %c0_i32_0 = arith.constant 0 : i32
    return %arg0, %arg2, %c0_i32 : i32, i32, i32
  }
  func.func @transform_3(%arg0: i32, %arg1: i32, %arg2: i32) -> (i32, i32, i32) {
    %c0_i32 = arith.constant 0 : i32
    %c0_i32_0 = arith.constant 0 : i32
    return %arg0, %arg1, %c0_i32 : i32, i32, i32
  }
}

module attributes {stable_mosaic.version = 11 : i64} {
  func.func @_linear_kernel(%arg0: i32, %arg1: i32, %arg2: memref<16x32xbf16, #tpu.memory_space<vmem>>, %arg3: memref<32x128xbf16, #tpu.memory_space<vmem>>, %arg4: memref<1x128xf32, #tpu.memory_space<vmem>>, %arg5: memref<1x32xf32, #tpu.memory_space<vmem>>, %arg6: memref<1x32xf32, #tpu.memory_space<vmem>>, %arg7: memref<16x128xbf16, #tpu.memory_space<vmem>>) attributes {dimension_semantics = [#tpu.dimension_semantics<parallel>, #tpu.dimension_semantics<parallel>], iteration_bounds = array<i64: 1, 1>, scalar_prefetch = 0 : i64, scratch_operands = 0 : i64, tpu.core_type = #tpu.core_type<tc>, window_params = [{transform_indices = @transform_0, window_bounds = array<i64: 16, 32>}, {transform_indices = @transform_1, window_bounds = array<i64: 32, 128>}, {transform_indices = @transform_2, window_bounds = array<i64: 1, 128>}, {pipeline_mode = #tpu.pipeline_mode<synchronous>, transform_indices = @transform_3, window_bounds = array<i64: 1, 32>}, {pipeline_mode = #tpu.pipeline_mode<synchronous>, transform_indices = @transform_4, window_bounds = array<i64: 1, 32>}, {transform_indices = @transform_5, window_bounds = array<i64: 16, 128>}]} {
    %c0 = arith.constant 0 : index
    %c0_0 = arith.constant 0 : index
    %0 = vector.load %arg2[%c0, %c0_0] : memref<16x32xbf16, #tpu.memory_space<vmem>>, vector<16x32xbf16>
    %1 = arith.extf %0 : vector<16x32xbf16> to vector<16x32xf32>
    %cst = arith.constant dense<0.000000e+00> : vector<16xf32>
    %2 = vector.multi_reduction <add>, %1, %cst [1] : vector<16x32xf32> to vector<16xf32>
    %3 = vector.shape_cast %2 : vector<16xf32> to vector<16x1xf32>
    %cst_1 = arith.constant 3.200000e+01 : f32
    %4 = vector.broadcast %cst_1 : f32 to vector<16x1xf32>
    %5 = arith.divf %3, %4 : vector<16x1xf32>
    %6 = vector.broadcast %5 : vector<16x1xf32> to vector<16x32xf32>
    %7 = arith.subf %1, %6 : vector<16x32xf32>
    %8 = arith.mulf %7, %7 : vector<16x32xf32>
    %cst_2 = arith.constant dense<0.000000e+00> : vector<16xf32>
    %9 = vector.multi_reduction <add>, %8, %cst_2 [1] : vector<16x32xf32> to vector<16xf32>
    %10 = vector.shape_cast %9 : vector<16xf32> to vector<16x1xf32>
    %cst_3 = arith.constant 3.200000e+01 : f32
    %11 = vector.broadcast %cst_3 : f32 to vector<16x1xf32>
    %12 = arith.divf %10, %11 : vector<16x1xf32>
    %13 = vector.broadcast %5 : vector<16x1xf32> to vector<16x32xf32>
    %14 = arith.subf %1, %13 : vector<16x32xf32>
    %cst_4 = arith.constant 9.99999974E-6 : f32
    %15 = vector.broadcast %cst_4 : f32 to vector<16x1xf32>
    %16 = arith.addf %12, %15 : vector<16x1xf32>
    %17 = math.rsqrt %16 : vector<16x1xf32>
    %18 = vector.broadcast %17 : vector<16x1xf32> to vector<16x32xf32>
    %19 = arith.mulf %14, %18 : vector<16x32xf32>
    %c0_5 = arith.constant 0 : index
    %c0_6 = arith.constant 0 : index
    %20 = vector.load %arg5[%c0_5, %c0_6] : memref<1x32xf32, #tpu.memory_space<vmem>>, vector<1x32xf32>
    %21 = vector.broadcast %20 : vector<1x32xf32> to vector<16x32xf32>
    %22 = arith.mulf %19, %21 : vector<16x32xf32>
    %c0_7 = arith.constant 0 : index
    %c0_8 = arith.constant 0 : index
    %23 = vector.load %arg6[%c0_7, %c0_8] : memref<1x32xf32, #tpu.memory_space<vmem>>, vector<1x32xf32>
    %24 = vector.broadcast %23 : vector<1x32xf32> to vector<16x32xf32>
    %25 = arith.addf %22, %24 : vector<16x32xf32>
    %26 = arith.truncf %25 : vector<16x32xf32> to vector<16x32xbf16>
    %c0_9 = arith.constant 0 : index
    %c0_10 = arith.constant 0 : index
    %27 = vector.load %arg3[%c0_9, %c0_10] : memref<32x128xbf16, #tpu.memory_space<vmem>>, vector<32x128xbf16>
    %cst_11 = arith.constant dense<0.000000e+00> : vector<16x128xf32>
    %28 = tpu.matmul %26, %27, %cst_11 {dimension_numbers = #tpu.dot_dimension_numbers<[1], [0], [0], [1], [0, 0, 1, 1], [], []>} : vector<16x32xbf16>, vector<32x128xbf16>, vector<16x128xf32> -> vector<16x128xf32>
    %c0_12 = arith.constant 0 : index
    %c0_13 = arith.constant 0 : index
    %29 = vector.load %arg4[%c0_12, %c0_13] : memref<1x128xf32, #tpu.memory_space<vmem>>, vector<1x128xf32>
    %30 = vector.broadcast %29 : vector<1x128xf32> to vector<16x128xf32>
    %31 = arith.addf %28, %30 : vector<16x128xf32>
    %cst_14 = arith.constant 5.000000e-01 : f32
    %32 = vector.broadcast %cst_14 : f32 to vector<16x128xf32>
    %33 = arith.mulf %32, %31 : vector<16x128xf32>
    %cst_15 = arith.constant 0.707106769 : f32
    %34 = vector.broadcast %cst_15 : f32 to vector<16x128xf32>
    %35 = arith.mulf %31, %34 : vector<16x128xf32>
    %36 = math.erf %35 : vector<16x128xf32>
    %cst_16 = arith.constant 1.000000e+00 : f32
    %37 = vector.broadcast %cst_16 : f32 to vector<16x128xf32>
    %38 = arith.addf %37, %36 : vector<16x128xf32>
    %39 = arith.mulf %33, %38 : vector<16x128xf32>
    %40 = arith.truncf %39 : vector<16x128xf32> to vector<16x128xbf16>
    %c0_17 = arith.constant 0 : index
    %c0_18 = arith.constant 0 : index
    %41 = vector.load %arg7[%c0_17, %c0_18] : memref<16x128xbf16, #tpu.memory_space<vmem>>, vector<16x128xbf16>
    tpu.vector_store %arg7[%c0_17, %c0_18], %40 {strides = array<i32>} : memref<16x128xbf16, #tpu.memory_space<vmem>>, vector<16x128xbf16>,
    return
  }
  func.func @transform_0(%arg0: i32, %arg1: i32) -> (i32, i32) {
    %c0_i32 = arith.constant 0 : i32
    %c0_i32_0 = arith.constant 0 : i32
    return %arg0, %c0_i32 : i32, i32
  }
  func.func @transform_1(%arg0: i32, %arg1: i32) -> (i32, i32) {
    %c0_i32 = arith.constant 0 : i32
    %c0_i32_0 = arith.constant 0 : i32
    return %c0_i32, %arg1 : i32, i32
  }
  func.func @transform_2(%arg0: i32, %arg1: i32) -> (i32, i32) {
    %c0_i32 = arith.constant 0 : i32
    %c0_i32_0 = arith.constant 0 : i32
    return %c0_i32, %arg1 : i32, i32
  }
  func.func @transform_3(%arg0: i32, %arg1: i32) -> (i32, i32) {
    %c0_i32 = arith.constant 0 : i32
    %c0_i32_0 = arith.constant 0 : i32
    %c0_i32_1 = arith.constant 0 : i32
    return %c0_i32, %c0_i32_0 : i32, i32
  }
  func.func @transform_4(%arg0: i32, %arg1: i32) -> (i32, i32) {
    %c0_i32 = arith.constant 0 : i32
    %c0_i32_0 = arith.constant 0 : i32
    %c0_i32_1 = arith.constant 0 : i32
    return %c0_i32, %c0_i32_0 : i32, i32
  }
  func.func @transform_5(%arg0: i32, %arg1: i32) -> (i32, i32) {
    %c0_i32 = arith.constant 0 : i32
    return %arg0, %arg1 : i32, i32
  }
}

module attributes {stable_mosaic.version = 11 : i64} {
  func.func @_linear_kernel(%arg0: i32, %arg1: i32, %arg2: memref<16x128xbf16, #tpu.memory_space<vmem>>, %arg3: memref<128x32xbf16, #tpu.memory_space<vmem>>, %arg4: memref<1x32xf32, #tpu.memory_space<vmem>>, %arg5: memref<16x32xbf16, #tpu.memory_space<vmem>>, %arg6: memref<16x32xbf16, #tpu.memory_space<vmem>>) attributes {dimension_semantics = [#tpu.dimension_semantics<parallel>, #tpu.dimension_semantics<parallel>], iteration_bounds = array<i64: 1, 1>, scalar_prefetch = 0 : i64, scratch_operands = 0 : i64, tpu.core_type = #tpu.core_type<tc>, window_params = [{transform_indices = @transform_0, window_bounds = array<i64: 16, 128>}, {transform_indices = @transform_1, window_bounds = array<i64: 128, 32>}, {transform_indices = @transform_2, window_bounds = array<i64: 1, 32>}, {transform_indices = @transform_3, window_bounds = array<i64: 16, 32>}, {transform_indices = @transform_4, window_bounds = array<i64: 16, 32>}]} {
    %c0 = arith.constant 0 : index
    %c0_0 = arith.constant 0 : index
    %0 = vector.load %arg2[%c0, %c0_0] : memref<16x128xbf16, #tpu.memory_space<vmem>>, vector<16x128xbf16>
    %c0_1 = arith.constant 0 : index
    %c0_2 = arith.constant 0 : index
    %1 = vector.load %arg3[%c0_1, %c0_2] : memref<128x32xbf16, #tpu.memory_space<vmem>>, vector<128x32xbf16>
    %cst = arith.constant dense<0.000000e+00> : vector<16x32xf32>
    %2 = tpu.matmul %0, %1, %cst {dimension_numbers = #tpu.dot_dimension_numbers<[1], [0], [0], [1], [0, 0, 1, 1], [], []>} : vector<16x128xbf16>, vector<128x32xbf16>, vector<16x32xf32> -> vector<16x32xf32>
    %c0_3 = arith.constant 0 : index
    %c0_4 = arith.constant 0 : index
    %3 = vector.load %arg4[%c0_3, %c0_4] : memref<1x32xf32, #tpu.memory_space<vmem>>, vector<1x32xf32>
    %4 = vector.broadcast %3 : vector<1x32xf32> to vector<16x32xf32>
    %5 = arith.addf %2, %4 : vector<16x32xf32>
    %c0_5 = arith.constant 0 : index
    %c0_6 = arith.constant 0 : index
    %6 = vector.load %arg5[%c0_5, %c0_6] : memref<16x32xbf16, #tpu.memory_space<vmem>>, vector<16x32xbf16>
    %7 = arith.extf %6 : vector<16x32xbf16> to vector<16x32xf32>
    %8 = arith.addf %5, %7 : vector<16x32xf32>
    %9 = arith.truncf %8 : vector<16x32xf32> to vector<16x32xbf16>
    %c0_7 = arith.constant 0 : index
    %c0_8 = arith.constant 0 : index
    %10 = vector.load %arg6[%c0_7, %c0_8] : memref<16x32xbf16, #tpu.memory_space<vmem>>, vector<16x32xbf16>
    tpu.vector_store %arg6[%c0_7, %c0_8], %9 {strides = array<i32>} : memref<16x32xbf16, #tpu.memory_space<vmem>>, vector<16x32xbf16>,
    return
  }
  func.func @transform_0(%arg0: i32, %arg1: i32) -> (i32, i32) {
    %c0_i32 = arith.constant 0 : i32
    %c0_i32_0 = arith.constant 0 : i32
    return %arg0, %c0_i32 : i32, i32
  }
  func.func @transform_1(%arg0: i32, %arg1: i32) -> (i32, i32) {
    %c0_i32 = arith.constant 0 : i32
    %c0_i32_0 = arith.constant 0 : i32
    return %c0_i32, %arg1 : i32, i32
  }
  func.func @transform_2(%arg0: i32, %arg1: i32) -> (i32, i32) {
    %c0_i32 = arith.constant 0 : i32
    %c0_i32_0 = arith.constant 0 : i32
    return %c0_i32, %arg1 : i32, i32
  }
  func.func @transform_3(%arg0: i32, %arg1: i32) -> (i32, i32) {
    %c0_i32 = arith.constant 0 : i32
    return %arg0, %arg1 : i32, i32
  }
  func.func @transform_4(%arg0: i32, %arg1: i32) -> (i32, i32) {
    %c0_i32 = arith.constant 0 : i32
    return %arg0, %arg1 : i32, i32
  }
}

module attributes {stable_mosaic.version = 11 : i64} {
  func.func @_linear_kernel(%arg0: i32, %arg1: i32, %arg2: memref<16x32xbf16, #tpu.memory_space<vmem>>, %arg3: memref<32x96xbf16, #tpu.memory_space<vmem>>, %arg4: memref<1x96xf32, #tpu.memory_space<vmem>>, %arg5: memref<1x32xf32, #tpu.memory_space<vmem>>, %arg6: memref<1x32xf32, #tpu.memory_space<vmem>>, %arg7: memref<16x96xbf16, #tpu.memory_space<vmem>>) attributes {dimension_semantics = [#tpu.dimension_semantics<parallel>, #tpu.dimension_semantics<parallel>], iteration_bounds = array<i64: 1, 1>, scalar_prefetch = 0 : i64, scratch_operands = 0 : i64, tpu.core_type = #tpu.core_type<tc>, window_params = [{transform_indices = @transform_0, window_bounds = array<i64: 16, 32>}, {transform_indices = @transform_1, window_bounds = array<i64: 32, 96>}, {transform_indices = @transform_2, window_bounds = array<i64: 1, 96>}, {pipeline_mode = #tpu.pipeline_mode<synchronous>, transform_indices = @transform_3, window_bounds = array<i64: 1, 32>}, {pipeline_mode = #tpu.pipeline_mode<synchronous>, transform_indices = @transform_4, window_bounds = array<i64: 1, 32>}, {transform_indices = @transform_5, window_bounds = array<i64: 16, 96>}]} {
    %c0 = arith.constant 0 : index
    %c0_0 = arith.constant 0 : index
    %0 = vector.load %arg2[%c0, %c0_0] : memref<16x32xbf16, #tpu.memory_space<vmem>>, vector<16x32xbf16>
    %1 = arith.extf %0 : vector<16x32xbf16> to vector<16x32xf32>
    %cst = arith.constant dense<0.000000e+00> : vector<16xf32>
    %2 = vector.multi_reduction <add>, %1, %cst [1] : vector<16x32xf32> to vector<16xf32>
    %3 = vector.shape_cast %2 : vector<16xf32> to vector<16x1xf32>
    %cst_1 = arith.constant 3.200000e+01 : f32
    %4 = vector.broadcast %cst_1 : f32 to vector<16x1xf32>
    %5 = arith.divf %3, %4 : vector<16x1xf32>
    %6 = vector.broadcast %5 : vector<16x1xf32> to vector<16x32xf32>
    %7 = arith.subf %1, %6 : vector<16x32xf32>
    %8 = arith.mulf %7, %7 : vector<16x32xf32>
    %cst_2 = arith.constant dense<0.000000e+00> : vector<16xf32>
    %9 = vector.multi_reduction <add>, %8, %cst_2 [1] : vector<16x32xf32> to vector<16xf32>
    %10 = vector.shape_cast %9 : vector<16xf32> to vector<16x1xf32>
    %cst_3 = arith.constant 3.200000e+01 : f32
    %11 = vector.broadcast %cst_3 : f32 to vector<16x1xf32>
    %12 = arith.divf %10, %11 : vector<16x1xf32>
    %13 = vector.broadcast %5 : vector<16x1xf32> to vector<16x32xf32>
    %14 = arith.subf %1, %13 : vector<16x32xf32>
    %cst_4 = arith.constant 9.99999974E-6 : f32
    %15 = vector.broadcast %cst_4 : f32 to vector<16x1xf32>
    %16 = arith.addf %12, %15 : vector<16x1xf32>
    %17 = math.rsqrt %16 : vector<16x1xf32>
    %18 = vector.broadcast %17 : vector<16x1xf32> to vector<16x32xf32>
    %19 = arith.mulf %14, %18 : vector<16x32xf32>
    %c0_5 = arith.constant 0 : index
    %c0_6 = arith.constant 0 : index
    %20 = vector.load %arg5[%c0_5, %c0_6] : memref<1x32xf32, #tpu.memory_space<vmem>>, vector<1x32xf32>
    %21 = vector.broadcast %20 : vector<1x32xf32> to vector<16x32xf32>
    %22 = arith.mulf %19, %21 : vector<16x32xf32>
    %c0_7 = arith.constant 0 : index
    %c0_8 = arith.constant 0 : index
    %23 = vector.load %arg6[%c0_7, %c0_8] : memref<1x32xf32, #tpu.memory_space<vmem>>, vector<1x32xf32>
    %24 = vector.broadcast %23 : vector<1x32xf32> to vector<16x32xf32>
    %25 = arith.addf %22, %24 : vector<16x32xf32>
    %26 = arith.truncf %25 : vector<16x32xf32> to vector<16x32xbf16>
    %c0_9 = arith.constant 0 : index
    %c0_10 = arith.constant 0 : index
    %27 = vector.load %arg3[%c0_9, %c0_10] : memref<32x96xbf16, #tpu.memory_space<vmem>>, vector<32x96xbf16>
    %cst_11 = arith.constant dense<0.000000e+00> : vector<16x96xf32>
    %28 = tpu.matmul %26, %27, %cst_11 {dimension_numbers = #tpu.dot_dimension_numbers<[1], [0], [0], [1], [0, 0, 1, 1], [], []>} : vector<16x32xbf16>, vector<32x96xbf16>, vector<16x96xf32> -> vector<16x96xf32>
    %c0_12 = arith.constant 0 : index
    %c0_13 = arith.constant 0 : index
    %29 = vector.load %arg4[%c0_12, %c0_13] : memref<1x96xf32, #tpu.memory_space<vmem>>, vector<1x96xf32>
    %30 = vector.broadcast %29 : vector<1x96xf32> to vector<16x96xf32>
    %31 = arith.addf %28, %30 : vector<16x96xf32>
    %32 = arith.truncf %31 : vector<16x96xf32> to vector<16x96xbf16>
    %c0_14 = arith.constant 0 : index
    %c0_15 = arith.constant 0 : index
    %33 = vector.load %arg7[%c0_14, %c0_15] : memref<16x96xbf16, #tpu.memory_space<vmem>>, vector<16x96xbf16>
    tpu.vector_store %arg7[%c0_14, %c0_15], %32 {strides = array<i32>} : memref<16x96xbf16, #tpu.memory_space<vmem>>, vector<16x96xbf16>,
    return
  }
  func.func @transform_0(%arg0: i32, %arg1: i32) -> (i32, i32) {
    %c0_i32 = arith.constant 0 : i32
    %c0_i32_0 = arith.constant 0 : i32
    return %arg0, %c0_i32 : i32, i32
  }
  func.func @transform_1(%arg0: i32, %arg1: i32) -> (i32, i32) {
    %c0_i32 = arith.constant 0 : i32
    %c0_i32_0 = arith.constant 0 : i32
    return %c0_i32, %arg1 : i32, i32
  }
  func.func @transform_2(%arg0: i32, %arg1: i32) -> (i32, i32) {
    %c0_i32 = arith.constant 0 : i32
    %c0_i32_0 = arith.constant 0 : i32
    return %c0_i32, %arg1 : i32, i32
  }
  func.func @transform_3(%arg0: i32, %arg1: i32) -> (i32, i32) {
    %c0_i32 = arith.constant 0 : i32
    %c0_i32_0 = arith.constant 0 : i32
    %c0_i32_1 = arith.constant 0 : i32
    return %c0_i32, %c0_i32_0 : i32, i32
  }
  func.func @transform_4(%arg0: i32, %arg1: i32) -> (i32, i32) {
    %c0_i32 = arith.constant 0 : i32
    %c0_i32_0 = arith.constant 0 : i32
    %c0_i32_1 = arith.constant 0 : i32
    return %c0_i32, %c0_i32_0 : i32, i32
  }
  func.func @transform_5(%arg0: i32, %arg1: i32) -> (i32, i32) {
    %c0_i32 = arith.constant 0 : i32
    return %arg0, %arg1 : i32, i32
  }
}

module attributes {stable_mosaic.version = 11 : i64} {
  func.func @_linear_kernel(%arg0: i32, %arg1: i32, %arg2: memref<16x32xbf16, #tpu.memory_space<vmem>>, %arg3: memref<32x128xbf16, #tpu.memory_space<vmem>>, %arg4: memref<1x32xf32, #tpu.memory_space<vmem>>, %arg5: memref<1x32xf32, #tpu.memory_space<vmem>>, %arg6: memref<16x128xf32, #tpu.memory_space<vmem>>) attributes {dimension_semantics = [#tpu.dimension_semantics<parallel>, #tpu.dimension_semantics<parallel>], iteration_bounds = array<i64: 1, 1>, scalar_prefetch = 0 : i64, scratch_operands = 0 : i64, tpu.core_type = #tpu.core_type<tc>, window_params = [{transform_indices = @transform_0, window_bounds = array<i64: 16, 32>}, {transform_indices = @transform_1, window_bounds = array<i64: 32, 128>}, {pipeline_mode = #tpu.pipeline_mode<synchronous>, transform_indices = @transform_2, window_bounds = array<i64: 1, 32>}, {pipeline_mode = #tpu.pipeline_mode<synchronous>, transform_indices = @transform_3, window_bounds = array<i64: 1, 32>}, {transform_indices = @transform_4, window_bounds = array<i64: 16, 128>}]} {
    %c0 = arith.constant 0 : index
    %c0_0 = arith.constant 0 : index
    %0 = vector.load %arg2[%c0, %c0_0] : memref<16x32xbf16, #tpu.memory_space<vmem>>, vector<16x32xbf16>
    %1 = arith.extf %0 : vector<16x32xbf16> to vector<16x32xf32>
    %cst = arith.constant dense<0.000000e+00> : vector<16xf32>
    %2 = vector.multi_reduction <add>, %1, %cst [1] : vector<16x32xf32> to vector<16xf32>
    %3 = vector.shape_cast %2 : vector<16xf32> to vector<16x1xf32>
    %cst_1 = arith.constant 3.200000e+01 : f32
    %4 = vector.broadcast %cst_1 : f32 to vector<16x1xf32>
    %5 = arith.divf %3, %4 : vector<16x1xf32>
    %6 = vector.broadcast %5 : vector<16x1xf32> to vector<16x32xf32>
    %7 = arith.subf %1, %6 : vector<16x32xf32>
    %8 = arith.mulf %7, %7 : vector<16x32xf32>
    %cst_2 = arith.constant dense<0.000000e+00> : vector<16xf32>
    %9 = vector.multi_reduction <add>, %8, %cst_2 [1] : vector<16x32xf32> to vector<16xf32>
    %10 = vector.shape_cast %9 : vector<16xf32> to vector<16x1xf32>
    %cst_3 = arith.constant 3.200000e+01 : f32
    %11 = vector.broadcast %cst_3 : f32 to vector<16x1xf32>
    %12 = arith.divf %10, %11 : vector<16x1xf32>
    %13 = vector.broadcast %5 : vector<16x1xf32> to vector<16x32xf32>
    %14 = arith.subf %1, %13 : vector<16x32xf32>
    %cst_4 = arith.constant 9.99999974E-6 : f32
    %15 = vector.broadcast %cst_4 : f32 to vector<16x1xf32>
    %16 = arith.addf %12, %15 : vector<16x1xf32>
    %17 = math.rsqrt %16 : vector<16x1xf32>
    %18 = vector.broadcast %17 : vector<16x1xf32> to vector<16x32xf32>
    %19 = arith.mulf %14, %18 : vector<16x32xf32>
    %c0_5 = arith.constant 0 : index
    %c0_6 = arith.constant 0 : index
    %20 = vector.load %arg4[%c0_5, %c0_6] : memref<1x32xf32, #tpu.memory_space<vmem>>, vector<1x32xf32>
    %21 = vector.broadcast %20 : vector<1x32xf32> to vector<16x32xf32>
    %22 = arith.mulf %19, %21 : vector<16x32xf32>
    %c0_7 = arith.constant 0 : index
    %c0_8 = arith.constant 0 : index
    %23 = vector.load %arg5[%c0_7, %c0_8] : memref<1x32xf32, #tpu.memory_space<vmem>>, vector<1x32xf32>
    %24 = vector.broadcast %23 : vector<1x32xf32> to vector<16x32xf32>
    %25 = arith.addf %22, %24 : vector<16x32xf32>
    %26 = arith.truncf %25 : vector<16x32xf32> to vector<16x32xbf16>
    %c0_9 = arith.constant 0 : index
    %c0_10 = arith.constant 0 : index
    %27 = vector.load %arg3[%c0_9, %c0_10] : memref<32x128xbf16, #tpu.memory_space<vmem>>, vector<32x128xbf16>
    %cst_11 = arith.constant dense<0.000000e+00> : vector<16x128xf32>
    %28 = tpu.matmul %26, %27, %cst_11 {dimension_numbers = #tpu.dot_dimension_numbers<[1], [0], [0], [1], [0, 0, 1, 1], [], []>} : vector<16x32xbf16>, vector<32x128xbf16>, vector<16x128xf32> -> vector<16x128xf32>
    %c0_12 = arith.constant 0 : index
    %c0_13 = arith.constant 0 : index
    %29 = vector.load %arg6[%c0_12, %c0_13] : memref<16x128xf32, #tpu.memory_space<vmem>>, vector<16x128xf32>
    tpu.vector_store %arg6[%c0_12, %c0_13], %28 {strides = array<i32>} : memref<16x128xf32, #tpu.memory_space<vmem>>, vector<16x128xf32>,
    return
  }
  func.func @transform_0(%arg0: i32, %arg1: i32) -> (i32, i32) {
    %c0_i32 = arith.constant 0 : i32
    %c0_i32_0 = arith.constant 0 : i32
    return %arg0, %c0_i32 : i32, i32
  }
  func.func @transform_1(%arg0: i32, %arg1: i32) -> (i32, i32) {
    %c0_i32 = arith.constant 0 : i32
    %c0_i32_0 = arith.constant 0 : i32
    return %c0_i32, %arg1 : i32, i32
  }
  func.func @transform_2(%arg0: i32, %arg1: i32) -> (i32, i32) {
    %c0_i32 = arith.constant 0 : i32
    %c0_i32_0 = arith.constant 0 : i32
    %c0_i32_1 = arith.constant 0 : i32
    return %c0_i32, %c0_i32_0 : i32, i32
  }
  func.func @transform_3(%arg0: i32, %arg1: i32) -> (i32, i32) {
    %c0_i32 = arith.constant 0 : i32
    %c0_i32_0 = arith.constant 0 : i32
    %c0_i32_1 = arith.constant 0 : i32
    return %c0_i32, %c0_i32_0 : i32, i32
  }
  func.func @transform_4(%arg0: i32, %arg1: i32) -> (i32, i32) {
    %c0_i32 = arith.constant 0 : i32
    return %arg0, %arg1 : i32, i32
  }
}

</mosaic_0001>

<llo_original>
// kernel: text_decoder_forward.21
$region0: #{text_decoder_forward.21}
  #allocation0 [shape = 'u32[]', space=smem, size = 0x4, offset = 0x4, fixed_abs, tag = 'smem constant byte address 0x4 - core index']
  #allocation1 [shape = 'u32[72,128]{1,0:T(1,128)}', space=vmem, size = 0x9000, scoped, tag = 'internal scratch']
  %s0 = inlined_call_operand.vmem [shape: bf16[16,32], index: 0, kind: input, shape index: {}]
  %s1 = inlined_call_operand.vmem [shape: bf16[32,32], index: 1, kind: input, shape index: {}]
  %s2 = inlined_call_operand.vmem [shape: f32[1,32], index: 2, kind: input, shape index: {}]
  %s3 = inlined_call_operand.vmem [shape: f32[16,32], index: 3, kind: input, shape index: {}]
  %s4 = inlined_call_operand.vmem [shape: bf16[16,32], index: 4, kind: output, shape index: {}]
  %s5 = sld [smem:[#allocation0]]
  $region26: #{text_decoder_forward.21} parent=0
    _
  %s7 = ssub.s32 1, %s5
  %s8 = scalar_select 0, %s7, %s5
  // Predicated region
  $region2: #{text_decoder_forward.21} parent=0 // pred_check
    _
  $region3: #{text_decoder_forward.21} parent=0 // pred_check_branch
    %10 = sbr.rel (0) target = $region5
  $region4: #{text_decoder_forward.21} parent=0 // pred_region
    _
  $region5: #{text_decoder_forward.21} parent=0 // pred_fallthru
    _
  // Predicated region
  $region6: #{text_decoder_forward.21} parent=0 // pred_check
    _
  $region7: #{text_decoder_forward.21} parent=0 // pred_check_branch
    %12 = sbr.rel (0) target = $region9
  $region8: #{text_decoder_forward.21} parent=0 // pred_region
    _
  $region9: #{text_decoder_forward.21} parent=0 // pred_fallthru
    _
  // Predicated region
  $region10: #{text_decoder_forward.21} parent=0 // pred_check
    _
  $region11: #{text_decoder_forward.21} parent=0 // pred_check_branch
    %14 = sbr.rel (0) target = $region13
  $region12: #{text_decoder_forward.21} parent=0 // pred_region
    _
  $region13: #{text_decoder_forward.21} parent=0 // pred_fallthru
    _
  // Predicated region
  $region14: #{text_decoder_forward.21} parent=0 // pred_check
    _
  $region15: #{text_decoder_forward.21} parent=0 // pred_check_branch
    %16 = sbr.rel (0) target = $region17
  $region16: #{text_decoder_forward.21} parent=0 // pred_region
    _
  $region17: #{text_decoder_forward.21} parent=0 // pred_fallthru
    _
  %v18 = vld [vmem:[%s0] sm:$0xf]
  %v19 = vld [vmem:[%s0 + $0x4] sm:$0xf]
  %v20 = vld [vmem:[%s1] sm:$0xf]
  %v21 = vld [vmem:[%s1 + $0x4] sm:$0xf]
  %v22 = vld [vmem:[%s1 + $0x8] sm:$0xf]
  %v23 = vld [vmem:[%s1 + $0xc] sm:$0xf]
  %v24 = vld [vmem:[%s2] sm:$0x1]
  %v26 = vperm.slane %v24, 0
  %v30 = vunpack.c.l.b16 %v18
  %v31 = vunpack.c.l.b16 %v19
  %v32 = vpack.c.b16 %v31, %v30
  %v37 = vunpack.c.l.b16 %v20
  %v38 = vunpack.c.l.b16 %v21
  %v39 = vunpack.c.l.b16 %v22
  %v40 = vunpack.c.l.b16 %v23
  %v41 = vpack.c.b16 %v38, %v37
  %v42 = vpack.c.b16 %v40, %v39
  %vm45 = vcmask 261120
  %v47 = vsel %vm45, %v32, 0
  %49 = vmatpush.bf16.msra.mxu0 0
  %50 = vmatpush.bf16.msra.mxu0 0
  %51 = vmatpush.bf16.msra.mxu0 0
  %52 = vmatpush.bf16.msra.mxu0 0
  %53 = vmatpush.bf16.msra.mxu0 0
  %54 = vmatpush.bf16.msra.mxu0 0
  %55 = vmatpush.bf16.msra.mxu0 %v42
  %56 = vmatpush.bf16.msra.mxu0 %v41
  %57 = vmatmul.bf16.gmra.mxu0 %v47
  %v58 = vpop.f32.mrf.mxu0
  %v59 = vadd.f32 %v26, %v58
  %v60 = vpop.f32.mrf.mxu0
  %v61 = vadd.f32 %v26, %v60
  %62 = vdwg.mxu0
  %v63 = vld [vmem:[%s3] sm:$0xff]
  %v64 = vld [vmem:[%s3 + $0x8] sm:$0xff]
  %v65 = vadd.f32 %v59, %v63
  %v66 = vadd.f32 %v61, %v64
  %v67 = vpack.c.bf16 %v65, %v65
  %v68 = vpack.c.bf16 %v66, %v66
  %vm69 = vcmask 257024
  %70 = vst.msk [vmem:[%s4] sm:$0xf] %vm69, %v67
  %71 = vst.msk [vmem:[%s4 + $0x4] sm:$0xf] %vm69, %v68
  // Predicated region
  $region18: #{text_decoder_forward.21} parent=0 // pred_check
    _
  $region19: #{text_decoder_forward.21} parent=0 // pred_check_branch
    %73 = sbr.rel (0) target = $region21
  $region20: #{text_decoder_forward.21} parent=0 // pred_region
    _
  $region21: #{text_decoder_forward.21} parent=0 // pred_fallthru
    _
  // Predicated region
  $region22: #{text_decoder_forward.21} parent=0 // pred_check
    _
  $region23: #{text_decoder_forward.21} parent=0 // pred_check_branch
    %75 = sbr.rel (0) target = $region25
  $region24: #{text_decoder_forward.21} parent=0 // pred_region
    _
  $region25: #{text_decoder_forward.21} parent=0 // pred_fallthru
    _

// kernel: text_decoder_forward.19
$region0: #{text_decoder_forward.19}
  #allocation0 [shape = 'u32[]', space=smem, size = 0x4, offset = 0x4, fixed_abs, tag = 'smem constant byte address 0x4 - core index']
  #allocation1 [shape = 'u32[72,128]{1,0:T(1,128)}', space=vmem, size = 0x9000, scoped, tag = 'internal scratch']
  %s0 = inlined_call_operand.vmem [shape: f32[16,32], index: 0, kind: input, shape index: {}]
  %s1 = inlined_call_operand.vmem [shape: bf16[32,96], index: 1, kind: input, shape index: {}]
  %s2 = inlined_call_operand.vmem [shape: f32[1,96], index: 2, kind: input, shape index: {}]
  %s3 = inlined_call_operand.vmem [shape: f32[1,32], index: 3, kind: input, shape index: {}]
  %s4 = inlined_call_operand.vmem [shape: f32[1,32], index: 4, kind: input, shape index: {}]
  %s5 = inlined_call_operand.vmem [shape: bf16[16,96], index: 5, kind: output, shape index: {}]
  %s6 = sld [smem:[#allocation0]]
  $region30: #{text_decoder_forward.19} parent=0
    _
  %s8 = ssub.s32 1, %s6
  %s9 = scalar_select 0, %s8, %s6
  // Predicated region
  $region2: #{text_decoder_forward.19} parent=0 // pred_check
    _
  $region3: #{text_decoder_forward.19} parent=0 // pred_check_branch
    %11 = sbr.rel (0) target = $region5
  $region4: #{text_decoder_forward.19} parent=0 // pred_region
    _
  $region5: #{text_decoder_forward.19} parent=0 // pred_fallthru
    _
  // Predicated region
  $region6: #{text_decoder_forward.19} parent=0 // pred_check
    _
  $region7: #{text_decoder_forward.19} parent=0 // pred_check_branch
    %13 = sbr.rel (0) target = $region9
  $region8: #{text_decoder_forward.19} parent=0 // pred_region
    _
  $region9: #{text_decoder_forward.19} parent=0 // pred_fallthru
    _
  // Predicated region
  $region10: #{text_decoder_forward.19} parent=0 // pred_check
    _
  $region11: #{text_decoder_forward.19} parent=0 // pred_check_branch
    %15 = sbr.rel (0) target = $region13
  $region12: #{text_decoder_forward.19} parent=0 // pred_region
    _
  $region13: #{text_decoder_forward.19} parent=0 // pred_fallthru
    _
  // Predicated region
  $region14: #{text_decoder_forward.19} parent=0 // pred_check
    _
  $region15: #{text_decoder_forward.19} parent=0 // pred_check_branch
    %17 = sbr.rel (0) target = $region17
  $region16: #{text_decoder_forward.19} parent=0 // pred_region
    _
  $region17: #{text_decoder_forward.19} parent=0 // pred_fallthru
    _
  // Predicated region
  $region18: #{text_decoder_forward.19} parent=0 // pred_check
    _
  $region19: #{text_decoder_forward.19} parent=0 // pred_check_branch
    %19 = sbr.rel (0) target = $region21
  $region20: #{text_decoder_forward.19} parent=0 // pred_region
    _
  $region21: #{text_decoder_forward.19} parent=0 // pred_fallthru
    _
  %v21 = vld [vmem:[%s0] sm:$0xff]
  %v22 = vld [vmem:[%s0 + $0x8] sm:$0xff]
  %vm23 = vcmask 261120
  %v24 = vsel %vm23, %v21, 0.0
  %25 = vadd.xlane.f32.xlu0 %v24
  %v26 = vpop.xlane.xlu0 %25
  %v27 = vsel %vm23, %v22, 0.0
  %28 = vadd.xlane.f32.xlu0 %v27
  %v29 = vpop.xlane.xlu0 %28
  %v30 = vrcp.pop 32.0
  %v31 = vmul.f32 32.0, %v30
  %v32 = vsub.f32 1.0, %v31
  %v33 = vmul.f32 %v30, %v32
  %v34 = vadd.f32 %v30, %v33
  %vm35 = vweird.f32 %v30
  %v36 = vsel %vm35, %v30, %v34
  %v37 = vmul.f32 %v26, %v36
  %v38 = vmul.f32 %v29, %v36
  %v39 = vsub.f32 %v21, %v37
  %v40 = vsub.f32 %v22, %v38
  %v41 = vmul.f32 %v39, %v39
  %v42 = vmul.f32 %v40, %v40
  %v43 = vsel %vm23, %v41, 0.0
  %44 = vadd.xlane.f32.xlu0 %v43
  %v45 = vpop.xlane.xlu0 %44
  %v46 = vsel %vm23, %v42, 0.0
  %47 = vadd.xlane.f32.xlu0 %v46
  %v48 = vpop.xlane.xlu0 %47
  %v49 = vmul.f32 %v45, %v36
  %v50 = vmul.f32 %v48, %v36
  %v51 = vadd.f32 %v49, 1e-05
  %v52 = vadd.f32 %v50, 1e-05
  %v53 = vrsqrt.pop %v51
  %v54 = vmul.f32 %v53, %v51
  %v55 = vmul.f32 %v54, %v53
  %v56 = vmul.f32 0.5, %v55
  %v57 = vsub.f32 1.5, %v56
  %v58 = vmul.f32 %v53, %v57
  %vm59 = vweird.f32 %v51
  %vm60 = vweird.f32 %v53
  %vm61 = vmor %vm59, %vm60
  %v62 = vsel %vm61, %v53, %v58
  %v63 = vrsqrt.pop %v52
  %v64 = vmul.f32 %v63, %v52
  %v65 = vmul.f32 %v64, %v63
  %v66 = vmul.f32 0.5, %v65
  %v67 = vsub.f32 1.5, %v66
  %v68 = vmul.f32 %v63, %v67
  %vm69 = vweird.f32 %v52
  %vm70 = vweird.f32 %v63
  %vm71 = vmor %vm69, %vm70
  %v72 = vsel %vm71, %v63, %v68
  %v73 = vmul.f32 %v39, %v62
  %v74 = vmul.f32 %v40, %v72
  %v75 = vld [vmem:[%s3] sm:$0x1]
  %v77 = vperm.slane %v75, 0
  %v79 = vmul.f32 %v73, %v77
  %v80 = vmul.f32 %v74, %v77
  %v81 = vld [vmem:[%s4] sm:$0x1]
  %v83 = vperm.slane %v81, 0
  %v85 = vadd.f32 %v79, %v83
  %v86 = vadd.f32 %v80, %v83
  %v87 = vpack.c.bf16 %v86, %v85
  %v88 = vld [vmem:[%s1] sm:$0xf]
  %v89 = vld [vmem:[%s1 + $0x4] sm:$0xf]
  %v90 = vld [vmem:[%s1 + $0x8] sm:$0xf]
  %v91 = vld [vmem:[%s1 + $0xc] sm:$0xf]
  %v92 = vld [vmem:[%s2] sm:$0x1]
  %v94 = vperm.slane %v92, 0
  %v100 = vunpack.c.l.b16 %v88
  %v101 = vunpack.c.l.b16 %v89
  %v102 = vunpack.c.l.b16 %v90
  %v103 = vunpack.c.l.b16 %v91
  %v104 = vpack.c.b16 %v101, %v100
  %v105 = vpack.c.b16 %v103, %v102
  %v109 = vsel %vm23, %v87, 0
  %111 = vmatpush.bf16.msra.mxu0 0
  %112 = vmatpush.bf16.msra.mxu0 0
  %113 = vmatpush.bf16.msra.mxu0 0
  %114 = vmatpush.bf16.msra.mxu0 0
  %115 = vmatpush.bf16.msra.mxu0 0
  %116 = vmatpush.bf16.msra.mxu0 0
  %117 = vmatpush.bf16.msra.mxu0 %v105
  %118 = vmatpush.bf16.msra.mxu0 %v104
  %119 = vmatmul.bf16.gmra.mxu0 %v109
  %v120 = vpop.f32.mrf.mxu0
  %v121 = vadd.f32 %v94, %v120
  %v122 = vpop.f32.mrf.mxu0
  %v123 = vadd.f32 %v94, %v122
  %124 = vdwg.mxu0
  %v125 = vpack.c.bf16 %v121, %v121
  %v126 = vpack.c.bf16 %v123, %v123
  %vm127 = vcmask 781312
  %128 = vst.msk [vmem:[%s5] sm:$0xf] %vm127, %v125
  %129 = vst.msk [vmem:[%s5 + $0x4] sm:$0xf] %vm127, %v126
  // Predicated region
  $region22: #{text_decoder_forward.19} parent=0 // pred_check
    _
  $region23: #{text_decoder_forward.19} parent=0 // pred_check_branch
    %131 = sbr.rel (0) target = $region25
  $region24: #{text_decoder_forward.19} parent=0 // pred_region
    _
  $region25: #{text_decoder_forward.19} parent=0 // pred_fallthru
    _
  // Predicated region
  $region26: #{text_decoder_forward.19} parent=0 // pred_check
    _
  $region27: #{text_decoder_forward.19} parent=0 // pred_check_branch
    %133 = sbr.rel (0) target = $region29
  $region28: #{text_decoder_forward.19} parent=0 // pred_region
    _
  $region29: #{text_decoder_forward.19} parent=0 // pred_fallthru
    _

// kernel: text_decoder_forward.22
$region0: #{text_decoder_forward.22}
  #allocation0 [shape = 'u32[]', space=smem, size = 0x4, offset = 0x4, fixed_abs, tag = 'smem constant byte address 0x4 - core index']
  #allocation1 [shape = 'u32[72,128]{1,0:T(1,128)}', space=vmem, size = 0x9000, scoped, tag = 'internal scratch']
  %s0 = inlined_call_operand.vmem [shape: bf16[16,32], index: 0, kind: input, shape index: {}]
  %s1 = inlined_call_operand.vmem [shape: bf16[32,32], index: 1, kind: input, shape index: {}]
  %s2 = inlined_call_operand.vmem [shape: f32[1,32], index: 2, kind: input, shape index: {}]
  %s3 = inlined_call_operand.vmem [shape: f32[1,32], index: 3, kind: input, shape index: {}]
  %s4 = inlined_call_operand.vmem [shape: f32[1,32], index: 4, kind: input, shape index: {}]
  %s5 = inlined_call_operand.vmem [shape: bf16[16,32], index: 5, kind: output, shape index: {}]
  %s6 = sld [smem:[#allocation0]]
  $region30: #{text_decoder_forward.22} parent=0
    _
  %s8 = ssub.s32 1, %s6
  %s9 = scalar_select 0, %s8, %s6
  // Predicated region
  $region2: #{text_decoder_forward.22} parent=0 // pred_check
    _
  $region3: #{text_decoder_forward.22} parent=0 // pred_check_branch
    %11 = sbr.rel (0) target = $region5
  $region4: #{text_decoder_forward.22} parent=0 // pred_region
    _
  $region5: #{text_decoder_forward.22} parent=0 // pred_fallthru
    _
  // Predicated region
  $region6: #{text_decoder_forward.22} parent=0 // pred_check
    _
  $region7: #{text_decoder_forward.22} parent=0 // pred_check_branch
    %13 = sbr.rel (0) target = $region9
  $region8: #{text_decoder_forward.22} parent=0 // pred_region
    _
  $region9: #{text_decoder_forward.22} parent=0 // pred_fallthru
    _
  // Predicated region
  $region10: #{text_decoder_forward.22} parent=0 // pred_check
    _
  $region11: #{text_decoder_forward.22} parent=0 // pred_check_branch
    %15 = sbr.rel (0) target = $region13
  $region12: #{text_decoder_forward.22} parent=0 // pred_region
    _
  $region13: #{text_decoder_forward.22} parent=0 // pred_fallthru
    _
  // Predicated region
  $region14: #{text_decoder_forward.22} parent=0 // pred_check
    _
  $region15: #{text_decoder_forward.22} parent=0 // pred_check_branch
    %17 = sbr.rel (0) target = $region17
  $region16: #{text_decoder_forward.22} parent=0 // pred_region
    _
  $region17: #{text_decoder_forward.22} parent=0 // pred_fallthru
    _
  // Predicated region
  $region18: #{text_decoder_forward.22} parent=0 // pred_check
    _
  $region19: #{text_decoder_forward.22} parent=0 // pred_check_branch
    %19 = sbr.rel (0) target = $region21
  $region20: #{text_decoder_forward.22} parent=0 // pred_region
    _
  $region21: #{text_decoder_forward.22} parent=0 // pred_fallthru
    _
  %v21 = vld [vmem:[%s0] sm:$0xf]
  %v22 = vld [vmem:[%s0 + $0x4] sm:$0xf]
  %v23 = vunpack.c.l.bf16 %v21
  %v24 = vunpack.c.l.bf16 %v22
  %vm25 = vcmask 261120
  %v26 = vsel %vm25, %v23, 0.0
  %27 = vadd.xlane.f32.xlu0 %v26
  %v28 = vpop.xlane.xlu0 %27
  %v29 = vsel %vm25, %v24, 0.0
  %30 = vadd.xlane.f32.xlu0 %v29
  %v31 = vpop.xlane.xlu0 %30
  %v32 = vrcp.pop 32.0
  %v33 = vmul.f32 32.0, %v32
  %v34 = vsub.f32 1.0, %v33
  %v35 = vmul.f32 %v32, %v34
  %v36 = vadd.f32 %v32, %v35
  %vm37 = vweird.f32 %v32
  %v38 = vsel %vm37, %v32, %v36
  %v39 = vmul.f32 %v28, %v38
  %v40 = vmul.f32 %v31, %v38
  %v41 = vsub.f32 %v23, %v39
  %v42 = vsub.f32 %v24, %v40
  %v43 = vmul.f32 %v41, %v41
  %v44 = vmul.f32 %v42, %v42
  %v45 = vsel %vm25, %v43, 0.0
  %46 = vadd.xlane.f32.xlu0 %v45
  %v47 = vpop.xlane.xlu0 %46
  %v48 = vsel %vm25, %v44, 0.0
  %49 = vadd.xlane.f32.xlu0 %v48
  %v50 = vpop.xlane.xlu0 %49
  %v51 = vmul.f32 %v47, %v38
  %v52 = vmul.f32 %v50, %v38
  %v53 = vadd.f32 %v51, 1e-05
  %v54 = vadd.f32 %v52, 1e-05
  %v55 = vrsqrt.pop %v53
  %v56 = vmul.f32 %v55, %v53
  %v57 = vmul.f32 %v56, %v55
  %v58 = vmul.f32 0.5, %v57
  %v59 = vsub.f32 1.5, %v58
  %v60 = vmul.f32 %v55, %v59
  %vm61 = vweird.f32 %v53
  %vm62 = vweird.f32 %v55
  %vm63 = vmor %vm61, %vm62
  %v64 = vsel %vm63, %v55, %v60
  %v65 = vrsqrt.pop %v54
  %v66 = vmul.f32 %v65, %v54
  %v67 = vmul.f32 %v66, %v65
  %v68 = vmul.f32 0.5, %v67
  %v69 = vsub.f32 1.5, %v68
  %v70 = vmul.f32 %v65, %v69
  %vm71 = vweird.f32 %v54
  %vm72 = vweird.f32 %v65
  %vm73 = vmor %vm71, %vm72
  %v74 = vsel %vm73, %v65, %v70
  %v75 = vmul.f32 %v41, %v64
  %v76 = vmul.f32 %v42, %v74
  %v77 = vld [vmem:[%s3] sm:$0x1]
  %v79 = vperm.slane %v77, 0
  %v81 = vmul.f32 %v75, %v79
  %v82 = vmul.f32 %v76, %v79
  %v83 = vld [vmem:[%s4] sm:$0x1]
  %v85 = vperm.slane %v83, 0
  %v87 = vadd.f32 %v81, %v85
  %v88 = vadd.f32 %v82, %v85
  %v89 = vpack.c.bf16 %v88, %v87
  %v90 = vld [vmem:[%s1] sm:$0xf]
  %v91 = vld [vmem:[%s1 + $0x4] sm:$0xf]
  %v92 = vld [vmem:[%s1 + $0x8] sm:$0xf]
  %v93 = vld [vmem:[%s1 + $0xc] sm:$0xf]
  %v94 = vld [vmem:[%s2] sm:$0x1]
  %v96 = vperm.slane %v94, 0
  %v102 = vunpack.c.l.b16 %v90
  %v103 = vunpack.c.l.b16 %v91
  %v104 = vunpack.c.l.b16 %v92
  %v105 = vunpack.c.l.b16 %v93
  %v106 = vpack.c.b16 %v103, %v102
  %v107 = vpack.c.b16 %v105, %v104
  %v111 = vsel %vm25, %v89, 0
  %113 = vmatpush.bf16.msra.mxu0 0
  %114 = vmatpush.bf16.msra.mxu0 0
  %115 = vmatpush.bf16.msra.mxu0 0
  %116 = vmatpush.bf16.msra.mxu0 0
  %117 = vmatpush.bf16.msra.mxu0 0
  %118 = vmatpush.bf16.msra.mxu0 0
  %119 = vmatpush.bf16.msra.mxu0 %v107
  %120 = vmatpush.bf16.msra.mxu0 %v106
  %121 = vmatmul.bf16.gmra.mxu0 %v111
  %v122 = vpop.f32.mrf.mxu0
  %v123 = vadd.f32 %v96, %v122
  %v124 = vpop.f32.mrf.mxu0
  %v125 = vadd.f32 %v96, %v124
  %126 = vdwg.mxu0
  %v127 = vpack.c.bf16 %v123, %v123
  %v128 = vpack.c.bf16 %v125, %v125
  %vm129 = vcmask 257024
  %130 = vst.msk [vmem:[%s5] sm:$0xf] %vm129, %v127
  %131 = vst.msk [vmem:[%s5 + $0x4] sm:$0xf] %vm129, %v128
  // Predicated region
  $region22: #{text_decoder_forward.22} parent=0 // pred_check
    _
  $region23: #{text_decoder_forward.22} parent=0 // pred_check_branch
    %133 = sbr.rel (0) target = $region25
  $region24: #{text_decoder_forward.22} parent=0 // pred_region
    _
  $region25: #{text_decoder_forward.22} parent=0 // pred_fallthru
    _
  // Predicated region
  $region26: #{text_decoder_forward.22} parent=0 // pred_check
    _
  $region27: #{text_decoder_forward.22} parent=0 // pred_check_branch
    %135 = sbr.rel (0) target = $region29
  $region28: #{text_decoder_forward.22} parent=0 // pred_region
    _
  $region29: #{text_decoder_forward.22} parent=0 // pred_fallthru
    _

// kernel: text_decoder_forward.20
$region0: #{text_decoder_forward.20}
  #allocation0 [shape = 'u32[]', space=smem, size = 0x4, offset = 0x4, fixed_abs, tag = 'smem constant byte address 0x4 - core index']
  #allocation1 [shape = 'u32[72,128]{1,0:T(1,128)}', space=vmem, size = 0x9000, scoped, tag = 'internal scratch']
  #allocation2 [shape = 'bf16[8,32]{1,0:T(8,128)(2,1)}', space=vmem, size = 0x800, scoped, tag = 'scratch operand']
  #allocation3 [shape = 'f32[8,4]{1,0:T(8,128)}', space=vmem, size = 0x1000, scoped, tag = 'scratch operand']
  #allocation4 [shape = 'f32[8,4]{1,0:T(8,128)}', space=vmem, size = 0x1000, scoped, tag = 'scratch operand']
  #allocation5 [shape = 'f32[8,32]{1,0:T(8,128)}', space=vmem, size = 0x1000, scoped, tag = 'scratch operand']
  %s0 = inlined_call_operand.vmem [shape: bf16[2,8,32], index: 0, kind: input, shape index: {}]
  %s1 = inlined_call_operand.vmem [shape: bf16[2,8,32], index: 1, kind: input, shape index: {}]
  %s2 = inlined_call_operand.vmem [shape: bf16[2,8,32], index: 2, kind: input, shape index: {}]
  %s3 = inlined_call_operand.vmem [shape: bf16[2,8,32], index: 3, kind: output, shape index: {}]
  %s4 = sld [smem:[#allocation0]]
  $region57: #{text_decoder_forward.20} parent=0
    _
  %s6 = ssub.s32 1, %s4
  %s7 = scalar_select 0, %s6, %s4
  loop: start=0, step=1, limit=4
  $region2: #{text_decoder_forward.20} parent=0 // loop_pre_header
    _
  $region3: #{text_decoder_forward.20} parent=0 // loop_header
    %s9 = sphi 0, %s13
    %p10 = scmp.ge.s32.totalorder %s9, 4
    %s16 = sphi 0, %s35
    %s17 = sphi 0, %s31
    %s18 = sphi 0, %s27
    %s19 = sphi 0, %s16
    %s20 = sphi 0, %s17
    %s21 = sphi 0, %s18
    %s22 = sphi 0, %s19
    %s23 = sphi 0, %s20
    %s24 = sphi 0, %s21
    %s40 = sphi 0, %s42
    %s43 = sphi 0, %s40
    %s44 = sphi 0, %s43
    %s60 = sphi 0, %s44
    %s68 = sphi 0, %s70
    %s71 = sphi 0, %s68
    %s72 = sphi 0, %s71
    %s88 = sphi 0, %s72
    %s96 = sphi 0, %s98
    %s99 = sphi 0, %s96
    %s100 = sphi 0, %s99
    %s116 = sphi 0, %s100
    %s124 = sphi 0, %s126
    %s127 = sphi 0, %s124
    %s128 = sphi 0, %s127
    %s144 = sphi 0, %s128
  $region4: #{text_decoder_forward.20} parent=0 // loop_header_branch
    %12 = sbr.rel (%p10) target = $region8
  $region5: #{text_decoder_forward.20} parent=0 // loop_body
    %s14 = ssub.s32 %s9, 1
    %s15 = ssub.s32 %s9, 2
    %s25 = sadd.s32 1, %s18
    %p26 = scmp.ge.s32.totalorder %s25, 1
    %s27 = scalar_select %p26, 0, %s25
    %s28 = sadd.s32 1, %s17
    %s29 = scalar_select %p26, %s28, %s17
    %p30 = scmp.ge.s32.totalorder %s29, 1
    %s31 = scalar_select %p30, 0, %s29
    %s32 = sadd.s32 1, %s16
    %s33 = scalar_select %p30, %s32, %s16
    %p34 = scmp.ge.s32.totalorder %s33, 2
    %s35 = scalar_select %p34, 0, %s33
    %s36 = ssub.s32 %s16, %s35
    %s37 = ssub.s32 %s17, %s31
    %s38 = sor.u32 %s36, %s37
    %p39 = scmp.eq.s32.totalorder %s38, 0
    %s41 = sadd.s32 %s40, 1
    %s42 = scalar_select %p39, %s40, %s41
    %p45 = pneg %p39
    %p46 = scmp.eq.s32.totalorder %s9, 1
    %p47 = por %p45, %p46
    %p48 = scmp.ne.s32.totalorder %s40, %s43
    %p49 = scmp.eq.s32.totalorder %s9, 0
    %p50 = por %p48, %p49
    %p51 = scmp.ne.s32.totalorder %s40, %s43
    %p52 = scmp.eq.s32.totalorder %s14, 1
    %p53 = por %p51, %p52
    %p54 = scmp.ne.s32.totalorder %s43, %s44
    %p55 = scmp.eq.s32.totalorder %s14, 0
    %p56 = por %p54, %p55
    %p57 = scmp.ne.s32.totalorder %s43, %s44
    %p58 = scmp.eq.s32.totalorder %s15, 1
    %p59 = por %p57, %p58
    %p61 = scmp.ne.s32.totalorder %s44, %s60
    %p62 = scmp.eq.s32.totalorder %s15, 0
    %p63 = por %p61, %p62
    %s64 = ssub.s32 %s16, %s35
    %s65 = ssub.s32 %s18, %s27
    %s66 = sor.u32 %s64, %s65
    %p67 = scmp.eq.s32.totalorder %s66, 0
    %s69 = sadd.s32 %s68, 1
    %s70 = scalar_select %p67, %s68, %s69
    %p73 = pneg %p67
    %p74 = scmp.eq.s32.totalorder %s9, 1
    %p75 = por %p73, %p74
    %p76 = scmp.ne.s32.totalorder %s68, %s71
    %p77 = scmp.eq.s32.totalorder %s9, 0
    %p78 = por %p76, %p77
    %p79 = scmp.ne.s32.totalorder %s68, %s71
    %p80 = scmp.eq.s32.totalorder %s14, 1
    %p81 = por %p79, %p80
    %p82 = scmp.ne.s32.totalorder %s71, %s72
    %p83 = scmp.eq.s32.totalorder %s14, 0
    %p84 = por %p82, %p83
    %p85 = scmp.ne.s32.totalorder %s71, %s72
    %p86 = scmp.eq.s32.totalorder %s15, 1
    %p87 = por %p85, %p86
    %p89 = scmp.ne.s32.totalorder %s72, %s88
    %p90 = scmp.eq.s32.totalorder %s15, 0
    %p91 = por %p89, %p90
    %s92 = ssub.s32 %s16, %s35
    %s93 = ssub.s32 %s18, %s27
    %s94 = sor.u32 %s92, %s93
    %p95 = scmp.eq.s32.totalorder %s94, 0
    %s97 = sadd.s32 %s96, 1
    %s98 = scalar_select %p95, %s96, %s97
    %p101 = pneg %p95
    %p102 = scmp.eq.s32.totalorder %s9, 1
    %p103 = por %p101, %p102
    %p104 = scmp.ne.s32.totalorder %s96, %s99
    %p105 = scmp.eq.s32.totalorder %s9, 0
    %p106 = por %p104, %p105
    %p107 = scmp.ne.s32.totalorder %s96, %s99
    %p108 = scmp.eq.s32.totalorder %s14, 1
    %p109 = por %p107, %p108
    %p110 = scmp.ne.s32.totalorder %s99, %s100
    %p111 = scmp.eq.s32.totalorder %s14, 0
    %p112 = por %p110, %p111
    %p113 = scmp.ne.s32.totalorder %s99, %s100
    %p114 = scmp.eq.s32.totalorder %s15, 1
    %p115 = por %p113, %p114
    %p117 = scmp.ne.s32.totalorder %s100, %s116
    %p118 = scmp.eq.s32.totalorder %s15, 0
    %p119 = por %p117, %p118
    %s120 = ssub.s32 %s16, %s35
    %s121 = ssub.s32 %s17, %s31
    %s122 = sor.u32 %s120, %s121
    %p123 = scmp.eq.s32.totalorder %s122, 0
    %s125 = sadd.s32 %s124, 1
    %s126 = scalar_select %p123, %s124, %s125
    %p129 = pneg %p123
    %p130 = scmp.eq.s32.totalorder %s9, 1
    %p131 = por %p129, %p130
    %p132 = scmp.ne.s32.totalorder %s124, %s127
    %p133 = scmp.eq.s32.totalorder %s9, 0
    %p134 = por %p132, %p133
    %p135 = scmp.ne.s32.totalorder %s124, %s127
    %p136 = scmp.eq.s32.totalorder %s14, 1
    %p137 = por %p135, %p136
    %p138 = scmp.ne.s32.totalorder %s127, %s128
    %p139 = scmp.eq.s32.totalorder %s14, 0
    %p140 = por %p138, %p139
    %p141 = scmp.ne.s32.totalorder %s127, %s128
    %p142 = scmp.eq.s32.totalorder %s15, 1
    %p143 = por %p141, %p142
    %p145 = scmp.ne.s32.totalorder %s128, %s144
    %p146 = scmp.eq.s32.totalorder %s15, 0
    %p147 = por %p145, %p146
    %p148 = scmp.le.s32.totalorder 1, %s9
    %p149 = scmp.lt.s32.totalorder %s9, 3
    %p150 = pnand %p148, %p149
    %p151 = pneg %p150
    // Predicated region
    $region9: #{text_decoder_forward.20} parent=5 // pred_check
      _
    $region10: #{text_decoder_forward.20} parent=5 // pred_check_branch
      %153 = sbr.rel (%p150) target = $region12
    $region11: #{text_decoder_forward.20} parent=5 // pred_region
      %s154 = ssub.s32 %s9, 1
    $region12: #{text_decoder_forward.20} parent=5 // pred_fallthru
      _
    %p155 = scmp.lt.s32.totalorder %s9, 2
    // Predicated region
    $region13: #{text_decoder_forward.20} parent=5 // pred_check
      %p156 = pneg %p155
    $region14: #{text_decoder_forward.20} parent=5 // pred_check_branch
      %158 = sbr.rel (%p156) target = $region16
    $region15: #{text_decoder_forward.20} parent=5 // pred_region
      // Predicated region
      $region17: #{text_decoder_forward.20} parent=15 // pred_check
        %p159 = pneg %p50
      $region18: #{text_decoder_forward.20} parent=15 // pred_check_branch
        %161 = sbr.rel (%p159) target = $region20
      $region19: #{text_decoder_forward.20} parent=15 // pred_region
        %p162 = scmp.lt.s32.totalorder %s16, 1
        %s163 = scalar_select %p162, %s16, 1
        %p164 = scmp.lt.s32.totalorder %s17, 0
        %s165 = scalar_select %p164, %s17, 0
        %s166 = sadd.s32 %s165, %s163
        %s167 = smul.addr %s166, 4
        %s168 = scalar_lea.vmem %s0, %s167
      $region20: #{text_decoder_forward.20} parent=15 // pred_fallthru
        _
      // Predicated region
      $region21: #{text_decoder_forward.20} parent=15 // pred_check
        %p169 = pneg %p78
      $region22: #{text_decoder_forward.20} parent=15 // pred_check_branch
        %171 = sbr.rel (%p169) target = $region24
      $region23: #{text_decoder_forward.20} parent=15 // pred_region
        %p172 = scmp.lt.s32.totalorder %s16, 1
        %s173 = scalar_select %p172, %s16, 1
        %p174 = scmp.lt.s32.totalorder %s18, 0
        %s175 = scalar_select %p174, %s18, 0
        %s176 = sadd.s32 %s175, %s173
        %s177 = smul.addr %s176, 4
        %s178 = scalar_lea.vmem %s1, %s177
      $region24: #{text_decoder_forward.20} parent=15 // pred_fallthru
        _
      // Predicated region
      $region25: #{text_decoder_forward.20} parent=15 // pred_check
        %p179 = pneg %p106
      $region26: #{text_decoder_forward.20} parent=15 // pred_check_branch
        %181 = sbr.rel (%p179) target = $region28
      $region27: #{text_decoder_forward.20} parent=15 // pred_region
        %p182 = scmp.lt.s32.totalorder %s16, 1
        %s183 = scalar_select %p182, %s16, 1
        %p184 = scmp.lt.s32.totalorder %s18, 0
        %s185 = scalar_select %p184, %s18, 0
        %s186 = sadd.s32 %s185, %s183
        %s187 = smul.addr %s186, 4
        %s188 = scalar_lea.vmem %s2, %s187
      $region28: #{text_decoder_forward.20} parent=15 // pred_fallthru
        _
    $region16: #{text_decoder_forward.20} parent=5 // pred_fallthru
      _
    %p189 = scmp.le.s32.totalorder 1, %s9
    %p190 = scmp.lt.s32.totalorder %s9, 3
    %p191 = pnand %p189, %p190
    %p192 = pneg %p191
    // Predicated region
    $region29: #{text_decoder_forward.20} parent=5 // pred_check
      _
    $region30: #{text_decoder_forward.20} parent=5 // pred_check_branch
      %194 = sbr.rel (%p191) target = $region32
    $region31: #{text_decoder_forward.20} parent=5 // pred_region
      %s195 = ssub.s32 %s9, 1
      %p196 = scmp.lt.s32.totalorder %s19, 1
      %s197 = scalar_select %p196, %s19, 1
      %p198 = scmp.lt.s32.totalorder %s20, 0
      %s199 = scalar_select %p198, %s20, 0
      %s200 = sadd.s32 %s199, %s197
      %s201 = smul.addr %s200, 4
      %s202 = scalar_lea.vmem %s0, %s201
      %p203 = pneg %p56
      %p204 = pneg %p53
      %p205 = scmp.lt.s32.totalorder %s19, 1
      %s206 = scalar_select %p205, %s19, 1
      %p207 = scmp.lt.s32.totalorder %s21, 0
      %s208 = scalar_select %p207, %s21, 0
      %s209 = sadd.s32 %s208, %s206
      %s210 = smul.addr %s209, 4
      %s211 = scalar_lea.vmem %s1, %s210
      %p212 = pneg %p84
      %p213 = pneg %p81
      %p214 = scmp.lt.s32.totalorder %s19, 1
      %s215 = scalar_select %p214, %s19, 1
      %p216 = scmp.lt.s32.totalorder %s21, 0
      %s217 = scalar_select %p216, %s21, 0
      %s218 = sadd.s32 %s217, %s215
      %s219 = smul.addr %s218, 4
      %s220 = scalar_lea.vmem %s2, %s219
      %p221 = pneg %p112
      %p222 = pneg %p109
      %p223 = pneg %p140
      %p224 = pneg %p137
      %p225 = scmp.lt.s32.totalorder %s19, 1
      %s226 = scalar_select %p225, %s19, 1
      %p227 = scmp.lt.s32.totalorder %s20, 0
      %s228 = scalar_select %p227, %s20, 0
      %s229 = sadd.s32 %s228, %s226
      %s230 = smul.addr %s229, 4
      %s231 = scalar_lea.vmem %s3, %s230
      %p232 = scmp.lt.s32.totalorder %s19, 1
      %s233 = scalar_select %p232, %s19, 1
      %p234 = scmp.lt.s32.totalorder %s20, 0
      %s235 = scalar_select %p234, %s20, 0
      %s236 = sadd.s32 %s235, %s233
      %s237 = smul.addr %s236, 4
      %s238 = scalar_lea.vmem %s0, %s237
      %p239 = scmp.lt.s32.totalorder %s19, 1
      %s240 = scalar_select %p239, %s19, 1
      %p241 = scmp.lt.s32.totalorder %s21, 0
      %s242 = scalar_select %p241, %s21, 0
      %s243 = sadd.s32 %s242, %s240
      %s244 = smul.addr %s243, 4
      %s245 = scalar_lea.vmem %s1, %s244
      %p246 = scmp.lt.s32.totalorder %s19, 1
      %s247 = scalar_select %p246, %s19, 1
      %p248 = scmp.lt.s32.totalorder %s21, 0
      %s249 = scalar_select %p248, %s21, 0
      %s250 = sadd.s32 %s249, %s247
      %s251 = smul.addr %s250, 4
      %s252 = scalar_lea.vmem %s2, %s251
      %p253 = scmp.lt.s32.totalorder %s19, 1
      %s254 = scalar_select %p253, %s19, 1
      %p255 = scmp.lt.s32.totalorder %s20, 0
      %s256 = scalar_select %p255, %s20, 0
      %s257 = sadd.s32 %s256, %s254
      %s258 = smul.addr %s257, 4
      %s259 = scalar_lea.vmem %s3, %s258
      %p261 = scmp.eq.s32.totalorder %s21, 0
      // Predicated region
      $region33: #{text_decoder_forward.20} parent=31 // pred_check
        %p262 = pneg %p261
      $region34: #{text_decoder_forward.20} parent=31 // pred_check_branch
        %264 = sbr.rel (%p262) target = $region36
      $region35: #{text_decoder_forward.20} parent=31 // pred_region
        %v265 = vld [vmem:[%s238] sm:$0xf]
        %v266 = vunpack.c.l.bf16 %v265
        %v267 = vmul.f32 %v266, 0.35355338
        %v268 = vpack.c.bf16 %v267, %v267
        %vm269 = vcmask 257024
        %270 = vst.msk [vmem:[#allocation2] sm:$0xf] %vm269, %v268
        %vm271 = vcmask 31744
        %272 = vst.msk [vmem:[#allocation3] sm:$0xff] %vm271, -inf
        %273 = vst.msk [vmem:[#allocation4] sm:$0xff] %vm271, 0.0
        %vm274 = vcmask 261120
        %275 = vst.msk [vmem:[#allocation5] sm:$0xff] %vm274, 0.0
      $region36: #{text_decoder_forward.20} parent=31 // pred_fallthru
        _
      %s276 = smul.u32 %s21, 8
      %s277 = smul.u32 %s20, 8
      %s278 = sadd.s32 %s277, 7
      %p279 = scmp.le.s32.totalorder %s276, %s278
      // Predicated region
      $region37: #{text_decoder_forward.20} parent=31 // pred_check
        %p280 = pneg %p279
      $region38: #{text_decoder_forward.20} parent=31 // pred_check_branch
        %282 = sbr.rel (%p280) target = $region40
      $region39: #{text_decoder_forward.20} parent=31 // pred_region
        %v283 = vld [vmem:[#allocation2] sm:$0xf]
        %v284 = vld [vmem:[%s245] sm:$0xf]
        %v285 = vld [vmem:[%s252] sm:$0xf]
        %v286 = vlaneseq
        %v287 = vand.u32 %v286, 127
        %v288 = vstv %s276
        %v289 = vadd.s32 %v288, %v287
        %vm290 = vcmp.ge.s32.totalorder %v289, 8
        %v291 = vlaneseq
        %v292 = vshrl.u32 %v291, 7
        %v293 = vstv %s277
        %v294 = vadd.s32 %v293, %v292
        %vm295 = vcmp.gt.s32.totalorder %v289, %v294
        %vm296 = vmor %vm290, %vm295
        %vm297 = vcmask 64512
        %v299 = vsel %vm297, %v283, 0
        %v302 = vsel %vm297, %v284, 0
        %304 = vmatpush.bf16.xpose.msra.mxu0 0
        %305 = vmatpush.bf16.xpose.msra.mxu0 0
        %306 = vmatpush.bf16.xpose.msra.mxu0 0
        %307 = vmatpush.bf16.xpose.msra.mxu0 0
        %308 = vmatpush.bf16.xpose.msra.mxu0 0
        %309 = vmatpush.bf16.xpose.msra.mxu0 0
        %310 = vmatpush.bf16.xpose.msra.mxu0 0
        %311 = vmatpush.bf16.xpose.msra.mxu0 %v302
        %312 = vmatmul.bf16.gmra.mxu0 %v299
        %v313 = vpop.f32.mrf.mxu0
        %v314 = vadd.f32 0.0, %v313
        %v315 = vpop.f32.mrf.mxu0
        %316 = vdwg.mxu0
        %v317 = vsel %vm296, -1e+30, %v314
        %v318 = vld [vmem:[#allocation3] sm:$0xff]
        %v319 = vsel %vm297, %v317, -inf
        %320 = vmax.xlane.f32.xlu0 %v319
        %v321 = vpop.xlane.xlu0 %320
        %v322 = vmax.f32 %v318, %v321
        %v323 = vsub.f32 %v318, %v322
        %v324 = vmul.f32 %v323, 1.442695
        %v325 = vpow.pop %v324
        %327 = vset.pattern.permute.xlu0 0
        %328 = vperm.xlu0 %327, %v322
        %v329 = vpop.permute.xlu0 %328
        %v331 = vsub.f32 %v317, %v329
        %v332 = vmul.f32 %v331, 1.442695
        %v333 = vpow.pop %v332
        %v334 = vld [vmem:[#allocation4] sm:$0xff]
        %v335 = vmul.f32 %v325, %v334
        %v336 = vsel %vm297, %v333, 0.0
        %337 = vadd.xlane.f32.xlu0 %v336
        %v338 = vpop.xlane.xlu0 %337
        %v339 = vadd.f32 %v335, %v338
        %vm340 = vcmask 7168
        %341 = vst.msk [vmem:[#allocation4] sm:$0xff] %vm340, %v339
        %v342 = vld [vmem:[#allocation5] sm:$0xff]
        %344 = vset.pattern.permute.xlu0 0
        %345 = vperm.xlu0 %344, %v325
        %v346 = vpop.permute.xlu0 %345
        %v348 = vmul.f32 %v346, %v342
        %v349 = vpack.c.bf16 %v333, %v333
        %v351 = vsel %vm297, %v349, 0
        %vm353 = vcmask 1043456
        %v355 = vsel %vm353, %v285, 0
        %357 = vmatpush.bf16.msra.mxu0 0
        %358 = vmatpush.bf16.msra.mxu0 0
        %359 = vmatpush.bf16.msra.mxu0 0
        %360 = vmatpush.bf16.msra.mxu0 0
        %361 = vmatpush.bf16.msra.mxu0 0
        %362 = vmatpush.bf16.msra.mxu0 0
        %363 = vmatpush.bf16.msra.mxu0 0
        %364 = vmatpush.bf16.msra.mxu0 %v355
        %365 = vmatmul.bf16.gmra.mxu0 %v351
        %v366 = vpop.f32.mrf.mxu0
        %v367 = vadd.f32 0.0, %v366
        %v368 = vpop.f32.mrf.mxu0
        %369 = vdwg.mxu0
        %v370 = vadd.f32 %v348, %v367
        %371 = vst.msk [vmem:[#allocation5] sm:$0xff] %vm297, %v370
        %372 = vst.msk [vmem:[#allocation3] sm:$0xff] %vm340, %v322
        %v374 = vunpack.c.l.b16 %v283
        %v375 = vpack.c.b16 %v374, %v374
        %376 = vrot.lane.b32.xlu0 %v375, 120
        %v377 = vpop.permute.xlu0 %376
        %v379 = vunpack.c.l.b16 %v284
        %v380 = vpack.c.b16 %v379, %v379
        %381 = vrot.lane.b32.xlu0 %v380, 120
        %v382 = vpop.permute.xlu0 %381
        %v384 = vsel %vm297, %v377, 0
        %v387 = vsel %vm297, %v382, 0
        %389 = vmatpush.bf16.xpose.msra.mxu0 0
        %390 = vmatpush.bf16.xpose.msra.mxu0 0
        %391 = vmatpush.bf16.xpose.msra.mxu0 0
        %392 = vmatpush.bf16.xpose.msra.mxu0 0
        %393 = vmatpush.bf16.xpose.msra.mxu0 0
        %394 = vmatpush.bf16.xpose.msra.mxu0 0
        %395 = vmatpush.bf16.xpose.msra.mxu0 0
        %396 = vmatpush.bf16.xpose.msra.mxu0 %v387
        %397 = vmatmul.bf16.gmra.mxu0 %v384
        %v398 = vpop.f32.mrf.mxu0
        %v399 = vadd.f32 0.0, %v398
        %v400 = vpop.f32.mrf.mxu0
        %401 = vdwg.mxu0
        %v402 = vsel %vm296, -1e+30, %v399
        %v403 = vld [vmem:[#allocation3] sm:$0xff]
        %v404 = vsel %vm297, %v402, -inf
        %405 = vmax.xlane.f32.xlu0 %v404
        %v406 = vpop.xlane.xlu0 %405
        %v407 = vmax.f32 %v403, %v406
        %v408 = vsub.f32 %v403, %v407
        %v409 = vmul.f32 %v408, 1.442695
        %v410 = vpow.pop %v409
        %412 = vset.pattern.permute.xlu0 1
        %413 = vperm.xlu0 %412, %v407
        %v414 = vpop.permute.xlu0 %413
        %v416 = vsub.f32 %v402, %v414
        %v417 = vmul.f32 %v416, 1.442695
        %v418 = vpow.pop %v417
        %v419 = vld [vmem:[#allocation4] sm:$0xff]
        %v420 = vmul.f32 %v410, %v419
        %v421 = vsel %vm297, %v418, 0.0
        %422 = vadd.xlane.f32.xlu0 %v421
        %v423 = vpop.xlane.xlu0 %422
        %v424 = vadd.f32 %v420, %v423
        %vm425 = vcmask 15368
        %426 = vst.msk [vmem:[#allocation4] sm:$0xff] %vm425, %v424
        %v427 = vld [vmem:[#allocation5] sm:$0xff]
        %429 = vset.pattern.permute.xlu0 1
        %430 = vperm.xlu0 %429, %v410
        %v431 = vpop.permute.xlu0 %430
        %v433 = vmul.f32 %v431, %v427
        %v434 = vpack.c.bf16 %v418, %v418
        %v436 = vunpack.c.l.b16 %v285
        %v437 = vpack.c.b16 %v436, %v436
        %438 = vrot.lane.b32.xlu0 %v437, 120
        %v439 = vpop.permute.xlu0 %438
        %v441 = vsel %vm297, %v434, 0
        %v444 = vsel %vm353, %v439, 0
        %446 = vmatpush.bf16.msra.mxu0 0
        %447 = vmatpush.bf16.msra.mxu0 0
        %448 = vmatpush.bf16.msra.mxu0 0
        %449 = vmatpush.bf16.msra.mxu0 0
        %450 = vmatpush.bf16.msra.mxu0 0
        %451 = vmatpush.bf16.msra.mxu0 0
        %452 = vmatpush.bf16.msra.mxu0 0
        %453 = vmatpush.bf16.msra.mxu0 %v444
        %454 = vmatmul.bf16.gmra.mxu0 %v441
        %v455 = vpop.f32.mrf.mxu0
        %v456 = vadd.f32 0.0, %v455
        %v457 = vpop.f32.mrf.mxu0
        %458 = vdwg.mxu0
        %460 = vrot.lane.b32.xlu0 %v456, 8
        %v461 = vpop.permute.xlu0 %460
        %v463 = vadd.f32 %v433, %v461
        %vm464 = vcmask 130112
        %465 = vst.msk [vmem:[#allocation5] sm:$0xff] %vm464, %v463
        %466 = vst.msk [vmem:[#allocation3] sm:$0xff] %vm425, %v407
        %467 = vrot.lane.b32.xlu0 %v375, 112
        %v468 = vpop.permute.xlu0 %467
        %469 = vrot.lane.b32.xlu0 %v380, 112
        %v470 = vpop.permute.xlu0 %469
        %v472 = vsel %vm297, %v468, 0
        %v475 = vsel %vm297, %v470, 0
        %477 = vmatpush.bf16.xpose.msra.mxu0 0
        %478 = vmatpush.bf16.xpose.msra.mxu0 0
        %479 = vmatpush.bf16.xpose.msra.mxu0 0
        %480 = vmatpush.bf16.xpose.msra.mxu0 0
        %481 = vmatpush.bf16.xpose.msra.mxu0 0
        %482 = vmatpush.bf16.xpose.msra.mxu0 0
        %483 = vmatpush.bf16.xpose.msra.mxu0 0
        %484 = vmatpush.bf16.xpose.msra.mxu0 %v475
        %485 = vmatmul.bf16.gmra.mxu0 %v472
        %v486 = vpop.f32.mrf.mxu0
        %v487 = vadd.f32 0.0, %v486
        %v488 = vpop.f32.mrf.mxu0
        %489 = vdwg.mxu0
        %v490 = vsel %vm296, -1e+30, %v487
        %v491 = vld [vmem:[#allocation3] sm:$0xff]
        %v492 = vsel %vm297, %v490, -inf
        %493 = vmax.xlane.f32.xlu0 %v492
        %v494 = vpop.xlane.xlu0 %493
        %v495 = vmax.f32 %v491, %v494
        %v496 = vsub.f32 %v491, %v495
        %v497 = vmul.f32 %v496, 1.442695
        %v498 = vpow.pop %v497
        %500 = vset.pattern.permute.xlu0 2
        %501 = vperm.xlu0 %500, %v495
        %v502 = vpop.permute.xlu0 %501
        %v504 = vsub.f32 %v490, %v502
        %v505 = vmul.f32 %v504, 1.442695
        %v506 = vpow.pop %v505
        %v507 = vld [vmem:[#allocation4] sm:$0xff]
        %v508 = vmul.f32 %v498, %v507
        %v509 = vsel %vm297, %v506, 0.0
        %510 = vadd.xlane.f32.xlu0 %v509
        %v511 = vpop.xlane.xlu0 %510
        %v512 = vadd.f32 %v508, %v511
        %vm513 = vcmask 23568
        %514 = vst.msk [vmem:[#allocation4] sm:$0xff] %vm513, %v512
        %v515 = vld [vmem:[#allocation5] sm:$0xff]
        %517 = vset.pattern.permute.xlu0 2
        %518 = vperm.xlu0 %517, %v498
        %v519 = vpop.permute.xlu0 %518
        %v521 = vmul.f32 %v519, %v515
        %v522 = vpack.c.bf16 %v506, %v506
        %523 = vrot.lane.b32.xlu0 %v437, 112
        %v524 = vpop.permute.xlu0 %523
        %v526 = vsel %vm297, %v522, 0
        %v529 = vsel %vm353, %v524, 0
        %531 = vmatpush.bf16.msra.mxu0 0
        %532 = vmatpush.bf16.msra.mxu0 0
        %533 = vmatpush.bf16.msra.mxu0 0
        %534 = vmatpush.bf16.msra.mxu0 0
        %535 = vmatpush.bf16.msra.mxu0 0
        %536 = vmatpush.bf16.msra.mxu0 0
        %537 = vmatpush.bf16.msra.mxu0 0
        %538 = vmatpush.bf16.msra.mxu0 %v529
        %539 = vmatmul.bf16.gmra.mxu0 %v526
        %v540 = vpop.f32.mrf.mxu0
        %v541 = vadd.f32 0.0, %v540
        %v542 = vpop.f32.mrf.mxu0
        %543 = vdwg.mxu0
        %545 = vrot.lane.b32.xlu0 %v541, 16
        %v546 = vpop.permute.xlu0 %545
        %v548 = vadd.f32 %v521, %v546
        %vm549 = vcmask 195712
        %550 = vst.msk [vmem:[#allocation5] sm:$0xff] %vm549, %v548
        %551 = vst.msk [vmem:[#allocation3] sm:$0xff] %vm513, %v495
        %552 = vrot.lane.b32.xlu0 %v375, 104
        %v553 = vpop.permute.xlu0 %552
        %554 = vrot.lane.b32.xlu0 %v380, 104
        %v555 = vpop.permute.xlu0 %554
        %v557 = vsel %vm297, %v553, 0
        %v560 = vsel %vm297, %v555, 0
        %562 = vmatpush.bf16.xpose.msra.mxu0 0
        %563 = vmatpush.bf16.xpose.msra.mxu0 0
        %564 = vmatpush.bf16.xpose.msra.mxu0 0
        %565 = vmatpush.bf16.xpose.msra.mxu0 0
        %566 = vmatpush.bf16.xpose.msra.mxu0 0
        %567 = vmatpush.bf16.xpose.msra.mxu0 0
        %568 = vmatpush.bf16.xpose.msra.mxu0 0
        %569 = vmatpush.bf16.xpose.msra.mxu0 %v560
        %570 = vmatmul.bf16.gmra.mxu0 %v557
        %v571 = vpop.f32.mrf.mxu0
        %v572 = vadd.f32 0.0, %v571
        %v573 = vpop.f32.mrf.mxu0
        %574 = vdwg.mxu0
        %v575 = vsel %vm296, -1e+30, %v572
        %v576 = vld [vmem:[#allocation3] sm:$0xff]
        %v577 = vsel %vm297, %v575, -inf
        %578 = vmax.xlane.f32.xlu0 %v577
        %v579 = vpop.xlane.xlu0 %578
        %v580 = vmax.f32 %v576, %v579
        %v581 = vsub.f32 %v576, %v580
        %v582 = vmul.f32 %v581, 1.442695
        %v583 = vpow.pop %v582
        %585 = vset.pattern.permute.xlu0 3
        %586 = vperm.xlu0 %585, %v580
        %v587 = vpop.permute.xlu0 %586
        %v589 = vsub.f32 %v575, %v587
        %v590 = vmul.f32 %v589, 1.442695
        %v591 = vpow.pop %v590
        %v592 = vld [vmem:[#allocation4] sm:$0xff]
        %v593 = vmul.f32 %v583, %v592
        %v594 = vsel %vm297, %v591, 0.0
        %595 = vadd.xlane.f32.xlu0 %v594
        %v596 = vpop.xlane.xlu0 %595
        %v597 = vadd.f32 %v593, %v596
        %vm598 = vcmask 31768
        %599 = vst.msk [vmem:[#allocation4] sm:$0xff] %vm598, %v597
        %v600 = vld [vmem:[#allocation5] sm:$0xff]
        %602 = vset.pattern.permute.xlu0 3
        %603 = vperm.xlu0 %602, %v583
        %v604 = vpop.permute.xlu0 %603
        %v606 = vmul.f32 %v604, %v600
        %v607 = vpack.c.bf16 %v591, %v591
        %608 = vrot.lane.b32.xlu0 %v437, 104
        %v609 = vpop.permute.xlu0 %608
        %v611 = vsel %vm297, %v607, 0
        %v614 = vsel %vm353, %v609, 0
        %616 = vmatpush.bf16.msra.mxu0 0
        %617 = vmatpush.bf16.msra.mxu0 0
        %618 = vmatpush.bf16.msra.mxu0 0
        %619 = vmatpush.bf16.msra.mxu0 0
        %620 = vmatpush.bf16.msra.mxu0 0
        %621 = vmatpush.bf16.msra.mxu0 0
        %622 = vmatpush.bf16.msra.mxu0 0
        %623 = vmatpush.bf16.msra.mxu0 %v614
        %624 = vmatmul.bf16.gmra.mxu0 %v611
        %v625 = vpop.f32.mrf.mxu0
        %v626 = vadd.f32 0.0, %v625
        %v627 = vpop.f32.mrf.mxu0
        %628 = vdwg.mxu0
        %630 = vrot.lane.b32.xlu0 %v626, 24
        %v631 = vpop.permute.xlu0 %630
        %v633 = vadd.f32 %v606, %v631
        %vm634 = vcmask 261312
        %635 = vst.msk [vmem:[#allocation5] sm:$0xff] %vm634, %v633
        %636 = vst.msk [vmem:[#allocation3] sm:$0xff] %vm598, %v580
      $region40: #{text_decoder_forward.20} parent=31 // pred_fallthru
        _
      // Predicated region
      $region41: #{text_decoder_forward.20} parent=31 // pred_check
        %p637 = pneg %p261
      $region42: #{text_decoder_forward.20} parent=31 // pred_check_branch
        %639 = sbr.rel (%p637) target = $region44
      $region43: #{text_decoder_forward.20} parent=31 // pred_region
        %v640 = vld [vmem:[#allocation4] sm:$0xff]
        %v641 = vrcp.pop %v640
        %v642 = vld [vmem:[#allocation5] sm:$0xff]
        %644 = vset.pattern.permute.xlu0 0
        %645 = vperm.xlu0 %644, %v641
        %v646 = vpop.permute.xlu0 %645
        %v648 = vmul.f32 %v642, %v646
        %649 = vset.pattern.permute.xlu0 1
        %650 = vperm.xlu0 %649, %v641
        %v651 = vpop.permute.xlu0 %650
        %v653 = vmul.f32 %v642, %v651
        %654 = vset.pattern.permute.xlu0 2
        %655 = vperm.xlu0 %654, %v641
        %v656 = vpop.permute.xlu0 %655
        %v658 = vmul.f32 %v642, %v656
        %659 = vset.pattern.permute.xlu0 3
        %660 = vperm.xlu0 %659, %v641
        %v661 = vpop.permute.xlu0 %660
        %v663 = vmul.f32 %v642, %v661
        %vm664 = vcmask 64512
        %v665 = vsel %vm664, %v648, %v653
        %vm666 = vcmask 130048
        %v667 = vsel %vm666, %v665, %v658
        %vm668 = vcmask 195584
        %v669 = vsel %vm668, %v667, %v663
        %v670 = vpack.c.bf16 %v669, %v669
        %vm671 = vcmask 257024
        %672 = vst.msk [vmem:[%s259] sm:$0xf] %vm671, %v670
      $region44: #{text_decoder_forward.20} parent=31 // pred_fallthru
        _
      %p673 = scmp.lt.s32.totalorder %s19, 1
      %s674 = scalar_select %p673, %s19, 1
      %p675 = scmp.lt.s32.totalorder %s20, 0
      %s676 = scalar_select %p675, %s20, 0
      %s677 = sadd.s32 %s676, %s674
      %s678 = smul.addr %s677, 4
      %s679 = scalar_lea.vmem %s3, %s678
      // Predicated region
      $region45: #{text_decoder_forward.20} parent=31 // pred_check
        %p680 = pneg %p137
      $region46: #{text_decoder_forward.20} parent=31 // pred_check_branch
        %682 = sbr.rel (%p680) target = $region48
      $region47: #{text_decoder_forward.20} parent=31 // pred_region
        _
      $region48: #{text_decoder_forward.20} parent=31 // pred_fallthru
        _
    $region32: #{text_decoder_forward.20} parent=5 // pred_fallthru
      _
    %p683 = scmp.le.s32.totalorder 2, %s9
    // Predicated region
    $region49: #{text_decoder_forward.20} parent=5 // pred_check
      %p684 = pneg %p683
    $region50: #{text_decoder_forward.20} parent=5 // pred_check_branch
      %686 = sbr.rel (%p684) target = $region52
    $region51: #{text_decoder_forward.20} parent=5 // pred_region
      %s687 = ssub.s32 %s9, 2
      // Predicated region
      $region53: #{text_decoder_forward.20} parent=51 // pred_check
        %p688 = pneg %p143
      $region54: #{text_decoder_forward.20} parent=51 // pred_check_branch
        %690 = sbr.rel (%p688) target = $region56
      $region55: #{text_decoder_forward.20} parent=51 // pred_region
        %p691 = scmp.lt.s32.totalorder %s22, 1
        %s692 = scalar_select %p691, %s22, 1
        %p693 = scmp.lt.s32.totalorder %s23, 0
        %s694 = scalar_select %p693, %s23, 0
        %s695 = sadd.s32 %s694, %s692
        %s696 = smul.addr %s695, 4
        %s697 = scalar_lea.vmem %s3, %s696
      $region56: #{text_decoder_forward.20} parent=51 // pred_fallthru
        _
    $region52: #{text_decoder_forward.20} parent=5 // pred_fallthru
      _
  $region6: #{text_decoder_forward.20} parent=0 // loop_footer
    %s13 = sadd.s32 1, %s9
  $region7: #{text_decoder_forward.20} parent=0 // loop_footer_branch
    %8 = sbr.rel target = $region3
  $region8: #{text_decoder_forward.20} parent=0 // loop_exit
    _

// kernel: text_decoder_forward.23
$region0: #{text_decoder_forward.23}
  #allocation0 [shape = 'u32[]', space=smem, size = 0x4, offset = 0x4, fixed_abs, tag = 'smem constant byte address 0x4 - core index']
  #allocation1 [shape = 'u32[72,128]{1,0:T(1,128)}', space=vmem, size = 0x9000, scoped, tag = 'internal scratch']
  %s0 = inlined_call_operand.vmem [shape: f32[32,32], index: 0, kind: input, shape index: {}]
  %s1 = inlined_call_operand.vmem [shape: bf16[32,64], index: 1, kind: input, shape index: {}]
  %s2 = inlined_call_operand.vmem [shape: f32[1,64], index: 2, kind: input, shape index: {}]
  %s3 = inlined_call_operand.vmem [shape: bf16[32,64], index: 3, kind: output, shape index: {}]
  %s4 = sld [smem:[#allocation0]]
  $region22: #{text_decoder_forward.23} parent=0
    _
  %s6 = ssub.s32 1, %s4
  %s7 = scalar_select 0, %s6, %s4
  // Predicated region
  $region2: #{text_decoder_forward.23} parent=0 // pred_check
    _
  $region3: #{text_decoder_forward.23} parent=0 // pred_check_branch
    %9 = sbr.rel (0) target = $region5
  $region4: #{text_decoder_forward.23} parent=0 // pred_region
    _
  $region5: #{text_decoder_forward.23} parent=0 // pred_fallthru
    _
  // Predicated region
  $region6: #{text_decoder_forward.23} parent=0 // pred_check
    _
  $region7: #{text_decoder_forward.23} parent=0 // pred_check_branch
    %11 = sbr.rel (0) target = $region9
  $region8: #{text_decoder_forward.23} parent=0 // pred_region
    _
  $region9: #{text_decoder_forward.23} parent=0 // pred_fallthru
    _
  // Predicated region
  $region10: #{text_decoder_forward.23} parent=0 // pred_check
    _
  $region11: #{text_decoder_forward.23} parent=0 // pred_check_branch
    %13 = sbr.rel (0) target = $region13
  $region12: #{text_decoder_forward.23} parent=0 // pred_region
    _
  $region13: #{text_decoder_forward.23} parent=0 // pred_fallthru
    _
  %v15 = vld [vmem:[%s0] sm:$0xff]
  %v16 = vld [vmem:[%s0 + $0x8] sm:$0xff]
  %v17 = vld [vmem:[%s0 + $0x10] sm:$0xff]
  %v18 = vld [vmem:[%s0 + $0x18] sm:$0xff]
  %v19 = vpack.c.bf16 %v16, %v15
  %v20 = vpack.c.bf16 %v18, %v17
  %v21 = vld [vmem:[%s1] sm:$0xf]
  %v22 = vld [vmem:[%s1 + $0x4] sm:$0xf]
  %v23 = vld [vmem:[%s1 + $0x8] sm:$0xf]
  %v24 = vld [vmem:[%s1 + $0xc] sm:$0xf]
  %v25 = vld [vmem:[%s2] sm:$0x1]
  %v27 = vperm.slane %v25, 0
  %v33 = vunpack.c.l.b16 %v21
  %v34 = vunpack.c.l.b16 %v22
  %v35 = vunpack.c.l.b16 %v23
  %v36 = vunpack.c.l.b16 %v24
  %v37 = vpack.c.b16 %v34, %v33
  %v38 = vpack.c.b16 %v36, %v35
  %vm41 = vcmask 261120
  %v43 = vsel %vm41, %v19, 0
  %v46 = vsel %vm41, %v20, 0
  %48 = vmatpush.bf16.msra.mxu0 0
  %49 = vmatpush.bf16.msra.mxu0 0
  %50 = vmatpush.bf16.msra.mxu0 0
  %51 = vmatpush.bf16.msra.mxu0 0
  %52 = vmatpush.bf16.msra.mxu0 0
  %53 = vmatpush.bf16.msra.mxu0 0
  %54 = vmatpush.bf16.msra.mxu0 %v38
  %55 = vmatpush.bf16.msra.mxu0 %v37
  %56 = vmatmul.bf16.gmra.mxu0 %v43
  %v57 = vpop.f32.mrf.mxu0
  %v58 = vadd.f32 %v27, %v57
  %v59 = vpop.f32.mrf.mxu0
  %v60 = vadd.f32 %v27, %v59
  %61 = vmatmul.bf16.gmra.mxu0 %v46
  %v62 = vpop.f32.mrf.mxu0
  %v63 = vadd.f32 %v27, %v62
  %v64 = vpop.f32.mrf.mxu0
  %v65 = vadd.f32 %v27, %v64
  %66 = vdwg.mxu0
  %v67 = vpack.c.bf16 %v58, %v58
  %v68 = vpack.c.bf16 %v60, %v60
  %v69 = vpack.c.bf16 %v63, %v63
  %v70 = vpack.c.bf16 %v65, %v65
  %vm71 = vcmask 519168
  %72 = vst.msk [vmem:[%s3] sm:$0xf] %vm71, %v67
  %73 = vst.msk [vmem:[%s3 + $0x4] sm:$0xf] %vm71, %v68
  %74 = vst.msk [vmem:[%s3 + $0x8] sm:$0xf] %vm71, %v69
  %75 = vst.msk [vmem:[%s3 + $0xc] sm:$0xf] %vm71, %v70
  // Predicated region
  $region14: #{text_decoder_forward.23} parent=0 // pred_check
    _
  $region15: #{text_decoder_forward.23} parent=0 // pred_check_branch
    %77 = sbr.rel (0) target = $region17
  $region16: #{text_decoder_forward.23} parent=0 // pred_region
    _
  $region17: #{text_decoder_forward.23} parent=0 // pred_fallthru
    _
  // Predicated region
  $region18: #{text_decoder_forward.23} parent=0 // pred_check
    _
  $region19: #{text_decoder_forward.23} parent=0 // pred_check_branch
    %79 = sbr.rel (0) target = $region21
  $region20: #{text_decoder_forward.23} parent=0 // pred_region
    _
  $region21: #{text_decoder_forward.23} parent=0 // pred_fallthru
    _

// kernel: text_decoder_forward.25
$region0: #{text_decoder_forward.25}
  #allocation0 [shape = 'u32[]', space=smem, size = 0x4, offset = 0x4, fixed_abs, tag = 'smem constant byte address 0x4 - core index']
  #allocation1 [shape = 'u32[72,128]{1,0:T(1,128)}', space=vmem, size = 0x9000, scoped, tag = 'internal scratch']
  %s0 = inlined_call_operand.vmem [shape: bf16[16,32], index: 0, kind: input, shape index: {}]
  %s1 = inlined_call_operand.vmem [shape: bf16[32,32], index: 1, kind: input, shape index: {}]
  %s2 = inlined_call_operand.vmem [shape: f32[1,32], index: 2, kind: input, shape index: {}]
  %s3 = inlined_call_operand.vmem [shape: bf16[16,32], index: 3, kind: input, shape index: {}]
  %s4 = inlined_call_operand.vmem [shape: bf16[16,32], index: 4, kind: output, shape index: {}]
  %s5 = sld [smem:[#allocation0]]
  $region26: #{text_decoder_forward.25} parent=0
    _
  %s7 = ssub.s32 1, %s5
  %s8 = scalar_select 0, %s7, %s5
  // Predicated region
  $region2: #{text_decoder_forward.25} parent=0 // pred_check
    _
  $region3: #{text_decoder_forward.25} parent=0 // pred_check_branch
    %10 = sbr.rel (0) target = $region5
  $region4: #{text_decoder_forward.25} parent=0 // pred_region
    _
  $region5: #{text_decoder_forward.25} parent=0 // pred_fallthru
    _
  // Predicated region
  $region6: #{text_decoder_forward.25} parent=0 // pred_check
    _
  $region7: #{text_decoder_forward.25} parent=0 // pred_check_branch
    %12 = sbr.rel (0) target = $region9
  $region8: #{text_decoder_forward.25} parent=0 // pred_region
    _
  $region9: #{text_decoder_forward.25} parent=0 // pred_fallthru
    _
  // Predicated region
  $region10: #{text_decoder_forward.25} parent=0 // pred_check
    _
  $region11: #{text_decoder_forward.25} parent=0 // pred_check_branch
    %14 = sbr.rel (0) target = $region13
  $region12: #{text_decoder_forward.25} parent=0 // pred_region
    _
  $region13: #{text_decoder_forward.25} parent=0 // pred_fallthru
    _
  // Predicated region
  $region14: #{text_decoder_forward.25} parent=0 // pred_check
    _
  $region15: #{text_decoder_forward.25} parent=0 // pred_check_branch
    %16 = sbr.rel (0) target = $region17
  $region16: #{text_decoder_forward.25} parent=0 // pred_region
    _
  $region17: #{text_decoder_forward.25} parent=0 // pred_fallthru
    _
  %v18 = vld [vmem:[%s0] sm:$0xf]
  %v19 = vld [vmem:[%s0 + $0x4] sm:$0xf]
  %v20 = vld [vmem:[%s1] sm:$0xf]
  %v21 = vld [vmem:[%s1 + $0x4] sm:$0xf]
  %v22 = vld [vmem:[%s1 + $0x8] sm:$0xf]
  %v23 = vld [vmem:[%s1 + $0xc] sm:$0xf]
  %v24 = vld [vmem:[%s2] sm:$0x1]
  %v26 = vperm.slane %v24, 0
  %v30 = vunpack.c.l.b16 %v18
  %v31 = vunpack.c.l.b16 %v19
  %v32 = vpack.c.b16 %v31, %v30
  %v37 = vunpack.c.l.b16 %v20
  %v38 = vunpack.c.l.b16 %v21
  %v39 = vunpack.c.l.b16 %v22
  %v40 = vunpack.c.l.b16 %v23
  %v41 = vpack.c.b16 %v38, %v37
  %v42 = vpack.c.b16 %v40, %v39
  %vm45 = vcmask 261120
  %v47 = vsel %vm45, %v32, 0
  %49 = vmatpush.bf16.msra.mxu0 0
  %50 = vmatpush.bf16.msra.mxu0 0
  %51 = vmatpush.bf16.msra.mxu0 0
  %52 = vmatpush.bf16.msra.mxu0 0
  %53 = vmatpush.bf16.msra.mxu0 0
  %54 = vmatpush.bf16.msra.mxu0 0
  %55 = vmatpush.bf16.msra.mxu0 %v42
  %56 = vmatpush.bf16.msra.mxu0 %v41
  %57 = vmatmul.bf16.gmra.mxu0 %v47
  %v58 = vpop.f32.mrf.mxu0
  %v59 = vadd.f32 %v26, %v58
  %v60 = vpop.f32.mrf.mxu0
  %v61 = vadd.f32 %v26, %v60
  %62 = vdwg.mxu0
  %v63 = vld [vmem:[%s3] sm:$0xf]
  %v64 = vld [vmem:[%s3 + $0x4] sm:$0xf]
  %v65 = vunpack.c.l.bf16 %v63
  %v66 = vunpack.c.l.bf16 %v64
  %v67 = vadd.f32 %v59, %v65
  %v68 = vadd.f32 %v61, %v66
  %v69 = vpack.c.bf16 %v67, %v67
  %v70 = vpack.c.bf16 %v68, %v68
  %vm71 = vcmask 257024
  %72 = vst.msk [vmem:[%s4] sm:$0xf] %vm71, %v69
  %73 = vst.msk [vmem:[%s4 + $0x4] sm:$0xf] %vm71, %v70
  // Predicated region
  $region18: #{text_decoder_forward.25} parent=0 // pred_check
    _
  $region19: #{text_decoder_forward.25} parent=0 // pred_check_branch
    %75 = sbr.rel (0) target = $region21
  $region20: #{text_decoder_forward.25} parent=0 // pred_region
    _
  $region21: #{text_decoder_forward.25} parent=0 // pred_fallthru
    _
  // Predicated region
  $region22: #{text_decoder_forward.25} parent=0 // pred_check
    _
  $region23: #{text_decoder_forward.25} parent=0 // pred_check_branch
    %77 = sbr.rel (0) target = $region25
  $region24: #{text_decoder_forward.25} parent=0 // pred_region
    _
  $region25: #{text_decoder_forward.25} parent=0 // pred_fallthru
    _

// kernel: text_decoder_forward.26
$region0: #{text_decoder_forward.26}
  #allocation0 [shape = 'u32[]', space=smem, size = 0x4, offset = 0x4, fixed_abs, tag = 'smem constant byte address 0x4 - core index']
  #allocation1 [shape = 'u32[72,128]{1,0:T(1,128)}', space=vmem, size = 0x9000, scoped, tag = 'internal scratch']
  %s0 = inlined_call_operand.vmem [shape: bf16[16,32], index: 0, kind: input, shape index: {}]
  %s1 = inlined_call_operand.vmem [shape: bf16[32,128], index: 1, kind: input, shape index: {}]
  %s2 = inlined_call_operand.vmem [shape: f32[1,128], index: 2, kind: input, shape index: {}]
  %s3 = inlined_call_operand.vmem [shape: f32[1,32], index: 3, kind: input, shape index: {}]
  %s4 = inlined_call_operand.vmem [shape: f32[1,32], index: 4, kind: input, shape index: {}]
  %s5 = inlined_call_operand.vmem [shape: bf16[16,128], index: 5, kind: output, shape index: {}]
  %s6 = sld [smem:[#allocation0]]
  $region30: #{text_decoder_forward.26} parent=0
    _
  %s8 = ssub.s32 1, %s6
  %s9 = scalar_select 0, %s8, %s6
  // Predicated region
  $region2: #{text_decoder_forward.26} parent=0 // pred_check
    _
  $region3: #{text_decoder_forward.26} parent=0 // pred_check_branch
    %11 = sbr.rel (0) target = $region5
  $region4: #{text_decoder_forward.26} parent=0 // pred_region
    _
  $region5: #{text_decoder_forward.26} parent=0 // pred_fallthru
    _
  // Predicated region
  $region6: #{text_decoder_forward.26} parent=0 // pred_check
    _
  $region7: #{text_decoder_forward.26} parent=0 // pred_check_branch
    %13 = sbr.rel (0) target = $region9
  $region8: #{text_decoder_forward.26} parent=0 // pred_region
    _
  $region9: #{text_decoder_forward.26} parent=0 // pred_fallthru
    _
  // Predicated region
  $region10: #{text_decoder_forward.26} parent=0 // pred_check
    _
  $region11: #{text_decoder_forward.26} parent=0 // pred_check_branch
    %15 = sbr.rel (0) target = $region13
  $region12: #{text_decoder_forward.26} parent=0 // pred_region
    _
  $region13: #{text_decoder_forward.26} parent=0 // pred_fallthru
    _
  // Predicated region
  $region14: #{text_decoder_forward.26} parent=0 // pred_check
    _
  $region15: #{text_decoder_forward.26} parent=0 // pred_check_branch
    %17 = sbr.rel (0) target = $region17
  $region16: #{text_decoder_forward.26} parent=0 // pred_region
    _
  $region17: #{text_decoder_forward.26} parent=0 // pred_fallthru
    _
  // Predicated region
  $region18: #{text_decoder_forward.26} parent=0 // pred_check
    _
  $region19: #{text_decoder_forward.26} parent=0 // pred_check_branch
    %19 = sbr.rel (0) target = $region21
  $region20: #{text_decoder_forward.26} parent=0 // pred_region
    _
  $region21: #{text_decoder_forward.26} parent=0 // pred_fallthru
    _
  %v21 = vld [vmem:[%s0] sm:$0xf]
  %v22 = vld [vmem:[%s0 + $0x4] sm:$0xf]
  %v23 = vunpack.c.l.bf16 %v21
  %v24 = vunpack.c.l.bf16 %v22
  %vm25 = vcmask 261120
  %v26 = vsel %vm25, %v23, 0.0
  %27 = vadd.xlane.f32.xlu0 %v26
  %v28 = vpop.xlane.xlu0 %27
  %v29 = vsel %vm25, %v24, 0.0
  %30 = vadd.xlane.f32.xlu0 %v29
  %v31 = vpop.xlane.xlu0 %30
  %v32 = vrcp.pop 32.0
  %v33 = vmul.f32 32.0, %v32
  %v34 = vsub.f32 1.0, %v33
  %v35 = vmul.f32 %v32, %v34
  %v36 = vadd.f32 %v32, %v35
  %vm37 = vweird.f32 %v32
  %v38 = vsel %vm37, %v32, %v36
  %v39 = vmul.f32 %v28, %v38
  %v40 = vmul.f32 %v31, %v38
  %v41 = vsub.f32 %v23, %v39
  %v42 = vsub.f32 %v24, %v40
  %v43 = vmul.f32 %v41, %v41
  %v44 = vmul.f32 %v42, %v42
  %v45 = vsel %vm25, %v43, 0.0
  %46 = vadd.xlane.f32.xlu0 %v45
  %v47 = vpop.xlane.xlu0 %46
  %v48 = vsel %vm25, %v44, 0.0
  %49 = vadd.xlane.f32.xlu0 %v48
  %v50 = vpop.xlane.xlu0 %49
  %v51 = vmul.f32 %v47, %v38
  %v52 = vmul.f32 %v50, %v38
  %v53 = vadd.f32 %v51, 1e-05
  %v54 = vadd.f32 %v52, 1e-05
  %v55 = vrsqrt.pop %v53
  %v56 = vmul.f32 %v55, %v53
  %v57 = vmul.f32 %v56, %v55
  %v58 = vmul.f32 0.5, %v57
  %v59 = vsub.f32 1.5, %v58
  %v60 = vmul.f32 %v55, %v59
  %vm61 = vweird.f32 %v53
  %vm62 = vweird.f32 %v55
  %vm63 = vmor %vm61, %vm62
  %v64 = vsel %vm63, %v55, %v60
  %v65 = vrsqrt.pop %v54
  %v66 = vmul.f32 %v65, %v54
  %v67 = vmul.f32 %v66, %v65
  %v68 = vmul.f32 0.5, %v67
  %v69 = vsub.f32 1.5, %v68
  %v70 = vmul.f32 %v65, %v69
  %vm71 = vweird.f32 %v54
  %vm72 = vweird.f32 %v65
  %vm73 = vmor %vm71, %vm72
  %v74 = vsel %vm73, %v65, %v70
  %v75 = vmul.f32 %v41, %v64
  %v76 = vmul.f32 %v42, %v74
  %v77 = vld [vmem:[%s3] sm:$0x1]
  %v79 = vperm.slane %v77, 0
  %v81 = vmul.f32 %v75, %v79
  %v82 = vmul.f32 %v76, %v79
  %v83 = vld [vmem:[%s4] sm:$0x1]
  %v85 = vperm.slane %v83, 0
  %v87 = vadd.f32 %v81, %v85
  %v88 = vadd.f32 %v82, %v85
  %v89 = vpack.c.bf16 %v88, %v87
  %v90 = vld [vmem:[%s1] sm:$0xf]
  %v91 = vld [vmem:[%s1 + $0x4] sm:$0xf]
  %v92 = vld [vmem:[%s1 + $0x8] sm:$0xf]
  %v93 = vld [vmem:[%s1 + $0xc] sm:$0xf]
  %v94 = vld [vmem:[%s2] sm:$0x1]
  %v96 = vperm.slane %v94, 0
  %v102 = vunpack.c.l.b16 %v90
  %v103 = vunpack.c.l.b16 %v91
  %v104 = vunpack.c.l.b16 %v92
  %v105 = vunpack.c.l.b16 %v93
  %v106 = vpack.c.b16 %v103, %v102
  %v107 = vpack.c.b16 %v105, %v104
  %v111 = vsel %vm25, %v89, 0
  %113 = vmatpush.bf16.msra.mxu0 0
  %114 = vmatpush.bf16.msra.mxu0 0
  %115 = vmatpush.bf16.msra.mxu0 0
  %116 = vmatpush.bf16.msra.mxu0 0
  %117 = vmatpush.bf16.msra.mxu0 0
  %118 = vmatpush.bf16.msra.mxu0 0
  %119 = vmatpush.bf16.msra.mxu0 %v107
  %120 = vmatpush.bf16.msra.mxu0 %v106
  %121 = vmatmul.bf16.gmra.mxu0 %v111
  %v122 = vpop.f32.mrf.mxu0
  %v123 = vadd.f32 %v96, %v122
  %v124 = vpop.f32.mrf.mxu0
  %v125 = vadd.f32 %v96, %v124
  %126 = vdwg.mxu0
  %v127 = vmul.f32 %v123, 0.5
  %v128 = vmul.f32 %v125, 0.5
  %v129 = vmul.f32 %v123, 0.70710677
  %v130 = vmul.f32 %v125, 0.70710677
  %v131 = vmul.f32 %v129, %v129
  %v132 = vmin.f32 16.0, %v131
  %v133 = vmul.f32 %v132, 2.1237322e-06
  %v134 = vadd.f32 %v133, 0.00028619796
  %v135 = vmul.f32 %v132, %v134
  %v136 = vadd.f32 %v135, 0.0036580483
  %v137 = vmul.f32 %v132, %v136
  %v138 = vadd.f32 %v137, 0.05243302
  %v139 = vmul.f32 %v132, %v138
  %v140 = vadd.f32 %v139, 0.18741608
  %v141 = vmul.f32 %v132, %v140
  %v142 = vadd.f32 %v141, 1.1283791
  %v143 = vmul.f32 %v129, %v142
  %v144 = vmul.f32 %v132, 3.8918573e-05
  %v145 = vadd.f32 %v144, 0.001143296
  %v146 = vmul.f32 %v132, %v145
  %v147 = vadd.f32 %v146, 0.014752088
  %v148 = vmul.f32 %v132, %v147
  %v149 = vadd.f32 %v148, 0.112945676
  %v150 = vmul.f32 %v132, %v149
  %v151 = vadd.f32 %v150, 0.4994258
  %v152 = vmul.f32 %v132, %v151
  %v153 = vadd.f32 %v152, 1.0
  %v154 = vrcp.pop %v153
  %v155 = vmul.f32 %v153, %v154
  %v156 = vsub.f32 1.0, %v155
  %v157 = vmul.f32 %v154, %v156
  %v158 = vadd.f32 %v154, %v157
  %vm159 = vweird.f32 %v153
  %vm160 = vweird.f32 %v154
  %vm161 = vmor %vm159, %vm160
  %v162 = vsel %vm161, %v154, %v158
  %v163 = vand.u32 2147483647, %v153
  %vm164 = vcmp.eq.f32.partialorder %v163, 8.507059e+37
  %v165 = vand.u32 %v153, 2147483648
  %v166 = vor.u32 1.1754944e-38, %v165
  %v167 = vsel %vm164, %v166, %v162
  %v168 = vmul.f32 %v143, %v167
  %v169 = vmin.f32 %v168, 1.0
  %v170 = vmax.f32 %v169, -1.0
  %v171 = vmul.f32 %v130, %v130
  %v172 = vmin.f32 16.0, %v171
  %v173 = vmul.f32 %v172, 2.1237322e-06
  %v174 = vadd.f32 %v173, 0.00028619796
  %v175 = vmul.f32 %v172, %v174
  %v176 = vadd.f32 %v175, 0.0036580483
  %v177 = vmul.f32 %v172, %v176
  %v178 = vadd.f32 %v177, 0.05243302
  %v179 = vmul.f32 %v172, %v178
  %v180 = vadd.f32 %v179, 0.18741608
  %v181 = vmul.f32 %v172, %v180
  %v182 = vadd.f32 %v181, 1.1283791
  %v183 = vmul.f32 %v130, %v182
  %v184 = vmul.f32 %v172, 3.8918573e-05
  %v185 = vadd.f32 %v184, 0.001143296
  %v186 = vmul.f32 %v172, %v185
  %v187 = vadd.f32 %v186, 0.014752088
  %v188 = vmul.f32 %v172, %v187
  %v189 = vadd.f32 %v188, 0.112945676
  %v190 = vmul.f32 %v172, %v189
  %v191 = vadd.f32 %v190, 0.4994258
  %v192 = vmul.f32 %v172, %v191
  %v193 = vadd.f32 %v192, 1.0
  %v194 = vrcp.pop %v193
  %v195 = vmul.f32 %v193, %v194
  %v196 = vsub.f32 1.0, %v195
  %v197 = vmul.f32 %v194, %v196
  %v198 = vadd.f32 %v194, %v197
  %vm199 = vweird.f32 %v193
  %vm200 = vweird.f32 %v194
  %vm201 = vmor %vm199, %vm200
  %v202 = vsel %vm201, %v194, %v198
  %v203 = vand.u32 2147483647, %v193
  %vm204 = vcmp.eq.f32.partialorder %v203, 8.507059e+37
  %v205 = vand.u32 %v193, 2147483648
  %v206 = vor.u32 1.1754944e-38, %v205
  %v207 = vsel %vm204, %v206, %v202
  %v208 = vmul.f32 %v183, %v207
  %v209 = vmin.f32 %v208, 1.0
  %v210 = vmax.f32 %v209, -1.0
  %v211 = vadd.f32 %v170, 1.0
  %v212 = vadd.f32 %v210, 1.0
  %v213 = vmul.f32 %v127, %v211
  %v214 = vmul.f32 %v128, %v212
  %v215 = vpack.c.bf16 %v213, %v213
  %v216 = vpack.c.bf16 %v214, %v214
  %217 = vst [vmem:[%s5] sm:$0xf] %v215
  %218 = vst [vmem:[%s5 + $0x4] sm:$0xf] %v216
  // Predicated region
  $region22: #{text_decoder_forward.26} parent=0 // pred_check
    _
  $region23: #{text_decoder_forward.26} parent=0 // pred_check_branch
    %220 = sbr.rel (0) target = $region25
  $region24: #{text_decoder_forward.26} parent=0 // pred_region
    _
  $region25: #{text_decoder_forward.26} parent=0 // pred_fallthru
    _
  // Predicated region
  $region26: #{text_decoder_forward.26} parent=0 // pred_check
    _
  $region27: #{text_decoder_forward.26} parent=0 // pred_check_branch
    %222 = sbr.rel (0) target = $region29
  $region28: #{text_decoder_forward.26} parent=0 // pred_region
    _
  $region29: #{text_decoder_forward.26} parent=0 // pred_fallthru
    _

// kernel: text_decoder_forward.27
$region0: #{text_decoder_forward.27}
  #allocation0 [shape = 'u32[]', space=smem, size = 0x4, offset = 0x4, fixed_abs, tag = 'smem constant byte address 0x4 - core index']
  #allocation1 [shape = 'u32[72,128]{1,0:T(1,128)}', space=vmem, size = 0x9000, scoped, tag = 'internal scratch']
  %s0 = inlined_call_operand.vmem [shape: bf16[16,128], index: 0, kind: input, shape index: {}]
  %s1 = inlined_call_operand.vmem [shape: bf16[128,32], index: 1, kind: input, shape index: {}]
  %s2 = inlined_call_operand.vmem [shape: f32[1,32], index: 2, kind: input, shape index: {}]
  %s3 = inlined_call_operand.vmem [shape: bf16[16,32], index: 3, kind: input, shape index: {}]
  %s4 = inlined_call_operand.vmem [shape: bf16[16,32], index: 4, kind: output, shape index: {}]
  %s5 = sld [smem:[#allocation0]]
  $region26: #{text_decoder_forward.27} parent=0
    _
  %s7 = ssub.s32 1, %s5
  %s8 = scalar_select 0, %s7, %s5
  // Predicated region
  $region2: #{text_decoder_forward.27} parent=0 // pred_check
    _
  $region3: #{text_decoder_forward.27} parent=0 // pred_check_branch
    %10 = sbr.rel (0) target = $region5
  $region4: #{text_decoder_forward.27} parent=0 // pred_region
    _
  $region5: #{text_decoder_forward.27} parent=0 // pred_fallthru
    _
  // Predicated region
  $region6: #{text_decoder_forward.27} parent=0 // pred_check
    _
  $region7: #{text_decoder_forward.27} parent=0 // pred_check_branch
    %12 = sbr.rel (0) target = $region9
  $region8: #{text_decoder_forward.27} parent=0 // pred_region
    _
  $region9: #{text_decoder_forward.27} parent=0 // pred_fallthru
    _
  // Predicated region
  $region10: #{text_decoder_forward.27} parent=0 // pred_check
    _
  $region11: #{text_decoder_forward.27} parent=0 // pred_check_branch
    %14 = sbr.rel (0) target = $region13
  $region12: #{text_decoder_forward.27} parent=0 // pred_region
    _
  $region13: #{text_decoder_forward.27} parent=0 // pred_fallthru
    _
  // Predicated region
  $region14: #{text_decoder_forward.27} parent=0 // pred_check
    _
  $region15: #{text_decoder_forward.27} parent=0 // pred_check_branch
    %16 = sbr.rel (0) target = $region17
  $region16: #{text_decoder_forward.27} parent=0 // pred_region
    _
  $region17: #{text_decoder_forward.27} parent=0 // pred_fallthru
    _
  %v17 = vld [vmem:[%s0] sm:$0xf]
  %v18 = vld [vmem:[%s0 + $0x4] sm:$0xf]
  %v19 = vld [vmem:[%s1] sm:$0xf]
  %v20 = vld [vmem:[%s1 + $0x4] sm:$0xf]
  %v21 = vld [vmem:[%s1 + $0x8] sm:$0xf]
  %v22 = vld [vmem:[%s1 + $0xc] sm:$0xf]
  %v23 = vld [vmem:[%s1 + $0x10] sm:$0xf]
  %v24 = vld [vmem:[%s1 + $0x14] sm:$0xf]
  %v25 = vld [vmem:[%s1 + $0x18] sm:$0xf]
  %v26 = vld [vmem:[%s1 + $0x1c] sm:$0xf]
  %v27 = vld [vmem:[%s1 + $0x20] sm:$0xf]
  %v28 = vld [vmem:[%s1 + $0x24] sm:$0xf]
  %v29 = vld [vmem:[%s1 + $0x28] sm:$0xf]
  %v30 = vld [vmem:[%s1 + $0x2c] sm:$0xf]
  %v31 = vld [vmem:[%s1 + $0x30] sm:$0xf]
  %v32 = vld [vmem:[%s1 + $0x34] sm:$0xf]
  %v33 = vld [vmem:[%s1 + $0x38] sm:$0xf]
  %v34 = vld [vmem:[%s1 + $0x3c] sm:$0xf]
  %v35 = vld [vmem:[%s2] sm:$0x1]
  %v37 = vperm.slane %v35, 0
  %v41 = vunpack.c.l.b16 %v17
  %v42 = vunpack.c.l.b16 %v18
  %v43 = vpack.c.b16 %v42, %v41
  %v61 = vunpack.c.l.b16 %v19
  %v62 = vunpack.c.l.b16 %v20
  %v63 = vunpack.c.l.b16 %v21
  %v64 = vunpack.c.l.b16 %v22
  %v65 = vunpack.c.l.b16 %v23
  %v66 = vunpack.c.l.b16 %v24
  %v67 = vunpack.c.l.b16 %v25
  %v68 = vunpack.c.l.b16 %v26
  %v69 = vunpack.c.l.b16 %v27
  %v70 = vunpack.c.l.b16 %v28
  %v71 = vunpack.c.l.b16 %v29
  %v72 = vunpack.c.l.b16 %v30
  %v73 = vunpack.c.l.b16 %v31
  %v74 = vunpack.c.l.b16 %v32
  %v75 = vunpack.c.l.b16 %v33
  %v76 = vunpack.c.l.b16 %v34
  %v77 = vpack.c.b16 %v62, %v61
  %v78 = vpack.c.b16 %v64, %v63
  %v79 = vpack.c.b16 %v66, %v65
  %v80 = vpack.c.b16 %v68, %v67
  %v81 = vpack.c.b16 %v70, %v69
  %v82 = vpack.c.b16 %v72, %v71
  %v83 = vpack.c.b16 %v74, %v73
  %v84 = vpack.c.b16 %v76, %v75
  %93 = vmatpush.bf16.msra.mxu0 %v84
  %94 = vmatpush.bf16.msra.mxu0 %v83
  %95 = vmatpush.bf16.msra.mxu0 %v82
  %96 = vmatpush.bf16.msra.mxu0 %v81
  %97 = vmatpush.bf16.msra.mxu0 %v80
  %98 = vmatpush.bf16.msra.mxu0 %v79
  %99 = vmatpush.bf16.msra.mxu0 %v78
  %100 = vmatpush.bf16.msra.mxu0 %v77
  %101 = vmatmul.bf16.gmra.mxu0 %v43
  %v102 = vpop.f32.mrf.mxu0
  %v103 = vadd.f32 %v37, %v102
  %v104 = vpop.f32.mrf.mxu0
  %v105 = vadd.f32 %v37, %v104
  %106 = vdwg.mxu0
  %v107 = vld [vmem:[%s3] sm:$0xf]
  %v108 = vld [vmem:[%s3 + $0x4] sm:$0xf]
  %v109 = vunpack.c.l.bf16 %v107
  %v110 = vunpack.c.l.bf16 %v108
  %v111 = vadd.f32 %v103, %v109
  %v112 = vadd.f32 %v105, %v110
  %v113 = vpack.c.bf16 %v111, %v111
  %v114 = vpack.c.bf16 %v112, %v112
  %vm115 = vcmask 257024
  %116 = vst.msk [vmem:[%s4] sm:$0xf] %vm115, %v113
  %117 = vst.msk [vmem:[%s4 + $0x4] sm:$0xf] %vm115, %v114
  // Predicated region
  $region18: #{text_decoder_forward.27} parent=0 // pred_check
    _
  $region19: #{text_decoder_forward.27} parent=0 // pred_check_branch
    %119 = sbr.rel (0) target = $region21
  $region20: #{text_decoder_forward.27} parent=0 // pred_region
    _
  $region21: #{text_decoder_forward.27} parent=0 // pred_fallthru
    _
  // Predicated region
  $region22: #{text_decoder_forward.27} parent=0 // pred_check
    _
  $region23: #{text_decoder_forward.27} parent=0 // pred_check_branch
    %121 = sbr.rel (0) target = $region25
  $region24: #{text_decoder_forward.27} parent=0 // pred_region
    _
  $region25: #{text_decoder_forward.27} parent=0 // pred_fallthru
    _

// kernel: text_decoder_forward.24
$region0: #{text_decoder_forward.24}
  #allocation0 [shape = 'u32[]', space=smem, size = 0x4, offset = 0x4, fixed_abs, tag = 'smem constant byte address 0x4 - core index']
  #allocation1 [shape = 'u32[72,128]{1,0:T(1,128)}', space=vmem, size = 0x9000, scoped, tag = 'internal scratch']
  #allocation2 [shape = 'bf16[8,32]{1,0:T(8,128)(2,1)}', space=vmem, size = 0x800, scoped, tag = 'scratch operand']
  #allocation3 [shape = 'f32[8,4]{1,0:T(8,128)}', space=vmem, size = 0x1000, scoped, tag = 'scratch operand']
  #allocation4 [shape = 'f32[8,4]{1,0:T(8,128)}', space=vmem, size = 0x1000, scoped, tag = 'scratch operand']
  #allocation5 [shape = 'f32[8,32]{1,0:T(8,128)}', space=vmem, size = 0x1000, scoped, tag = 'scratch operand']
  %s0 = inlined_call_operand.vmem [shape: bf16[2,8,32], index: 0, kind: input, shape index: {}]
  %s1 = inlined_call_operand.vmem [shape: bf16[2,16,32], index: 1, kind: input, shape index: {}]
  %s2 = inlined_call_operand.vmem [shape: bf16[2,16,32], index: 2, kind: input, shape index: {}]
  %s3 = inlined_call_operand.vmem [shape: bf16[2,8,32], index: 3, kind: output, shape index: {}]
  %s4 = sld [smem:[#allocation0]]
  $region53: #{text_decoder_forward.24} parent=0
    _
  %s6 = ssub.s32 1, %s4
  %s7 = scalar_select 0, %s6, %s4
  loop: start=0, step=1, limit=4
  $region2: #{text_decoder_forward.24} parent=0 // loop_pre_header
    _
  $region3: #{text_decoder_forward.24} parent=0 // loop_header
    %s9 = sphi 0, %s13
    %p10 = scmp.ge.s32.totalorder %s9, 4
    %s16 = sphi 0, %s35
    %s17 = sphi 0, %s31
    %s18 = sphi 0, %s27
    %s19 = sphi 0, %s16
    %s20 = sphi 0, %s17
    %s21 = sphi 0, %s18
    %s22 = sphi 0, %s19
    %s23 = sphi 0, %s20
    %s24 = sphi 0, %s21
    %s40 = sphi 0, %s42
    %s43 = sphi 0, %s40
    %s44 = sphi 0, %s43
    %s60 = sphi 0, %s44
    %s68 = sphi 0, %s70
    %s71 = sphi 0, %s68
    %s72 = sphi 0, %s71
    %s88 = sphi 0, %s72
    %s96 = sphi 0, %s98
    %s99 = sphi 0, %s96
    %s100 = sphi 0, %s99
    %s116 = sphi 0, %s100
    %s124 = sphi 0, %s126
    %s127 = sphi 0, %s124
    %s128 = sphi 0, %s127
    %s144 = sphi 0, %s128
  $region4: #{text_decoder_forward.24} parent=0 // loop_header_branch
    %12 = sbr.rel (%p10) target = $region8
  $region5: #{text_decoder_forward.24} parent=0 // loop_body
    %s14 = ssub.s32 %s9, 1
    %s15 = ssub.s32 %s9, 2
    %s25 = sadd.s32 1, %s18
    %p26 = scmp.ge.s32.totalorder %s25, 1
    %s27 = scalar_select %p26, 0, %s25
    %s28 = sadd.s32 1, %s17
    %s29 = scalar_select %p26, %s28, %s17
    %p30 = scmp.ge.s32.totalorder %s29, 1
    %s31 = scalar_select %p30, 0, %s29
    %s32 = sadd.s32 1, %s16
    %s33 = scalar_select %p30, %s32, %s16
    %p34 = scmp.ge.s32.totalorder %s33, 2
    %s35 = scalar_select %p34, 0, %s33
    %s36 = ssub.s32 %s16, %s35
    %s37 = ssub.s32 %s17, %s31
    %s38 = sor.u32 %s36, %s37
    %p39 = scmp.eq.s32.totalorder %s38, 0
    %s41 = sadd.s32 %s40, 1
    %s42 = scalar_select %p39, %s40, %s41
    %p45 = pneg %p39
    %p46 = scmp.eq.s32.totalorder %s9, 1
    %p47 = por %p45, %p46
    %p48 = scmp.ne.s32.totalorder %s40, %s43
    %p49 = scmp.eq.s32.totalorder %s9, 0
    %p50 = por %p48, %p49
    %p51 = scmp.ne.s32.totalorder %s40, %s43
    %p52 = scmp.eq.s32.totalorder %s14, 1
    %p53 = por %p51, %p52
    %p54 = scmp.ne.s32.totalorder %s43, %s44
    %p55 = scmp.eq.s32.totalorder %s14, 0
    %p56 = por %p54, %p55
    %p57 = scmp.ne.s32.totalorder %s43, %s44
    %p58 = scmp.eq.s32.totalorder %s15, 1
    %p59 = por %p57, %p58
    %p61 = scmp.ne.s32.totalorder %s44, %s60
    %p62 = scmp.eq.s32.totalorder %s15, 0
    %p63 = por %p61, %p62
    %s64 = ssub.s32 %s16, %s35
    %s65 = ssub.s32 %s18, %s27
    %s66 = sor.u32 %s64, %s65
    %p67 = scmp.eq.s32.totalorder %s66, 0
    %s69 = sadd.s32 %s68, 1
    %s70 = scalar_select %p67, %s68, %s69
    %p73 = pneg %p67
    %p74 = scmp.eq.s32.totalorder %s9, 1
    %p75 = por %p73, %p74
    %p76 = scmp.ne.s32.totalorder %s68, %s71
    %p77 = scmp.eq.s32.totalorder %s9, 0
    %p78 = por %p76, %p77
    %p79 = scmp.ne.s32.totalorder %s68, %s71
    %p80 = scmp.eq.s32.totalorder %s14, 1
    %p81 = por %p79, %p80
    %p82 = scmp.ne.s32.totalorder %s71, %s72
    %p83 = scmp.eq.s32.totalorder %s14, 0
    %p84 = por %p82, %p83
    %p85 = scmp.ne.s32.totalorder %s71, %s72
    %p86 = scmp.eq.s32.totalorder %s15, 1
    %p87 = por %p85, %p86
    %p89 = scmp.ne.s32.totalorder %s72, %s88
    %p90 = scmp.eq.s32.totalorder %s15, 0
    %p91 = por %p89, %p90
    %s92 = ssub.s32 %s16, %s35
    %s93 = ssub.s32 %s18, %s27
    %s94 = sor.u32 %s92, %s93
    %p95 = scmp.eq.s32.totalorder %s94, 0
    %s97 = sadd.s32 %s96, 1
    %s98 = scalar_select %p95, %s96, %s97
    %p101 = pneg %p95
    %p102 = scmp.eq.s32.totalorder %s9, 1
    %p103 = por %p101, %p102
    %p104 = scmp.ne.s32.totalorder %s96, %s99
    %p105 = scmp.eq.s32.totalorder %s9, 0
    %p106 = por %p104, %p105
    %p107 = scmp.ne.s32.totalorder %s96, %s99
    %p108 = scmp.eq.s32.totalorder %s14, 1
    %p109 = por %p107, %p108
    %p110 = scmp.ne.s32.totalorder %s99, %s100
    %p111 = scmp.eq.s32.totalorder %s14, 0
    %p112 = por %p110, %p111
    %p113 = scmp.ne.s32.totalorder %s99, %s100
    %p114 = scmp.eq.s32.totalorder %s15, 1
    %p115 = por %p113, %p114
    %p117 = scmp.ne.s32.totalorder %s100, %s116
    %p118 = scmp.eq.s32.totalorder %s15, 0
    %p119 = por %p117, %p118
    %s120 = ssub.s32 %s16, %s35
    %s121 = ssub.s32 %s17, %s31
    %s122 = sor.u32 %s120, %s121
    %p123 = scmp.eq.s32.totalorder %s122, 0
    %s125 = sadd.s32 %s124, 1
    %s126 = scalar_select %p123, %s124, %s125
    %p129 = pneg %p123
    %p130 = scmp.eq.s32.totalorder %s9, 1
    %p131 = por %p129, %p130
    %p132 = scmp.ne.s32.totalorder %s124, %s127
    %p133 = scmp.eq.s32.totalorder %s9, 0
    %p134 = por %p132, %p133
    %p135 = scmp.ne.s32.totalorder %s124, %s127
    %p136 = scmp.eq.s32.totalorder %s14, 1
    %p137 = por %p135, %p136
    %p138 = scmp.ne.s32.totalorder %s127, %s128
    %p139 = scmp.eq.s32.totalorder %s14, 0
    %p140 = por %p138, %p139
    %p141 = scmp.ne.s32.totalorder %s127, %s128
    %p142 = scmp.eq.s32.totalorder %s15, 1
    %p143 = por %p141, %p142
    %p145 = scmp.ne.s32.totalorder %s128, %s144
    %p146 = scmp.eq.s32.totalorder %s15, 0
    %p147 = por %p145, %p146
    %p148 = scmp.le.s32.totalorder 1, %s9
    %p149 = scmp.lt.s32.totalorder %s9, 3
    %p150 = pnand %p148, %p149
    %p151 = pneg %p150
    // Predicated region
    $region9: #{text_decoder_forward.24} parent=5 // pred_check
      _
    $region10: #{text_decoder_forward.24} parent=5 // pred_check_branch
      %153 = sbr.rel (%p150) target = $region12
    $region11: #{text_decoder_forward.24} parent=5 // pred_region
      %s154 = ssub.s32 %s9, 1
    $region12: #{text_decoder_forward.24} parent=5 // pred_fallthru
      _
    %p155 = scmp.lt.s32.totalorder %s9, 2
    // Predicated region
    $region13: #{text_decoder_forward.24} parent=5 // pred_check
      %p156 = pneg %p155
    $region14: #{text_decoder_forward.24} parent=5 // pred_check_branch
      %158 = sbr.rel (%p156) target = $region16
    $region15: #{text_decoder_forward.24} parent=5 // pred_region
      // Predicated region
      $region17: #{text_decoder_forward.24} parent=15 // pred_check
        %p159 = pneg %p50
      $region18: #{text_decoder_forward.24} parent=15 // pred_check_branch
        %161 = sbr.rel (%p159) target = $region20
      $region19: #{text_decoder_forward.24} parent=15 // pred_region
        %p162 = scmp.lt.s32.totalorder %s16, 1
        %s163 = scalar_select %p162, %s16, 1
        %p164 = scmp.lt.s32.totalorder %s17, 0
        %s165 = scalar_select %p164, %s17, 0
        %s166 = sadd.s32 %s165, %s163
        %s167 = smul.addr %s166, 4
        %s168 = scalar_lea.vmem %s0, %s167
      $region20: #{text_decoder_forward.24} parent=15 // pred_fallthru
        _
      // Predicated region
      $region21: #{text_decoder_forward.24} parent=15 // pred_check
        %p169 = pneg %p78
      $region22: #{text_decoder_forward.24} parent=15 // pred_check_branch
        %171 = sbr.rel (%p169) target = $region24
      $region23: #{text_decoder_forward.24} parent=15 // pred_region
        %s172 = smul.u32 2, %s18
        %p173 = scmp.lt.s32.totalorder %s16, 1
        %s174 = scalar_select %p173, %s16, 1
        %p175 = scmp.lt.s32.totalorder %s172, 1
        %s176 = scalar_select %p175, %s172, 1
        %s177 = smul.addr %s174, 2
        %s178 = sadd.s32 %s176, %s177
        %s179 = smul.addr %s178, 4
        %s180 = scalar_lea.vmem %s1, %s179
        %s181 = smul.u32 2, %s18
      $region24: #{text_decoder_forward.24} parent=15 // pred_fallthru
        _
      // Predicated region
      $region25: #{text_decoder_forward.24} parent=15 // pred_check
        %p182 = pneg %p106
      $region26: #{text_decoder_forward.24} parent=15 // pred_check_branch
        %184 = sbr.rel (%p182) target = $region28
      $region27: #{text_decoder_forward.24} parent=15 // pred_region
        %s185 = smul.u32 2, %s18
        %p186 = scmp.lt.s32.totalorder %s16, 1
        %s187 = scalar_select %p186, %s16, 1
        %p188 = scmp.lt.s32.totalorder %s185, 1
        %s189 = scalar_select %p188, %s185, 1
        %s190 = smul.addr %s187, 2
        %s191 = sadd.s32 %s189, %s190
        %s192 = smul.addr %s191, 4
        %s193 = scalar_lea.vmem %s2, %s192
        %s194 = smul.u32 2, %s18
      $region28: #{text_decoder_forward.24} parent=15 // pred_fallthru
        _
    $region16: #{text_decoder_forward.24} parent=5 // pred_fallthru
      _
    %p195 = scmp.le.s32.totalorder 1, %s9
    %p196 = scmp.lt.s32.totalorder %s9, 3
    %p197 = pnand %p195, %p196
    %p198 = pneg %p197
    // Predicated region
    $region29: #{text_decoder_forward.24} parent=5 // pred_check
      _
    $region30: #{text_decoder_forward.24} parent=5 // pred_check_branch
      %200 = sbr.rel (%p197) target = $region32
    $region31: #{text_decoder_forward.24} parent=5 // pred_region
      %s201 = ssub.s32 %s9, 1
      %p202 = scmp.lt.s32.totalorder %s19, 1
      %s203 = scalar_select %p202, %s19, 1
      %p204 = scmp.lt.s32.totalorder %s20, 0
      %s205 = scalar_select %p204, %s20, 0
      %s206 = sadd.s32 %s205, %s203
      %s207 = smul.addr %s206, 4
      %s208 = scalar_lea.vmem %s0, %s207
      %p209 = pneg %p56
      %p210 = pneg %p53
      %s211 = smul.u32 2, %s21
      %p212 = scmp.lt.s32.totalorder %s19, 1
      %s213 = scalar_select %p212, %s19, 1
      %p214 = scmp.lt.s32.totalorder %s211, 1
      %s215 = scalar_select %p214, %s211, 1
      %s216 = smul.addr %s213, 2
      %s217 = sadd.s32 %s215, %s216
      %s218 = smul.addr %s217, 4
      %s219 = scalar_lea.vmem %s1, %s218
      %p220 = pneg %p84
      %p221 = pneg %p81
      %s222 = smul.u32 2, %s21
      %p223 = scmp.lt.s32.totalorder %s19, 1
      %s224 = scalar_select %p223, %s19, 1
      %p225 = scmp.lt.s32.totalorder %s222, 1
      %s226 = scalar_select %p225, %s222, 1
      %s227 = smul.addr %s224, 2
      %s228 = sadd.s32 %s226, %s227
      %s229 = smul.addr %s228, 4
      %s230 = scalar_lea.vmem %s2, %s229
      %p231 = pneg %p112
      %p232 = pneg %p109
      %p233 = pneg %p140
      %p234 = pneg %p137
      %p235 = scmp.lt.s32.totalorder %s19, 1
      %s236 = scalar_select %p235, %s19, 1
      %p237 = scmp.lt.s32.totalorder %s20, 0
      %s238 = scalar_select %p237, %s20, 0
      %s239 = sadd.s32 %s238, %s236
      %s240 = smul.addr %s239, 4
      %s241 = scalar_lea.vmem %s3, %s240
      %p242 = scmp.lt.s32.totalorder %s19, 1
      %s243 = scalar_select %p242, %s19, 1
      %p244 = scmp.lt.s32.totalorder %s20, 0
      %s245 = scalar_select %p244, %s20, 0
      %s246 = sadd.s32 %s245, %s243
      %s247 = smul.addr %s246, 4
      %s248 = scalar_lea.vmem %s0, %s247
      %s249 = smul.u32 2, %s21
      %p250 = scmp.lt.s32.totalorder %s19, 1
      %s251 = scalar_select %p250, %s19, 1
      %p252 = scmp.lt.s32.totalorder %s249, 1
      %s253 = scalar_select %p252, %s249, 1
      %s254 = smul.addr %s251, 2
      %s255 = sadd.s32 %s253, %s254
      %s256 = smul.addr %s255, 4
      %s257 = scalar_lea.vmem %s1, %s256
      %s258 = smul.u32 2, %s21
      %s259 = smul.u32 2, %s21
      %p260 = scmp.lt.s32.totalorder %s19, 1
      %s261 = scalar_select %p260, %s19, 1
      %p262 = scmp.lt.s32.totalorder %s259, 1
      %s263 = scalar_select %p262, %s259, 1
      %s264 = smul.addr %s261, 2
      %s265 = sadd.s32 %s263, %s264
      %s266 = smul.addr %s265, 4
      %s267 = scalar_lea.vmem %s2, %s266
      %s268 = smul.u32 2, %s21
      %p269 = scmp.lt.s32.totalorder %s19, 1
      %s270 = scalar_select %p269, %s19, 1
      %p271 = scmp.lt.s32.totalorder %s20, 0
      %s272 = scalar_select %p271, %s20, 0
      %s273 = sadd.s32 %s272, %s270
      %s274 = smul.addr %s273, 4
      %s275 = scalar_lea.vmem %s3, %s274
      %p277 = scmp.eq.s32.totalorder %s21, 0
      // Predicated region
      $region33: #{text_decoder_forward.24} parent=31 // pred_check
        %p278 = pneg %p277
      $region34: #{text_decoder_forward.24} parent=31 // pred_check_branch
        %280 = sbr.rel (%p278) target = $region36
      $region35: #{text_decoder_forward.24} parent=31 // pred_region
        %v281 = vld [vmem:[%s248] sm:$0xf]
        %v282 = vunpack.c.l.bf16 %v281
        %v283 = vmul.f32 %v282, 0.35355338
        %v284 = vpack.c.bf16 %v283, %v283
        %vm285 = vcmask 257024
        %286 = vst.msk [vmem:[#allocation2] sm:$0xf] %vm285, %v284
        %vm287 = vcmask 31744
        %288 = vst.msk [vmem:[#allocation3] sm:$0xff] %vm287, -inf
        %289 = vst.msk [vmem:[#allocation4] sm:$0xff] %vm287, 0.0
        %vm290 = vcmask 261120
        %291 = vst.msk [vmem:[#allocation5] sm:$0xff] %vm290, 0.0
      $region36: #{text_decoder_forward.24} parent=31 // pred_fallthru
        _
      %v292 = vld [vmem:[#allocation2] sm:$0xf]
      %v293 = vld [vmem:[%s257] sm:$0xf]
      %v294 = vld [vmem:[%s257 + $0x4] sm:$0xf]
      %v295 = vld [vmem:[%s267] sm:$0xf]
      %v296 = vld [vmem:[%s267 + $0x4] sm:$0xf]
      %s297 = smul.u32 %s21, 16
      %v298 = vlaneseq
      %v299 = vand.u32 %v298, 127
      %v300 = vstv %s297
      %v301 = vadd.s32 %v300, %v299
      %vm302 = vcmp.ge.s32.totalorder %v301, 16
      %v305 = vunpack.c.l.b16 %v293
      %v306 = vunpack.c.l.b16 %v294
      %v307 = vpack.c.b16 %v306, %v305
      %vm308 = vcmask 64512
      %v310 = vsel %vm308, %v292, 0
      %v313 = vsel %vm308, %v307, 0
      %315 = vmatpush.bf16.xpose.msra.mxu0 0
      %316 = vmatpush.bf16.xpose.msra.mxu0 0
      %317 = vmatpush.bf16.xpose.msra.mxu0 0
      %318 = vmatpush.bf16.xpose.msra.mxu0 0
      %319 = vmatpush.bf16.xpose.msra.mxu0 0
      %320 = vmatpush.bf16.xpose.msra.mxu0 0
      %321 = vmatpush.bf16.xpose.msra.mxu0 0
      %322 = vmatpush.bf16.xpose.msra.mxu0 %v313
      %323 = vmatmul.bf16.gmra.mxu0 %v310
      %v324 = vpop.f32.mrf.mxu0
      %v325 = vadd.f32 0.0, %v324
      %v326 = vpop.f32.mrf.mxu0
      %327 = vdwg.mxu0
      %v328 = vsel %vm302, -1e+30, %v325
      %v329 = vld [vmem:[#allocation3] sm:$0xff]
      %vm330 = vcmask 130048
      %v331 = vsel %vm330, %v328, -inf
      %332 = vmax.xlane.f32.xlu0 %v331
      %v333 = vpop.xlane.xlu0 %332
      %v334 = vmax.f32 %v329, %v333
      %v335 = vsub.f32 %v329, %v334
      %v336 = vmul.f32 %v335, 1.442695
      %v337 = vpow.pop %v336
      %339 = vset.pattern.permute.xlu0 0
      %340 = vperm.xlu0 %339, %v334
      %v341 = vpop.permute.xlu0 %340
      %v343 = vsub.f32 %v328, %v341
      %v344 = vmul.f32 %v343, 1.442695
      %v345 = vpow.pop %v344
      %v346 = vld [vmem:[#allocation4] sm:$0xff]
      %v347 = vmul.f32 %v337, %v346
      %v348 = vsel %vm330, %v345, 0.0
      %349 = vadd.xlane.f32.xlu0 %v348
      %v350 = vpop.xlane.xlu0 %349
      %v351 = vadd.f32 %v347, %v350
      %vm352 = vcmask 7168
      %353 = vst.msk [vmem:[#allocation4] sm:$0xff] %vm352, %v351
      %v354 = vld [vmem:[#allocation5] sm:$0xff]
      %356 = vset.pattern.permute.xlu0 0
      %357 = vperm.xlu0 %356, %v337
      %v358 = vpop.permute.xlu0 %357
      %v360 = vmul.f32 %v358, %v354
      %v361 = vpack.c.bf16 %v345, %v345
      %v364 = vunpack.c.l.b16 %v295
      %v365 = vunpack.c.l.b16 %v296
      %v366 = vpack.c.b16 %v365, %v364
      %v369 = vsel %vm330, %v361, 0
      %371 = vmatpush.bf16.msra.mxu0 0
      %372 = vmatpush.bf16.msra.mxu0 0
      %373 = vmatpush.bf16.msra.mxu0 0
      %374 = vmatpush.bf16.msra.mxu0 0
      %375 = vmatpush.bf16.msra.mxu0 0
      %376 = vmatpush.bf16.msra.mxu0 0
      %377 = vmatpush.bf16.msra.mxu0 0
      %378 = vmatpush.bf16.msra.mxu0 %v366
      %379 = vmatmul.bf16.gmra.mxu0 %v369
      %v380 = vpop.f32.mrf.mxu0
      %v381 = vadd.f32 0.0, %v380
      %v382 = vpop.f32.mrf.mxu0
      %383 = vdwg.mxu0
      %v384 = vadd.f32 %v360, %v381
      %385 = vst.msk [vmem:[#allocation5] sm:$0xff] %vm308, %v384
      %386 = vst.msk [vmem:[#allocation3] sm:$0xff] %vm352, %v334
      %v388 = vunpack.c.l.b16 %v292
      %v389 = vpack.c.b16 %v388, %v388
      %390 = vrot.lane.b32.xlu0 %v389, 120
      %v391 = vpop.permute.xlu0 %390
      %392 = vrot.lane.b32.xlu0 %v307, 120
      %v393 = vpop.permute.xlu0 %392
      %v395 = vsel %vm308, %v391, 0
      %v398 = vsel %vm308, %v393, 0
      %400 = vmatpush.bf16.xpose.msra.mxu0 0
      %401 = vmatpush.bf16.xpose.msra.mxu0 0
      %402 = vmatpush.bf16.xpose.msra.mxu0 0
      %403 = vmatpush.bf16.xpose.msra.mxu0 0
      %404 = vmatpush.bf16.xpose.msra.mxu0 0
      %405 = vmatpush.bf16.xpose.msra.mxu0 0
      %406 = vmatpush.bf16.xpose.msra.mxu0 0
      %407 = vmatpush.bf16.xpose.msra.mxu0 %v398
      %408 = vmatmul.bf16.gmra.mxu0 %v395
      %v409 = vpop.f32.mrf.mxu0
      %v410 = vadd.f32 0.0, %v409
      %v411 = vpop.f32.mrf.mxu0
      %412 = vdwg.mxu0
      %v413 = vsel %vm302, -1e+30, %v410
      %v414 = vld [vmem:[#allocation3] sm:$0xff]
      %v415 = vsel %vm330, %v413, -inf
      %416 = vmax.xlane.f32.xlu0 %v415
      %v417 = vpop.xlane.xlu0 %416
      %v418 = vmax.f32 %v414, %v417
      %v419 = vsub.f32 %v414, %v418
      %v420 = vmul.f32 %v419, 1.442695
      %v421 = vpow.pop %v420
      %423 = vset.pattern.permute.xlu0 1
      %424 = vperm.xlu0 %423, %v418
      %v425 = vpop.permute.xlu0 %424
      %v427 = vsub.f32 %v413, %v425
      %v428 = vmul.f32 %v427, 1.442695
      %v429 = vpow.pop %v428
      %v430 = vld [vmem:[#allocation4] sm:$0xff]
      %v431 = vmul.f32 %v421, %v430
      %v432 = vsel %vm330, %v429, 0.0
      %433 = vadd.xlane.f32.xlu0 %v432
      %v434 = vpop.xlane.xlu0 %433
      %v435 = vadd.f32 %v431, %v434
      %vm436 = vcmask 15368
      %437 = vst.msk [vmem:[#allocation4] sm:$0xff] %vm436, %v435
      %v438 = vld [vmem:[#allocation5] sm:$0xff]
      %440 = vset.pattern.permute.xlu0 1
      %441 = vperm.xlu0 %440, %v421
      %v442 = vpop.permute.xlu0 %441
      %v444 = vmul.f32 %v442, %v438
      %v445 = vpack.c.bf16 %v429, %v429
      %446 = vrot.lane.b32.xlu0 %v366, 120
      %v447 = vpop.permute.xlu0 %446
      %v450 = vsel %vm330, %v445, 0
      %452 = vmatpush.bf16.msra.mxu0 0
      %453 = vmatpush.bf16.msra.mxu0 0
      %454 = vmatpush.bf16.msra.mxu0 0
      %455 = vmatpush.bf16.msra.mxu0 0
      %456 = vmatpush.bf16.msra.mxu0 0
      %457 = vmatpush.bf16.msra.mxu0 0
      %458 = vmatpush.bf16.msra.mxu0 0
      %459 = vmatpush.bf16.msra.mxu0 %v447
      %460 = vmatmul.bf16.gmra.mxu0 %v450
      %v461 = vpop.f32.mrf.mxu0
      %v462 = vadd.f32 0.0, %v461
      %v463 = vpop.f32.mrf.mxu0
      %464 = vdwg.mxu0
      %466 = vrot.lane.b32.xlu0 %v462, 8
      %v467 = vpop.permute.xlu0 %466
      %v469 = vadd.f32 %v444, %v467
      %vm470 = vcmask 130112
      %471 = vst.msk [vmem:[#allocation5] sm:$0xff] %vm470, %v469
      %472 = vst.msk [vmem:[#allocation3] sm:$0xff] %vm436, %v418
      %473 = vrot.lane.b32.xlu0 %v389, 112
      %v474 = vpop.permute.xlu0 %473
      %475 = vrot.lane.b32.xlu0 %v307, 112
      %v476 = vpop.permute.xlu0 %475
      %v478 = vsel %vm308, %v474, 0
      %v481 = vsel %vm308, %v476, 0
      %483 = vmatpush.bf16.xpose.msra.mxu0 0
      %484 = vmatpush.bf16.xpose.msra.mxu0 0
      %485 = vmatpush.bf16.xpose.msra.mxu0 0
      %486 = vmatpush.bf16.xpose.msra.mxu0 0
      %487 = vmatpush.bf16.xpose.msra.mxu0 0
      %488 = vmatpush.bf16.xpose.msra.mxu0 0
      %489 = vmatpush.bf16.xpose.msra.mxu0 0
      %490 = vmatpush.bf16.xpose.msra.mxu0 %v481
      %491 = vmatmul.bf16.gmra.mxu0 %v478
      %v492 = vpop.f32.mrf.mxu0
      %v493 = vadd.f32 0.0, %v492
      %v494 = vpop.f32.mrf.mxu0
      %495 = vdwg.mxu0
      %v496 = vsel %vm302, -1e+30, %v493
      %v497 = vld [vmem:[#allocation3] sm:$0xff]
      %v498 = vsel %vm330, %v496, -inf
      %499 = vmax.xlane.f32.xlu0 %v498
      %v500 = vpop.xlane.xlu0 %499
      %v501 = vmax.f32 %v497, %v500
      %v502 = vsub.f32 %v497, %v501
      %v503 = vmul.f32 %v502, 1.442695
      %v504 = vpow.pop %v503
      %506 = vset.pattern.permute.xlu0 2
      %507 = vperm.xlu0 %506, %v501
      %v508 = vpop.permute.xlu0 %507
      %v510 = vsub.f32 %v496, %v508
      %v511 = vmul.f32 %v510, 1.442695
      %v512 = vpow.pop %v511
      %v513 = vld [vmem:[#allocation4] sm:$0xff]
      %v514 = vmul.f32 %v504, %v513
      %v515 = vsel %vm330, %v512, 0.0
      %516 = vadd.xlane.f32.xlu0 %v515
      %v517 = vpop.xlane.xlu0 %516
      %v518 = vadd.f32 %v514, %v517
      %vm519 = vcmask 23568
      %520 = vst.msk [vmem:[#allocation4] sm:$0xff] %vm519, %v518
      %v521 = vld [vmem:[#allocation5] sm:$0xff]
      %523 = vset.pattern.permute.xlu0 2
      %524 = vperm.xlu0 %523, %v504
      %v525 = vpop.permute.xlu0 %524
      %v527 = vmul.f32 %v525, %v521
      %v528 = vpack.c.bf16 %v512, %v512
      %529 = vrot.lane.b32.xlu0 %v366, 112
      %v530 = vpop.permute.xlu0 %529
      %v533 = vsel %vm330, %v528, 0
      %535 = vmatpush.bf16.msra.mxu0 0
      %536 = vmatpush.bf16.msra.mxu0 0
      %537 = vmatpush.bf16.msra.mxu0 0
      %538 = vmatpush.bf16.msra.mxu0 0
      %539 = vmatpush.bf16.msra.mxu0 0
      %540 = vmatpush.bf16.msra.mxu0 0
      %541 = vmatpush.bf16.msra.mxu0 0
      %542 = vmatpush.bf16.msra.mxu0 %v530
      %543 = vmatmul.bf16.gmra.mxu0 %v533
      %v544 = vpop.f32.mrf.mxu0
      %v545 = vadd.f32 0.0, %v544
      %v546 = vpop.f32.mrf.mxu0
      %547 = vdwg.mxu0
      %549 = vrot.lane.b32.xlu0 %v545, 16
      %v550 = vpop.permute.xlu0 %549
      %v552 = vadd.f32 %v527, %v550
      %vm553 = vcmask 195712
      %554 = vst.msk [vmem:[#allocation5] sm:$0xff] %vm553, %v552
      %555 = vst.msk [vmem:[#allocation3] sm:$0xff] %vm519, %v501
      %556 = vrot.lane.b32.xlu0 %v389, 104
      %v557 = vpop.permute.xlu0 %556
      %558 = vrot.lane.b32.xlu0 %v307, 104
      %v559 = vpop.permute.xlu0 %558
      %v561 = vsel %vm308, %v557, 0
      %v564 = vsel %vm308, %v559, 0
      %566 = vmatpush.bf16.xpose.msra.mxu0 0
      %567 = vmatpush.bf16.xpose.msra.mxu0 0
      %568 = vmatpush.bf16.xpose.msra.mxu0 0
      %569 = vmatpush.bf16.xpose.msra.mxu0 0
      %570 = vmatpush.bf16.xpose.msra.mxu0 0
      %571 = vmatpush.bf16.xpose.msra.mxu0 0
      %572 = vmatpush.bf16.xpose.msra.mxu0 0
      %573 = vmatpush.bf16.xpose.msra.mxu0 %v564
      %574 = vmatmul.bf16.gmra.mxu0 %v561
      %v575 = vpop.f32.mrf.mxu0
      %v576 = vadd.f32 0.0, %v575
      %v577 = vpop.f32.mrf.mxu0
      %578 = vdwg.mxu0
      %v579 = vsel %vm302, -1e+30, %v576
      %v580 = vld [vmem:[#allocation3] sm:$0xff]
      %v581 = vsel %vm330, %v579, -inf
      %582 = vmax.xlane.f32.xlu0 %v581
      %v583 = vpop.xlane.xlu0 %582
      %v584 = vmax.f32 %v580, %v583
      %v585 = vsub.f32 %v580, %v584
      %v586 = vmul.f32 %v585, 1.442695
      %v587 = vpow.pop %v586
      %589 = vset.pattern.permute.xlu0 3
      %590 = vperm.xlu0 %589, %v584
      %v591 = vpop.permute.xlu0 %590
      %v593 = vsub.f32 %v579, %v591
      %v594 = vmul.f32 %v593, 1.442695
      %v595 = vpow.pop %v594
      %v596 = vld [vmem:[#allocation4] sm:$0xff]
      %v597 = vmul.f32 %v587, %v596
      %v598 = vsel %vm330, %v595, 0.0
      %599 = vadd.xlane.f32.xlu0 %v598
      %v600 = vpop.xlane.xlu0 %599
      %v601 = vadd.f32 %v597, %v600
      %vm602 = vcmask 31768
      %603 = vst.msk [vmem:[#allocation4] sm:$0xff] %vm602, %v601
      %v604 = vld [vmem:[#allocation5] sm:$0xff]
      %606 = vset.pattern.permute.xlu0 3
      %607 = vperm.xlu0 %606, %v587
      %v608 = vpop.permute.xlu0 %607
      %v610 = vmul.f32 %v608, %v604
      %v611 = vpack.c.bf16 %v595, %v595
      %612 = vrot.lane.b32.xlu0 %v366, 104
      %v613 = vpop.permute.xlu0 %612
      %v616 = vsel %vm330, %v611, 0
      %618 = vmatpush.bf16.msra.mxu0 0
      %619 = vmatpush.bf16.msra.mxu0 0
      %620 = vmatpush.bf16.msra.mxu0 0
      %621 = vmatpush.bf16.msra.mxu0 0
      %622 = vmatpush.bf16.msra.mxu0 0
      %623 = vmatpush.bf16.msra.mxu0 0
      %624 = vmatpush.bf16.msra.mxu0 0
      %625 = vmatpush.bf16.msra.mxu0 %v613
      %626 = vmatmul.bf16.gmra.mxu0 %v616
      %v627 = vpop.f32.mrf.mxu0
      %v628 = vadd.f32 0.0, %v627
      %v629 = vpop.f32.mrf.mxu0
      %630 = vdwg.mxu0
      %632 = vrot.lane.b32.xlu0 %v628, 24
      %v633 = vpop.permute.xlu0 %632
      %v635 = vadd.f32 %v610, %v633
      %vm636 = vcmask 261312
      %637 = vst.msk [vmem:[#allocation5] sm:$0xff] %vm636, %v635
      %638 = vst.msk [vmem:[#allocation3] sm:$0xff] %vm602, %v584
      // Predicated region
      $region37: #{text_decoder_forward.24} parent=31 // pred_check
        %p639 = pneg %p277
      $region38: #{text_decoder_forward.24} parent=31 // pred_check_branch
        %641 = sbr.rel (%p639) target = $region40
      $region39: #{text_decoder_forward.24} parent=31 // pred_region
        %v642 = vld [vmem:[#allocation4] sm:$0xff]
        %v643 = vrcp.pop %v642
        %v644 = vld [vmem:[#allocation5] sm:$0xff]
        %646 = vset.pattern.permute.xlu0 0
        %647 = vperm.xlu0 %646, %v643
        %v648 = vpop.permute.xlu0 %647
        %v650 = vmul.f32 %v644, %v648
        %651 = vset.pattern.permute.xlu0 1
        %652 = vperm.xlu0 %651, %v643
        %v653 = vpop.permute.xlu0 %652
        %v655 = vmul.f32 %v644, %v653
        %656 = vset.pattern.permute.xlu0 2
        %657 = vperm.xlu0 %656, %v643
        %v658 = vpop.permute.xlu0 %657
        %v660 = vmul.f32 %v644, %v658
        %661 = vset.pattern.permute.xlu0 3
        %662 = vperm.xlu0 %661, %v643
        %v663 = vpop.permute.xlu0 %662
        %v665 = vmul.f32 %v644, %v663
        %v666 = vsel %vm308, %v650, %v655
        %v667 = vsel %vm330, %v666, %v660
        %vm668 = vcmask 195584
        %v669 = vsel %vm668, %v667, %v665
        %v670 = vpack.c.bf16 %v669, %v669
        %vm671 = vcmask 257024
        %672 = vst.msk [vmem:[%s275] sm:$0xf] %vm671, %v670
      $region40: #{text_decoder_forward.24} parent=31 // pred_fallthru
        _
      %p673 = scmp.lt.s32.totalorder %s19, 1
      %s674 = scalar_select %p673, %s19, 1
      %p675 = scmp.lt.s32.totalorder %s20, 0
      %s676 = scalar_select %p675, %s20, 0
      %s677 = sadd.s32 %s676, %s674
      %s678 = smul.addr %s677, 4
      %s679 = scalar_lea.vmem %s3, %s678
      // Predicated region
      $region41: #{text_decoder_forward.24} parent=31 // pred_check
        %p680 = pneg %p137
      $region42: #{text_decoder_forward.24} parent=31 // pred_check_branch
        %682 = sbr.rel (%p680) target = $region44
      $region43: #{text_decoder_forward.24} parent=31 // pred_region
        _
      $region44: #{text_decoder_forward.24} parent=31 // pred_fallthru
        _
    $region32: #{text_decoder_forward.24} parent=5 // pred_fallthru
      _
    %p683 = scmp.le.s32.totalorder 2, %s9
    // Predicated region
    $region45: #{text_decoder_forward.24} parent=5 // pred_check
      %p684 = pneg %p683
    $region46: #{text_decoder_forward.24} parent=5 // pred_check_branch
      %686 = sbr.rel (%p684) target = $region48
    $region47: #{text_decoder_forward.24} parent=5 // pred_region
      %s687 = ssub.s32 %s9, 2
      // Predicated region
      $region49: #{text_decoder_forward.24} parent=47 // pred_check
        %p688 = pneg %p143
      $region50: #{text_decoder_forward.24} parent=47 // pred_check_branch
        %690 = sbr.rel (%p688) target = $region52
      $region51: #{text_decoder_forward.24} parent=47 // pred_region
        %p691 = scmp.lt.s32.totalorder %s22, 1
        %s692 = scalar_select %p691, %s22, 1
        %p693 = scmp.lt.s32.totalorder %s23, 0
        %s694 = scalar_select %p693, %s23, 0
        %s695 = sadd.s32 %s694, %s692
        %s696 = smul.addr %s695, 4
        %s697 = scalar_lea.vmem %s3, %s696
      $region52: #{text_decoder_forward.24} parent=47 // pred_fallthru
        _
    $region48: #{text_decoder_forward.24} parent=5 // pred_fallthru
      _
  $region6: #{text_decoder_forward.24} parent=0 // loop_footer
    %s13 = sadd.s32 1, %s9
  $region7: #{text_decoder_forward.24} parent=0 // loop_footer_branch
    %8 = sbr.rel target = $region3
  $region8: #{text_decoder_forward.24} parent=0 // loop_exit
    _

// kernel: text_decoder_forward.28
$region0: #{text_decoder_forward.28}
  #allocation0 [shape = 'u32[]', space=smem, size = 0x4, offset = 0x4, fixed_abs, tag = 'smem constant byte address 0x4 - core index']
  #allocation1 [shape = 'u32[72,128]{1,0:T(1,128)}', space=vmem, size = 0x9000, scoped, tag = 'internal scratch']
  %s0 = inlined_call_operand.vmem [shape: bf16[16,32], index: 0, kind: input, shape index: {}]
  %s1 = inlined_call_operand.vmem [shape: bf16[32,96], index: 1, kind: input, shape index: {}]
  %s2 = inlined_call_operand.vmem [shape: f32[1,96], index: 2, kind: input, shape index: {}]
  %s3 = inlined_call_operand.vmem [shape: f32[1,32], index: 3, kind: input, shape index: {}]
  %s4 = inlined_call_operand.vmem [shape: f32[1,32], index: 4, kind: input, shape index: {}]
  %s5 = inlined_call_operand.vmem [shape: bf16[16,96], index: 5, kind: output, shape index: {}]
  %s6 = sld [smem:[#allocation0]]
  $region30: #{text_decoder_forward.28} parent=0
    _
  %s8 = ssub.s32 1, %s6
  %s9 = scalar_select 0, %s8, %s6
  // Predicated region
  $region2: #{text_decoder_forward.28} parent=0 // pred_check
    _
  $region3: #{text_decoder_forward.28} parent=0 // pred_check_branch
    %11 = sbr.rel (0) target = $region5
  $region4: #{text_decoder_forward.28} parent=0 // pred_region
    _
  $region5: #{text_decoder_forward.28} parent=0 // pred_fallthru
    _
  // Predicated region
  $region6: #{text_decoder_forward.28} parent=0 // pred_check
    _
  $region7: #{text_decoder_forward.28} parent=0 // pred_check_branch
    %13 = sbr.rel (0) target = $region9
  $region8: #{text_decoder_forward.28} parent=0 // pred_region
    _
  $region9: #{text_decoder_forward.28} parent=0 // pred_fallthru
    _
  // Predicated region
  $region10: #{text_decoder_forward.28} parent=0 // pred_check
    _
  $region11: #{text_decoder_forward.28} parent=0 // pred_check_branch
    %15 = sbr.rel (0) target = $region13
  $region12: #{text_decoder_forward.28} parent=0 // pred_region
    _
  $region13: #{text_decoder_forward.28} parent=0 // pred_fallthru
    _
  // Predicated region
  $region14: #{text_decoder_forward.28} parent=0 // pred_check
    _
  $region15: #{text_decoder_forward.28} parent=0 // pred_check_branch
    %17 = sbr.rel (0) target = $region17
  $region16: #{text_decoder_forward.28} parent=0 // pred_region
    _
  $region17: #{text_decoder_forward.28} parent=0 // pred_fallthru
    _
  // Predicated region
  $region18: #{text_decoder_forward.28} parent=0 // pred_check
    _
  $region19: #{text_decoder_forward.28} parent=0 // pred_check_branch
    %19 = sbr.rel (0) target = $region21
  $region20: #{text_decoder_forward.28} parent=0 // pred_region
    _
  $region21: #{text_decoder_forward.28} parent=0 // pred_fallthru
    _
  %v21 = vld [vmem:[%s0] sm:$0xf]
  %v22 = vld [vmem:[%s0 + $0x4] sm:$0xf]
  %v23 = vunpack.c.l.bf16 %v21
  %v24 = vunpack.c.l.bf16 %v22
  %vm25 = vcmask 261120
  %v26 = vsel %vm25, %v23, 0.0
  %27 = vadd.xlane.f32.xlu0 %v26
  %v28 = vpop.xlane.xlu0 %27
  %v29 = vsel %vm25, %v24, 0.0
  %30 = vadd.xlane.f32.xlu0 %v29
  %v31 = vpop.xlane.xlu0 %30
  %v32 = vrcp.pop 32.0
  %v33 = vmul.f32 32.0, %v32
  %v34 = vsub.f32 1.0, %v33
  %v35 = vmul.f32 %v32, %v34
  %v36 = vadd.f32 %v32, %v35
  %vm37 = vweird.f32 %v32
  %v38 = vsel %vm37, %v32, %v36
  %v39 = vmul.f32 %v28, %v38
  %v40 = vmul.f32 %v31, %v38
  %v41 = vsub.f32 %v23, %v39
  %v42 = vsub.f32 %v24, %v40
  %v43 = vmul.f32 %v41, %v41
  %v44 = vmul.f32 %v42, %v42
  %v45 = vsel %vm25, %v43, 0.0
  %46 = vadd.xlane.f32.xlu0 %v45
  %v47 = vpop.xlane.xlu0 %46
  %v48 = vsel %vm25, %v44, 0.0
  %49 = vadd.xlane.f32.xlu0 %v48
  %v50 = vpop.xlane.xlu0 %49
  %v51 = vmul.f32 %v47, %v38
  %v52 = vmul.f32 %v50, %v38
  %v53 = vadd.f32 %v51, 1e-05
  %v54 = vadd.f32 %v52, 1e-05
  %v55 = vrsqrt.pop %v53
  %v56 = vmul.f32 %v55, %v53
  %v57 = vmul.f32 %v56, %v55
  %v58 = vmul.f32 0.5, %v57
  %v59 = vsub.f32 1.5, %v58
  %v60 = vmul.f32 %v55, %v59
  %vm61 = vweird.f32 %v53
  %vm62 = vweird.f32 %v55
  %vm63 = vmor %vm61, %vm62
  %v64 = vsel %vm63, %v55, %v60
  %v65 = vrsqrt.pop %v54
  %v66 = vmul.f32 %v65, %v54
  %v67 = vmul.f32 %v66, %v65
  %v68 = vmul.f32 0.5, %v67
  %v69 = vsub.f32 1.5, %v68
  %v70 = vmul.f32 %v65, %v69
  %vm71 = vweird.f32 %v54
  %vm72 = vweird.f32 %v65
  %vm73 = vmor %vm71, %vm72
  %v74 = vsel %vm73, %v65, %v70
  %v75 = vmul.f32 %v41, %v64
  %v76 = vmul.f32 %v42, %v74
  %v77 = vld [vmem:[%s3] sm:$0x1]
  %v79 = vperm.slane %v77, 0
  %v81 = vmul.f32 %v75, %v79
  %v82 = vmul.f32 %v76, %v79
  %v83 = vld [vmem:[%s4] sm:$0x1]
  %v85 = vperm.slane %v83, 0
  %v87 = vadd.f32 %v81, %v85
  %v88 = vadd.f32 %v82, %v85
  %v89 = vpack.c.bf16 %v88, %v87
  %v90 = vld [vmem:[%s1] sm:$0xf]
  %v91 = vld [vmem:[%s1 + $0x4] sm:$0xf]
  %v92 = vld [vmem:[%s1 + $0x8] sm:$0xf]
  %v93 = vld [vmem:[%s1 + $0xc] sm:$0xf]
  %v94 = vld [vmem:[%s2] sm:$0x1]
  %v96 = vperm.slane %v94, 0
  %v102 = vunpack.c.l.b16 %v90
  %v103 = vunpack.c.l.b16 %v91
  %v104 = vunpack.c.l.b16 %v92
  %v105 = vunpack.c.l.b16 %v93
  %v106 = vpack.c.b16 %v103, %v102
  %v107 = vpack.c.b16 %v105, %v104
  %v111 = vsel %vm25, %v89, 0
  %113 = vmatpush.bf16.msra.mxu0 0
  %114 = vmatpush.bf16.msra.mxu0 0
  %115 = vmatpush.bf16.msra.mxu0 0
  %116 = vmatpush.bf16.msra.mxu0 0
  %117 = vmatpush.bf16.msra.mxu0 0
  %118 = vmatpush.bf16.msra.mxu0 0
  %119 = vmatpush.bf16.msra.mxu0 %v107
  %120 = vmatpush.bf16.msra.mxu0 %v106
  %121 = vmatmul.bf16.gmra.mxu0 %v111
  %v122 = vpop.f32.mrf.mxu0
  %v123 = vadd.f32 %v96, %v122
  %v124 = vpop.f32.mrf.mxu0
  %v125 = vadd.f32 %v96, %v124
  %126 = vdwg.mxu0
  %v127 = vpack.c.bf16 %v123, %v123
  %v128 = vpack.c.bf16 %v125, %v125
  %vm129 = vcmask 781312
  %130 = vst.msk [vmem:[%s5] sm:$0xf] %vm129, %v127
  %131 = vst.msk [vmem:[%s5 + $0x4] sm:$0xf] %vm129, %v128
  // Predicated region
  $region22: #{text_decoder_forward.28} parent=0 // pred_check
    _
  $region23: #{text_decoder_forward.28} parent=0 // pred_check_branch
    %133 = sbr.rel (0) target = $region25
  $region24: #{text_decoder_forward.28} parent=0 // pred_region
    _
  $region25: #{text_decoder_forward.28} parent=0 // pred_fallthru
    _
  // Predicated region
  $region26: #{text_decoder_forward.28} parent=0 // pred_check
    _
  $region27: #{text_decoder_forward.28} parent=0 // pred_check_branch
    %135 = sbr.rel (0) target = $region29
  $region28: #{text_decoder_forward.28} parent=0 // pred_region
    _
  $region29: #{text_decoder_forward.28} parent=0 // pred_fallthru
    _

// kernel: text_decoder_forward.37
$region0: #{text_decoder_forward.37}
  #allocation0 [shape = 'u32[]', space=smem, size = 0x4, offset = 0x4, fixed_abs, tag = 'smem constant byte address 0x4 - core index']
  #allocation1 [shape = 'u32[72,128]{1,0:T(1,128)}', space=vmem, size = 0x9000, scoped, tag = 'internal scratch']
  %s0 = inlined_call_operand.vmem [shape: bf16[16,32], index: 0, kind: input, shape index: {}]
  %s1 = inlined_call_operand.vmem [shape: bf16[32,128], index: 1, kind: input, shape index: {}]
  %s2 = inlined_call_operand.vmem [shape: f32[1,32], index: 2, kind: input, shape index: {}]
  %s3 = inlined_call_operand.vmem [shape: f32[1,32], index: 3, kind: input, shape index: {}]
  %s4 = inlined_call_operand.hbm [shape: f32[16,128], index: 4, kind: output, shape index: {}]
  %s5 = sld [smem:[#allocation0]]
  $region26: #{text_decoder_forward.37} parent=0
    _
  %s7 = ssub.s32 1, %s5
  %s8 = scalar_select 0, %s7, %s5
  $region1: #{text_decoder_forward.37} parent=0
    #allocation2 [shape = 'u8[8192]{0}', space=vmem, size = 0x2000, scoped, tag = 'output window, operand 0, single buffered']
    #allocation3 [shape = 's32[1]{0}', space=sflag, size = 0x4, scoped, tag = 'scoped memory for text_decoder_forward.37']
    %9 = vsyncpa [#allocation3], 0
    // Predicated region
    $region2: #{text_decoder_forward.37} parent=1 // pred_check
      _
    $region3: #{text_decoder_forward.37} parent=1 // pred_check_branch
      %11 = sbr.rel (0) target = $region5
    $region4: #{text_decoder_forward.37} parent=1 // pred_region
      _
    $region5: #{text_decoder_forward.37} parent=1 // pred_fallthru
      _
    // Predicated region
    $region6: #{text_decoder_forward.37} parent=1 // pred_check
      _
    $region7: #{text_decoder_forward.37} parent=1 // pred_check_branch
      %13 = sbr.rel (0) target = $region9
    $region8: #{text_decoder_forward.37} parent=1 // pred_region
      _
    $region9: #{text_decoder_forward.37} parent=1 // pred_fallthru
      _
    // Predicated region
    $region10: #{text_decoder_forward.37} parent=1 // pred_check
      _
    $region11: #{text_decoder_forward.37} parent=1 // pred_check_branch
      %15 = sbr.rel (0) target = $region13
    $region12: #{text_decoder_forward.37} parent=1 // pred_region
      _
    $region13: #{text_decoder_forward.37} parent=1 // pred_fallthru
      _
    // Predicated region
    $region14: #{text_decoder_forward.37} parent=1 // pred_check
      _
    $region15: #{text_decoder_forward.37} parent=1 // pred_check_branch
      %17 = sbr.rel (0) target = $region17
    $region16: #{text_decoder_forward.37} parent=1 // pred_region
      _
    $region17: #{text_decoder_forward.37} parent=1 // pred_fallthru
      _
    %v19 = vld [vmem:[%s0] sm:$0xf]
    %v20 = vld [vmem:[%s0 + $0x4] sm:$0xf]
    %v21 = vunpack.c.l.bf16 %v19
    %v22 = vunpack.c.l.bf16 %v20
    %vm23 = vcmask 261120
    %v24 = vsel %vm23, %v21, 0.0
    %25 = vadd.xlane.f32.xlu0 %v24
    %v26 = vpop.xlane.xlu0 %25
    %v27 = vsel %vm23, %v22, 0.0
    %28 = vadd.xlane.f32.xlu0 %v27
    %v29 = vpop.xlane.xlu0 %28
    %v30 = vrcp.pop 32.0
    %v31 = vmul.f32 32.0, %v30
    %v32 = vsub.f32 1.0, %v31
    %v33 = vmul.f32 %v30, %v32
    %v34 = vadd.f32 %v30, %v33
    %vm35 = vweird.f32 %v30
    %v36 = vsel %vm35, %v30, %v34
    %v37 = vmul.f32 %v26, %v36
    %v38 = vmul.f32 %v29, %v36
    %v39 = vsub.f32 %v21, %v37
    %v40 = vsub.f32 %v22, %v38
    %v41 = vmul.f32 %v39, %v39
    %v42 = vmul.f32 %v40, %v40
    %v43 = vsel %vm23, %v41, 0.0
    %44 = vadd.xlane.f32.xlu0 %v43
    %v45 = vpop.xlane.xlu0 %44
    %v46 = vsel %vm23, %v42, 0.0
    %47 = vadd.xlane.f32.xlu0 %v46
    %v48 = vpop.xlane.xlu0 %47
    %v49 = vmul.f32 %v45, %v36
    %v50 = vmul.f32 %v48, %v36
    %v51 = vadd.f32 %v49, 1e-05
    %v52 = vadd.f32 %v50, 1e-05
    %v53 = vrsqrt.pop %v51
    %v54 = vmul.f32 %v53, %v51
    %v55 = vmul.f32 %v54, %v53
    %v56 = vmul.f32 0.5, %v55
    %v57 = vsub.f32 1.5, %v56
    %v58 = vmul.f32 %v53, %v57
    %vm59 = vweird.f32 %v51
    %vm60 = vweird.f32 %v53
    %vm61 = vmor %vm59, %vm60
    %v62 = vsel %vm61, %v53, %v58
    %v63 = vrsqrt.pop %v52
    %v64 = vmul.f32 %v63, %v52
    %v65 = vmul.f32 %v64, %v63
    %v66 = vmul.f32 0.5, %v65
    %v67 = vsub.f32 1.5, %v66
    %v68 = vmul.f32 %v63, %v67
    %vm69 = vweird.f32 %v52
    %vm70 = vweird.f32 %v63
    %vm71 = vmor %vm69, %vm70
    %v72 = vsel %vm71, %v63, %v68
    %v73 = vmul.f32 %v39, %v62
    %v74 = vmul.f32 %v40, %v72
    %v75 = vld [vmem:[%s2] sm:$0x1]
    %v77 = vperm.slane %v75, 0
    %v79 = vmul.f32 %v73, %v77
    %v80 = vmul.f32 %v74, %v77
    %v81 = vld [vmem:[%s3] sm:$0x1]
    %v83 = vperm.slane %v81, 0
    %v85 = vadd.f32 %v79, %v83
    %v86 = vadd.f32 %v80, %v83
    %v87 = vpack.c.bf16 %v86, %v85
    %v88 = vld [vmem:[%s1] sm:$0xf]
    %v89 = vld [vmem:[%s1 + $0x4] sm:$0xf]
    %v90 = vld [vmem:[%s1 + $0x8] sm:$0xf]
    %v91 = vld [vmem:[%s1 + $0xc] sm:$0xf]
    %v96 = vunpack.c.l.b16 %v88
    %v97 = vunpack.c.l.b16 %v89
    %v98 = vunpack.c.l.b16 %v90
    %v99 = vunpack.c.l.b16 %v91
    %v100 = vpack.c.b16 %v97, %v96
    %v101 = vpack.c.b16 %v99, %v98
    %v105 = vsel %vm23, %v87, 0
    %107 = vmatpush.bf16.msra.mxu0 0
    %108 = vmatpush.bf16.msra.mxu0 0
    %109 = vmatpush.bf16.msra.mxu0 0
    %110 = vmatpush.bf16.msra.mxu0 0
    %111 = vmatpush.bf16.msra.mxu0 0
    %112 = vmatpush.bf16.msra.mxu0 0
    %113 = vmatpush.bf16.msra.mxu0 %v101
    %114 = vmatpush.bf16.msra.mxu0 %v100
    %115 = vmatmul.bf16.gmra.mxu0 %v105
    %v116 = vpop.f32.mrf.mxu0
    %v117 = vadd.f32 0.0, %v116
    %v118 = vpop.f32.mrf.mxu0
    %v119 = vadd.f32 0.0, %v118
    %120 = vdwg.mxu0
    %121 = vst [vmem:[#allocation2] sm:$0xff] %v117
    %122 = vst [vmem:[#allocation2 + $0x8] sm:$0xff] %v119
    // Predicated region
    $region18: #{text_decoder_forward.37} parent=1 // pred_check
      _
    $region19: #{text_decoder_forward.37} parent=1 // pred_check_branch
      %124 = sbr.rel (0) target = $region21
    $region20: #{text_decoder_forward.37} parent=1 // pred_region
      %126 = vsyncadd [#allocation3], 0
      %s127 = sshll.u32 [#allocation2], 4
      %s128 = int_to_ptr.vmem [resolvable:$true] %s127
      %s129 = sshll.u32 %s4, 4
      %s130 = int_to_ptr.hbm [resolvable:$true] %s129
      %135 = dma.vmem_to_hbm [thread:$0]  %s128, 256, %s130, [#allocation3], 128, 128, 8
    $region21: #{text_decoder_forward.37} parent=1 // pred_fallthru
      _
    // Predicated region
    $region22: #{text_decoder_forward.37} parent=1 // pred_check
      _
    $region23: #{text_decoder_forward.37} parent=1 // pred_check_branch
      %137 = sbr.rel (0) target = $region25
    $region24: #{text_decoder_forward.37} parent=1 // pred_region
      %139 = dma.done [#allocation3], 256
    $region25: #{text_decoder_forward.37} parent=1 // pred_fallthru
      _
    %140 = vsyncpa [#allocation3], 1

</llo_original>
